<compile_context>
chip_gen: v6e
topology: v6e:2x2x1
jax: 0.10.0
libtpu: 0.0.40
codegen_flags: <defaults>
</compile_context>

<pallas_src>
import jax
import jax.numpy as jnp
import numpy as np
from jax.experimental import pallas as pl
from jax.experimental.pallas import tpu as pltpu

LN_EPS = 1e-5


def _layernorm(x, gamma, beta, eps=LN_EPS):
    """LayerNorm over the last axis; two-pass (centered) variance, f32."""
    mean = jnp.mean(x, axis=-1, keepdims=True)
    xc = x - mean
    var = jnp.mean(xc * xc, axis=-1, keepdims=True)
    return xc * jax.lax.rsqrt(var + eps) * gamma + beta


# ----------------------------------------------------------------------------
# Fused encoder-stack kernel
# ----------------------------------------------------------------------------
def _make_encoder_kernel(B, L, M, MP):
    """B=batch, L=seq, M=L*B working rows, MP=padded rows (>= M + (L-1)*B)."""

    def kernel(x_ref, ck_ref, vec_ref, w1_ref, b1_ref, w2_ref, o_ref, xbuf):
        layer = pl.program_id(0)

        # Layer 0: zero the padded scratch once (pad rows stay zero for the whole
        # stack) and load the input into the working rows [0:M).
        @pl.when(layer == 0)
        def _():
            xbuf[...] = jnp.zeros_like(xbuf)
            xbuf[0:M, :] = x_ref[...]

        x = xbuf[0:M, :]       # (M, D) current activation, f32
        xp = xbuf[...]         # (MP, D) padded slab for circular rolls

        # ---- S4 mixing: causal depthwise conv along L ------------------------
        # rows are seq-major (row = l*B + b); shifting the sequence by s steps is
        # a sublane roll by s*B on the padded slab — the wrapped rows come from
        # the zero pad region, so no causality mask / select is needed.
        # Tap 0 already contains the SSM "D" skip (folded at param prep).
        # NOTE: loop is unrolled (L is small/static); for large L switch to a
        # blocked-halo or FFT formulation before this becomes VALU/XLU bound.
        kern = ck_ref[...]                                  # (L, D) f32
        u = x * kern[0:1, :]
        for s in range(1, L):
            rolled = pltpu.roll(xp, shift=s * B, axis=0)    # XLU; zeros wrap in
            u = u + rolled[0:M, :] * kern[s:s + 1, :]

        # ---- post-norm residual 1 -------------------------------------------
        # packed per-layer vectors: 0=LN1 gamma, 1=LN1 beta, 2=LN2 gamma,
        # 3=LN2 beta, 4=MLP b2, 5..7=padding.
        h = _layernorm(x + u, vec_ref[0:1, :], vec_ref[1:2, :])

        # ---- MLP (relu) on the MXU, f32 operands / f32 accumulation ----------
        f = jnp.dot(h, w1_ref[...],
                    precision=jax.lax.Precision.HIGHEST,
                    preferred_element_type=jnp.float32) + b1_ref[...]
        f = jnp.maximum(f, 0.0)
        f = jnp.dot(f, w2_ref[...],
                    precision=jax.lax.Precision.HIGHEST,
                    preferred_element_type=jnp.float32) + vec_ref[4:5, :]

        # ---- post-norm residual 2 -------------------------------------------
        y = _layernorm(h + f, vec_ref[2:3, :], vec_ref[3:4, :])

        xbuf[0:M, :] = y       # carry activation to the next layer (pad stays 0)
        o_ref[...] = y         # resident output block; HBM writeback at grid end

    return kernel


def s4_encoder_forward(src, params):
    """S4Encoder forward.  src: (L, B, D) float32 (seq, batch, d_model)."""
    L, B, D = src.shape
    ck, vec, w1, b1, w2 = params
    num_layers = ck.shape[0]
    F = w1.shape[-1]
    M = L * B
    MP = ((M + (L - 1) * B + 7) // 8) * 8      # padded rows for maskless rolls

    x2d = src.reshape(M, D)                    # free metadata reshape (seq-major)

    whole = pl.BlockSpec((M, D), lambda l: (0, 0))          # constant -> resident

    def per_layer(*shape):
        zeros = (0,) * len(shape)
        return pl.BlockSpec((None,) + shape, lambda l: (l,) + zeros)

    out2d = pl.pallas_call(
        _make_encoder_kernel(B, L, M, MP),
        out_shape=jax.ShapeDtypeStruct((M, D), jnp.float32),
        grid=(num_layers,),
        in_specs=[
            whole,                                          # x (loaded once)
            per_layer(L, D),                                # conv kernel (+D skip)
            per_layer(8, D),                                # packed LN/bias vectors
            per_layer(D, F),                                # W1
            per_layer(1, F),                                # b1
            per_layer(F, D),                                # W2
        ],
        out_specs=whole,                                    # revisited across layers
        scratch_shapes=[pltpu.VMEM((MP, D), jnp.float32)],  # zero-padded activation
        compiler_params=pltpu.CompilerParams(
            dimension_semantics=("arbitrary",),             # layer axis is sequential
            vmem_limit_bytes=32 * 1024 * 1024),
        # TODO(synk): for production shapes on v7x add a leading "parallel" batch
        # axis (grid=(B//tile_b, num_layers)) so the second TensorCore is used,
        # and re-check resident + double-buffered-weight VMEM vs 64 MiB.
    )(x2d, ck, vec, w1, b1, w2)

    # S4Sequence constructs S4Encoder with norm=None, so no final LayerNorm.
    return out2d.reshape(L, B, D)


# ----------------------------------------------------------------------------
# Pure-JAX reference (same math / precision as the kernel)
# ----------------------------------------------------------------------------
def s4_encoder_reference(src, params):
    L, B, D = src.shape
    ck, vec, w1, b1, w2 = params
    num_layers = ck.shape[0]
    x = src.astype(jnp.float32)
    for i in range(num_layers):
        k = ck[i]                                           # (L, D), tap0 has D-skip
        u = x * k[0][None, None, :]
        for s in range(1, L):
            shifted = jnp.pad(x, ((s, 0), (0, 0), (0, 0)))[:L]
            u = u + shifted * k[s][None, None, :]
        g1 = vec[i, 0].reshape(1, 1, D)
        be1 = vec[i, 1].reshape(1, 1, D)
        h = _layernorm(x + u, g1, be1)
        h2d = h.reshape(L * B, D)
        f = jnp.dot(h2d, w1[i], precision=jax.lax.Precision.HIGHEST,
                    preferred_element_type=jnp.float32) + b1[i]
        f = jnp.maximum(f, 0.0)
        f = jnp.dot(f, w2[i], precision=jax.lax.Precision.HIGHEST,
                    preferred_element_type=jnp.float32) + vec[i, 4]
        x = _layernorm(h2d + f, vec[i, 2], vec[i, 3]).reshape(L, B, D)
    return x


# ----------------------------------------------------------------------------
# Deterministic parameters (stacked over layers; small vectors packed)
# ----------------------------------------------------------------------------
def make_params(key, num_layers, L, D, F):
    def one(i):
        k = jax.random.fold_in(key, i)
        k1, k2, k3, k4, k5 = jax.random.split(k, 5)
        ck = 0.1 * jax.random.normal(k1, (L, D), jnp.float32)
        dskip = 0.1 * jax.random.normal(k2, (D,), jnp.float32)
        ck = ck.at[0].add(dskip)                 # fold SSM "D" skip into tap 0
        w1 = jax.random.normal(k3, (D, F), jnp.float32) / np.sqrt(D)
        w2 = jax.random.normal(k4, (F, D), jnp.float32) / np.sqrt(F)
        kg1, kb1, kg2, kb2, kbb1, kbb2 = jax.random.split(k5, 6)
        b1 = 0.1 * jax.random.normal(kbb1, (1, F), jnp.float32)
        # packed per-layer D-vectors: [g1, be1, g2, be2, b2, pad, pad, pad]
        vec = jnp.zeros((8, D), jnp.float32)
        vec = vec.at[0].set(1.0 + 0.1 * jax.random.normal(kg1, (D,), jnp.float32))
        vec = vec.at[1].set(0.1 * jax.random.normal(kb1, (D,), jnp.float32))
        vec = vec.at[2].set(1.0 + 0.1 * jax.random.normal(kg2, (D,), jnp.float32))
        vec = vec.at[3].set(0.1 * jax.random.normal(kb2, (D,), jnp.float32))
        vec = vec.at[4].set(0.1 * jax.random.normal(kbb2, (D,), jnp.float32))
        return ck, vec, w1, b1, w2

    per_layer = [one(i) for i in range(num_layers)]
    return tuple(jnp.stack(t) for t in zip(*per_layer))


# ----------------------------------------------------------------------------
if __name__ == "__main__":
    L, B, D, F = 16, 2, 128, 256        # seq, batch, d_model, d_inner (small, lane-dense)
    NUM_LAYERS = 2

    key = jax.random.PRNGKey(0)
    k_src, k_par = jax.random.split(key)
    src = jax.random.normal(k_src, (L, B, D), jnp.float32)   # (seq, batch, d_model)
    params = make_params(k_par, NUM_LAYERS, L, D, F)

    out = jax.jit(s4_encoder_forward)(src, params)
    jax.block_until_ready(out)

    assert out.shape == (L, B, D) and out.dtype == jnp.float32
    ref = s4_encoder_reference(src, params)
    np.testing.assert_allclose(np.asarray(out), np.asarray(ref), atol=2e-3, rtol=2e-3)
    print("KERNEL_OK")
</pallas_src>

<mosaic_0001>
module attributes {stable_mosaic.version = 11 : i64} {
  func.func @kernel(%arg0: i32, %arg1: memref<32x128xf32, #tpu.memory_space<vmem>>, %arg2: memref<1x16x128xf32, #tpu.memory_space<vmem>>, %arg3: memref<1x8x128xf32, #tpu.memory_space<vmem>>, %arg4: memref<1x128x256xf32, #tpu.memory_space<vmem>>, %arg5: memref<1x1x256xf32, #tpu.memory_space<vmem>>, %arg6: memref<1x256x128xf32, #tpu.memory_space<vmem>>, %arg7: memref<32x128xf32, #tpu.memory_space<vmem>>, %arg8: memref<64x128xf32, #tpu.memory_space<vmem>>) attributes {dimension_semantics = [#tpu.dimension_semantics<arbitrary>], iteration_bounds = array<i64: 2>, scalar_prefetch = 0 : i64, scratch_operands = 1 : i64, tpu.core_type = #tpu.core_type<tc>, window_params = [{pipeline_mode = #tpu.pipeline_mode<synchronous>, transform_indices = @transform_0, window_bounds = array<i64: 32, 128>}, {transform_indices = @transform_1, window_bounds = array<i64: 1, 16, 128>}, {transform_indices = @transform_2, window_bounds = array<i64: 1, 8, 128>}, {transform_indices = @transform_3, window_bounds = array<i64: 1, 128, 256>}, {transform_indices = @transform_4, window_bounds = array<i64: 1, 1, 256>}, {transform_indices = @transform_5, window_bounds = array<i64: 1, 256, 128>}, {pipeline_mode = #tpu.pipeline_mode<synchronous>, transform_indices = @transform_6, window_bounds = array<i64: 32, 128>}]} {
    %c0_i32 = arith.constant 0 : i32
    %0 = arith.cmpi eq, %arg0, %c0_i32 : i32
    %1 = arith.extui %0 : i1 to i32
    %c0_i32_0 = arith.constant 0 : i32
    %2 = arith.cmpi ne, %1, %c0_i32_0 : i32
    scf.if %2 {
      %cst_43 = arith.constant 0.000000e+00 : f32
      %168 = vector.broadcast %cst_43 : f32 to vector<64x128xf32>
      %c0_44 = arith.constant 0 : index
      %c0_45 = arith.constant 0 : index
      %169 = vector.load %arg8[%c0_44, %c0_45] : memref<64x128xf32, #tpu.memory_space<vmem>>, vector<64x128xf32>
      tpu.vector_store %arg8[%c0_44, %c0_45], %168 {strides = array<i32>} : memref<64x128xf32, #tpu.memory_space<vmem>>, vector<64x128xf32>,
      %c0_46 = arith.constant 0 : index
      %c0_47 = arith.constant 0 : index
      %170 = vector.load %arg1[%c0_46, %c0_47] : memref<32x128xf32, #tpu.memory_space<vmem>>, vector<32x128xf32>
      %c0_48 = arith.constant 0 : index
      %c0_49 = arith.constant 0 : index
      %171 = vector.load %arg8[%c0_48, %c0_49] : memref<64x128xf32, #tpu.memory_space<vmem>>, vector<32x128xf32>
      tpu.vector_store %arg8[%c0_48, %c0_49], %170 {strides = array<i32>} : memref<64x128xf32, #tpu.memory_space<vmem>>, vector<32x128xf32>,
    } else {
    }
    %c0 = arith.constant 0 : index
    %c0_1 = arith.constant 0 : index
    %3 = vector.load %arg8[%c0, %c0_1] : memref<64x128xf32, #tpu.memory_space<vmem>>, vector<32x128xf32>
    %c0_2 = arith.constant 0 : index
    %c0_3 = arith.constant 0 : index
    %4 = vector.load %arg8[%c0_2, %c0_3] : memref<64x128xf32, #tpu.memory_space<vmem>>, vector<64x128xf32>
    %c0_4 = arith.constant 0 : index
    %c0_5 = arith.constant 0 : index
    %c0_6 = arith.constant 0 : index
    %5 = vector.load %arg2[%c0_4, %c0_5, %c0_6] : memref<1x16x128xf32, #tpu.memory_space<vmem>>, vector<1x16x128xf32>
    %6 = vector.shape_cast %5 : vector<1x16x128xf32> to vector<16x128xf32>
    %7 = vector.extract_strided_slice %6 {offsets = [0, 0], sizes = [1, 128], strides = [1, 1]} : vector<16x128xf32> to vector<1x128xf32>
    %8 = vector.broadcast %7 : vector<1x128xf32> to vector<32x128xf32>
    %9 = arith.mulf %3, %8 : vector<32x128xf32>
    %c2_i32 = arith.constant 2 : i32
    %10 = tpu.dynamic_rotate %4 by %c2_i32 dim 0 : vector<64x128xf32>, i32 -> vector<64x128xf32>
    %11 = vector.extract_strided_slice %10 {offsets = [0, 0], sizes = [32, 128], strides = [1, 1]} : vector<64x128xf32> to vector<32x128xf32>
    %12 = vector.extract_strided_slice %6 {offsets = [1, 0], sizes = [1, 128], strides = [1, 1]} : vector<16x128xf32> to vector<1x128xf32>
    %13 = vector.broadcast %12 : vector<1x128xf32> to vector<32x128xf32>
    %14 = arith.mulf %11, %13 : vector<32x128xf32>
    %15 = arith.addf %9, %14 : vector<32x128xf32>
    %c4_i32 = arith.constant 4 : i32
    %16 = tpu.dynamic_rotate %4 by %c4_i32 dim 0 : vector<64x128xf32>, i32 -> vector<64x128xf32>
    %17 = vector.extract_strided_slice %16 {offsets = [0, 0], sizes = [32, 128], strides = [1, 1]} : vector<64x128xf32> to vector<32x128xf32>
    %18 = vector.extract_strided_slice %6 {offsets = [2, 0], sizes = [1, 128], strides = [1, 1]} : vector<16x128xf32> to vector<1x128xf32>
    %19 = vector.broadcast %18 : vector<1x128xf32> to vector<32x128xf32>
    %20 = arith.mulf %17, %19 : vector<32x128xf32>
    %21 = arith.addf %15, %20 : vector<32x128xf32>
    %c6_i32 = arith.constant 6 : i32
    %22 = tpu.dynamic_rotate %4 by %c6_i32 dim 0 : vector<64x128xf32>, i32 -> vector<64x128xf32>
    %23 = vector.extract_strided_slice %22 {offsets = [0, 0], sizes = [32, 128], strides = [1, 1]} : vector<64x128xf32> to vector<32x128xf32>
    %24 = vector.extract_strided_slice %6 {offsets = [3, 0], sizes = [1, 128], strides = [1, 1]} : vector<16x128xf32> to vector<1x128xf32>
    %25 = vector.broadcast %24 : vector<1x128xf32> to vector<32x128xf32>
    %26 = arith.mulf %23, %25 : vector<32x128xf32>
    %27 = arith.addf %21, %26 : vector<32x128xf32>
    %c8_i32 = arith.constant 8 : i32
    %28 = tpu.dynamic_rotate %4 by %c8_i32 dim 0 : vector<64x128xf32>, i32 -> vector<64x128xf32>
    %29 = vector.extract_strided_slice %28 {offsets = [0, 0], sizes = [32, 128], strides = [1, 1]} : vector<64x128xf32> to vector<32x128xf32>
    %30 = vector.extract_strided_slice %6 {offsets = [4, 0], sizes = [1, 128], strides = [1, 1]} : vector<16x128xf32> to vector<1x128xf32>
    %31 = vector.broadcast %30 : vector<1x128xf32> to vector<32x128xf32>
    %32 = arith.mulf %29, %31 : vector<32x128xf32>
    %33 = arith.addf %27, %32 : vector<32x128xf32>
    %c10_i32 = arith.constant 10 : i32
    %34 = tpu.dynamic_rotate %4 by %c10_i32 dim 0 : vector<64x128xf32>, i32 -> vector<64x128xf32>
    %35 = vector.extract_strided_slice %34 {offsets = [0, 0], sizes = [32, 128], strides = [1, 1]} : vector<64x128xf32> to vector<32x128xf32>
    %36 = vector.extract_strided_slice %6 {offsets = [5, 0], sizes = [1, 128], strides = [1, 1]} : vector<16x128xf32> to vector<1x128xf32>
    %37 = vector.broadcast %36 : vector<1x128xf32> to vector<32x128xf32>
    %38 = arith.mulf %35, %37 : vector<32x128xf32>
    %39 = arith.addf %33, %38 : vector<32x128xf32>
    %c12_i32 = arith.constant 12 : i32
    %40 = tpu.dynamic_rotate %4 by %c12_i32 dim 0 : vector<64x128xf32>, i32 -> vector<64x128xf32>
    %41 = vector.extract_strided_slice %40 {offsets = [0, 0], sizes = [32, 128], strides = [1, 1]} : vector<64x128xf32> to vector<32x128xf32>
    %42 = vector.extract_strided_slice %6 {offsets = [6, 0], sizes = [1, 128], strides = [1, 1]} : vector<16x128xf32> to vector<1x128xf32>
    %43 = vector.broadcast %42 : vector<1x128xf32> to vector<32x128xf32>
    %44 = arith.mulf %41, %43 : vector<32x128xf32>
    %45 = arith.addf %39, %44 : vector<32x128xf32>
    %c14_i32 = arith.constant 14 : i32
    %46 = tpu.dynamic_rotate %4 by %c14_i32 dim 0 : vector<64x128xf32>, i32 -> vector<64x128xf32>
    %47 = vector.extract_strided_slice %46 {offsets = [0, 0], sizes = [32, 128], strides = [1, 1]} : vector<64x128xf32> to vector<32x128xf32>
    %48 = vector.extract_strided_slice %6 {offsets = [7, 0], sizes = [1, 128], strides = [1, 1]} : vector<16x128xf32> to vector<1x128xf32>
    %49 = vector.broadcast %48 : vector<1x128xf32> to vector<32x128xf32>
    %50 = arith.mulf %47, %49 : vector<32x128xf32>
    %51 = arith.addf %45, %50 : vector<32x128xf32>
    %c16_i32 = arith.constant 16 : i32
    %52 = tpu.dynamic_rotate %4 by %c16_i32 dim 0 : vector<64x128xf32>, i32 -> vector<64x128xf32>
    %53 = vector.extract_strided_slice %52 {offsets = [0, 0], sizes = [32, 128], strides = [1, 1]} : vector<64x128xf32> to vector<32x128xf32>
    %54 = vector.extract_strided_slice %6 {offsets = [8, 0], sizes = [1, 128], strides = [1, 1]} : vector<16x128xf32> to vector<1x128xf32>
    %55 = vector.broadcast %54 : vector<1x128xf32> to vector<32x128xf32>
    %56 = arith.mulf %53, %55 : vector<32x128xf32>
    %57 = arith.addf %51, %56 : vector<32x128xf32>
    %c18_i32 = arith.constant 18 : i32
    %58 = tpu.dynamic_rotate %4 by %c18_i32 dim 0 : vector<64x128xf32>, i32 -> vector<64x128xf32>
    %59 = vector.extract_strided_slice %58 {offsets = [0, 0], sizes = [32, 128], strides = [1, 1]} : vector<64x128xf32> to vector<32x128xf32>
    %60 = vector.extract_strided_slice %6 {offsets = [9, 0], sizes = [1, 128], strides = [1, 1]} : vector<16x128xf32> to vector<1x128xf32>
    %61 = vector.broadcast %60 : vector<1x128xf32> to vector<32x128xf32>
    %62 = arith.mulf %59, %61 : vector<32x128xf32>
    %63 = arith.addf %57, %62 : vector<32x128xf32>
    %c20_i32 = arith.constant 20 : i32
    %64 = tpu.dynamic_rotate %4 by %c20_i32 dim 0 : vector<64x128xf32>, i32 -> vector<64x128xf32>
    %65 = vector.extract_strided_slice %64 {offsets = [0, 0], sizes = [32, 128], strides = [1, 1]} : vector<64x128xf32> to vector<32x128xf32>
    %66 = vector.extract_strided_slice %6 {offsets = [10, 0], sizes = [1, 128], strides = [1, 1]} : vector<16x128xf32> to vector<1x128xf32>
    %67 = vector.broadcast %66 : vector<1x128xf32> to vector<32x128xf32>
    %68 = arith.mulf %65, %67 : vector<32x128xf32>
    %69 = arith.addf %63, %68 : vector<32x128xf32>
    %c22_i32 = arith.constant 22 : i32
    %70 = tpu.dynamic_rotate %4 by %c22_i32 dim 0 : vector<64x128xf32>, i32 -> vector<64x128xf32>
    %71 = vector.extract_strided_slice %70 {offsets = [0, 0], sizes = [32, 128], strides = [1, 1]} : vector<64x128xf32> to vector<32x128xf32>
    %72 = vector.extract_strided_slice %6 {offsets = [11, 0], sizes = [1, 128], strides = [1, 1]} : vector<16x128xf32> to vector<1x128xf32>
    %73 = vector.broadcast %72 : vector<1x128xf32> to vector<32x128xf32>
    %74 = arith.mulf %71, %73 : vector<32x128xf32>
    %75 = arith.addf %69, %74 : vector<32x128xf32>
    %c24_i32 = arith.constant 24 : i32
    %76 = tpu.dynamic_rotate %4 by %c24_i32 dim 0 : vector<64x128xf32>, i32 -> vector<64x128xf32>
    %77 = vector.extract_strided_slice %76 {offsets = [0, 0], sizes = [32, 128], strides = [1, 1]} : vector<64x128xf32> to vector<32x128xf32>
    %78 = vector.extract_strided_slice %6 {offsets = [12, 0], sizes = [1, 128], strides = [1, 1]} : vector<16x128xf32> to vector<1x128xf32>
    %79 = vector.broadcast %78 : vector<1x128xf32> to vector<32x128xf32>
    %80 = arith.mulf %77, %79 : vector<32x128xf32>
    %81 = arith.addf %75, %80 : vector<32x128xf32>
    %c26_i32 = arith.constant 26 : i32
    %82 = tpu.dynamic_rotate %4 by %c26_i32 dim 0 : vector<64x128xf32>, i32 -> vector<64x128xf32>
    %83 = vector.extract_strided_slice %82 {offsets = [0, 0], sizes = [32, 128], strides = [1, 1]} : vector<64x128xf32> to vector<32x128xf32>
    %84 = vector.extract_strided_slice %6 {offsets = [13, 0], sizes = [1, 128], strides = [1, 1]} : vector<16x128xf32> to vector<1x128xf32>
    %85 = vector.broadcast %84 : vector<1x128xf32> to vector<32x128xf32>
    %86 = arith.mulf %83, %85 : vector<32x128xf32>
    %87 = arith.addf %81, %86 : vector<32x128xf32>
    %c28_i32 = arith.constant 28 : i32
    %88 = tpu.dynamic_rotate %4 by %c28_i32 dim 0 : vector<64x128xf32>, i32 -> vector<64x128xf32>
    %89 = vector.extract_strided_slice %88 {offsets = [0, 0], sizes = [32, 128], strides = [1, 1]} : vector<64x128xf32> to vector<32x128xf32>
    %90 = vector.extract_strided_slice %6 {offsets = [14, 0], sizes = [1, 128], strides = [1, 1]} : vector<16x128xf32> to vector<1x128xf32>
    %91 = vector.broadcast %90 : vector<1x128xf32> to vector<32x128xf32>
    %92 = arith.mulf %89, %91 : vector<32x128xf32>
    %93 = arith.addf %87, %92 : vector<32x128xf32>
    %c30_i32 = arith.constant 30 : i32
    %94 = tpu.dynamic_rotate %4 by %c30_i32 dim 0 : vector<64x128xf32>, i32 -> vector<64x128xf32>
    %95 = vector.extract_strided_slice %94 {offsets = [0, 0], sizes = [32, 128], strides = [1, 1]} : vector<64x128xf32> to vector<32x128xf32>
    %96 = vector.extract_strided_slice %6 {offsets = [15, 0], sizes = [1, 128], strides = [1, 1]} : vector<16x128xf32> to vector<1x128xf32>
    %97 = vector.broadcast %96 : vector<1x128xf32> to vector<32x128xf32>
    %98 = arith.mulf %95, %97 : vector<32x128xf32>
    %99 = arith.addf %93, %98 : vector<32x128xf32>
    %100 = arith.addf %3, %99 : vector<32x128xf32>
    %c0_7 = arith.constant 0 : index
    %c0_8 = arith.constant 0 : index
    %c0_9 = arith.constant 0 : index
    %101 = vector.load %arg3[%c0_7, %c0_8, %c0_9] : memref<1x8x128xf32, #tpu.memory_space<vmem>>, vector<1x1x128xf32>
    %102 = vector.shape_cast %101 : vector<1x1x128xf32> to vector<1x128xf32>
    %c0_10 = arith.constant 0 : index
    %c1 = arith.constant 1 : index
    %c0_11 = arith.constant 0 : index
    %103 = vector.load %arg3[%c0_10, %c1, %c0_11] : memref<1x8x128xf32, #tpu.memory_space<vmem>>, vector<1x1x128xf32>
    %104 = vector.shape_cast %103 : vector<1x1x128xf32> to vector<1x128xf32>
    %cst = arith.constant dense<0.000000e+00> : vector<32xf32>
    %105 = vector.multi_reduction <add>, %100, %cst [1] : vector<32x128xf32> to vector<32xf32>
    %106 = vector.shape_cast %105 : vector<32xf32> to vector<32x1xf32>
    %cst_12 = arith.constant 1.280000e+02 : f32
    %107 = vector.broadcast %cst_12 : f32 to vector<32x1xf32>
    %108 = arith.divf %106, %107 : vector<32x1xf32>
    %109 = vector.broadcast %108 : vector<32x1xf32> to vector<32x128xf32>
    %110 = arith.subf %100, %109 : vector<32x128xf32>
    %111 = arith.mulf %110, %110 : vector<32x128xf32>
    %cst_13 = arith.constant dense<0.000000e+00> : vector<32xf32>
    %112 = vector.multi_reduction <add>, %111, %cst_13 [1] : vector<32x128xf32> to vector<32xf32>
    %113 = vector.shape_cast %112 : vector<32xf32> to vector<32x1xf32>
    %cst_14 = arith.constant 1.280000e+02 : f32
    %114 = vector.broadcast %cst_14 : f32 to vector<32x1xf32>
    %115 = arith.divf %113, %114 : vector<32x1xf32>
    %cst_15 = arith.constant 9.99999974E-6 : f32
    %116 = vector.broadcast %cst_15 : f32 to vector<32x1xf32>
    %117 = arith.addf %115, %116 : vector<32x1xf32>
    %118 = math.rsqrt %117 : vector<32x1xf32>
    %119 = vector.broadcast %118 : vector<32x1xf32> to vector<32x128xf32>
    %120 = arith.mulf %110, %119 : vector<32x128xf32>
    %121 = vector.broadcast %102 : vector<1x128xf32> to vector<32x128xf32>
    %122 = arith.mulf %120, %121 : vector<32x128xf32>
    %123 = vector.broadcast %104 : vector<1x128xf32> to vector<32x128xf32>
    %124 = arith.addf %122, %123 : vector<32x128xf32>
    %c0_16 = arith.constant 0 : index
    %c0_17 = arith.constant 0 : index
    %c0_18 = arith.constant 0 : index
    %125 = vector.load %arg4[%c0_16, %c0_17, %c0_18] : memref<1x128x256xf32, #tpu.memory_space<vmem>>, vector<1x128x256xf32>
    %126 = vector.shape_cast %125 : vector<1x128x256xf32> to vector<128x256xf32>
    %cst_19 = arith.constant dense<0.000000e+00> : vector<32x256xf32>
    %127 = tpu.matmul %124, %126, %cst_19 {dimension_numbers = #tpu.dot_dimension_numbers<[1], [0], [0], [1], [0, 0, 1, 1], [], []>, precision = #tpu.contract_precision<fp32>} : vector<32x128xf32>, vector<128x256xf32>, vector<32x256xf32> -> vector<32x256xf32>
    %c0_20 = arith.constant 0 : index
    %c0_21 = arith.constant 0 : index
    %c0_22 = arith.constant 0 : index
    %128 = vector.load %arg5[%c0_20, %c0_21, %c0_22] : memref<1x1x256xf32, #tpu.memory_space<vmem>>, vector<1x1x256xf32>
    %129 = vector.shape_cast %128 : vector<1x1x256xf32> to vector<1x256xf32>
    %130 = vector.broadcast %129 : vector<1x256xf32> to vector<32x256xf32>
    %131 = arith.addf %127, %130 : vector<32x256xf32>
    %cst_23 = arith.constant 0.000000e+00 : f32
    %132 = vector.broadcast %cst_23 : f32 to vector<32x256xf32>
    %133 = arith.maximumf %131, %132 : vector<32x256xf32>
    %c0_24 = arith.constant 0 : index
    %c0_25 = arith.constant 0 : index
    %c0_26 = arith.constant 0 : index
    %134 = vector.load %arg6[%c0_24, %c0_25, %c0_26] : memref<1x256x128xf32, #tpu.memory_space<vmem>>, vector<1x256x128xf32>
    %135 = vector.shape_cast %134 : vector<1x256x128xf32> to vector<256x128xf32>
    %cst_27 = arith.constant dense<0.000000e+00> : vector<32x128xf32>
    %136 = tpu.matmul %133, %135, %cst_27 {dimension_numbers = #tpu.dot_dimension_numbers<[1], [0], [0], [1], [0, 0, 1, 1], [], []>, precision = #tpu.contract_precision<fp32>} : vector<32x256xf32>, vector<256x128xf32>, vector<32x128xf32> -> vector<32x128xf32>
    %c0_28 = arith.constant 0 : index
    %c4 = arith.constant 4 : index
    %c0_29 = arith.constant 0 : index
    %137 = vector.load %arg3[%c0_28, %c4, %c0_29] : memref<1x8x128xf32, #tpu.memory_space<vmem>>, vector<1x1x128xf32>
    %138 = vector.shape_cast %137 : vector<1x1x128xf32> to vector<1x128xf32>
    %139 = vector.broadcast %138 : vector<1x128xf32> to vector<32x128xf32>
    %140 = arith.addf %136, %139 : vector<32x128xf32>
    %141 = arith.addf %124, %140 : vector<32x128xf32>
    %c0_30 = arith.constant 0 : index
    %c2 = arith.constant 2 : index
    %c0_31 = arith.constant 0 : index
    %142 = vector.load %arg3[%c0_30, %c2, %c0_31] : memref<1x8x128xf32, #tpu.memory_space<vmem>>, vector<1x1x128xf32>
    %143 = vector.shape_cast %142 : vector<1x1x128xf32> to vector<1x128xf32>
    %c0_32 = arith.constant 0 : index
    %c3 = arith.constant 3 : index
    %c0_33 = arith.constant 0 : index
    %144 = vector.load %arg3[%c0_32, %c3, %c0_33] : memref<1x8x128xf32, #tpu.memory_space<vmem>>, vector<1x1x128xf32>
    %145 = vector.shape_cast %144 : vector<1x1x128xf32> to vector<1x128xf32>
    %cst_34 = arith.constant dense<0.000000e+00> : vector<32xf32>
    %146 = vector.multi_reduction <add>, %141, %cst_34 [1] : vector<32x128xf32> to vector<32xf32>
    %147 = vector.shape_cast %146 : vector<32xf32> to vector<32x1xf32>
    %cst_35 = arith.constant 1.280000e+02 : f32
    %148 = vector.broadcast %cst_35 : f32 to vector<32x1xf32>
    %149 = arith.divf %147, %148 : vector<32x1xf32>
    %150 = vector.broadcast %149 : vector<32x1xf32> to vector<32x128xf32>
    %151 = arith.subf %141, %150 : vector<32x128xf32>
    %152 = arith.mulf %151, %151 : vector<32x128xf32>
    %cst_36 = arith.constant dense<0.000000e+00> : vector<32xf32>
    %153 = vector.multi_reduction <add>, %152, %cst_36 [1] : vector<32x128xf32> to vector<32xf32>
    %154 = vector.shape_cast %153 : vector<32xf32> to vector<32x1xf32>
    %cst_37 = arith.constant 1.280000e+02 : f32
    %155 = vector.broadcast %cst_37 : f32 to vector<32x1xf32>
    %156 = arith.divf %154, %155 : vector<32x1xf32>
    %cst_38 = arith.constant 9.99999974E-6 : f32
    %157 = vector.broadcast %cst_38 : f32 to vector<32x1xf32>
    %158 = arith.addf %156, %157 : vector<32x1xf32>
    %159 = math.rsqrt %158 : vector<32x1xf32>
    %160 = vector.broadcast %159 : vector<32x1xf32> to vector<32x128xf32>
    %161 = arith.mulf %151, %160 : vector<32x128xf32>
    %162 = vector.broadcast %143 : vector<1x128xf32> to vector<32x128xf32>
    %163 = arith.mulf %161, %162 : vector<32x128xf32>
    %164 = vector.broadcast %145 : vector<1x128xf32> to vector<32x128xf32>
    %165 = arith.addf %163, %164 : vector<32x128xf32>
    %c0_39 = arith.constant 0 : index
    %c0_40 = arith.constant 0 : index
    %166 = vector.load %arg8[%c0_39, %c0_40] : memref<64x128xf32, #tpu.memory_space<vmem>>, vector<32x128xf32>
    tpu.vector_store %arg8[%c0_39, %c0_40], %165 {strides = array<i32>} : memref<64x128xf32, #tpu.memory_space<vmem>>, vector<32x128xf32>,
    %c0_41 = arith.constant 0 : index
    %c0_42 = arith.constant 0 : index
    %167 = vector.load %arg7[%c0_41, %c0_42] : memref<32x128xf32, #tpu.memory_space<vmem>>, vector<32x128xf32>
    tpu.vector_store %arg7[%c0_41, %c0_42], %165 {strides = array<i32>} : memref<32x128xf32, #tpu.memory_space<vmem>>, vector<32x128xf32>,
    return
  }
  func.func @transform_0(%arg0: i32) -> (i32, i32) {
    %c0_i32 = arith.constant 0 : i32
    %c0_i32_0 = arith.constant 0 : i32
    %c0_i32_1 = arith.constant 0 : i32
    return %c0_i32, %c0_i32_0 : i32, i32
  }
  func.func @transform_1(%arg0: i32) -> (i32, i32, i32) {
    %c0_i32 = arith.constant 0 : i32
    %c0_i32_0 = arith.constant 0 : i32
    %c0_i32_1 = arith.constant 0 : i32
    return %arg0, %c0_i32, %c0_i32_0 : i32, i32, i32
  }
  func.func @transform_2(%arg0: i32) -> (i32, i32, i32) {
    %c0_i32 = arith.constant 0 : i32
    %c0_i32_0 = arith.constant 0 : i32
    %c0_i32_1 = arith.constant 0 : i32
    return %arg0, %c0_i32, %c0_i32_0 : i32, i32, i32
  }
  func.func @transform_3(%arg0: i32) -> (i32, i32, i32) {
    %c0_i32 = arith.constant 0 : i32
    %c0_i32_0 = arith.constant 0 : i32
    %c0_i32_1 = arith.constant 0 : i32
    return %arg0, %c0_i32, %c0_i32_0 : i32, i32, i32
  }
  func.func @transform_4(%arg0: i32) -> (i32, i32, i32) {
    %c0_i32 = arith.constant 0 : i32
    %c0_i32_0 = arith.constant 0 : i32
    %c0_i32_1 = arith.constant 0 : i32
    return %arg0, %c0_i32, %c0_i32_0 : i32, i32, i32
  }
  func.func @transform_5(%arg0: i32) -> (i32, i32, i32) {
    %c0_i32 = arith.constant 0 : i32
    %c0_i32_0 = arith.constant 0 : i32
    %c0_i32_1 = arith.constant 0 : i32
    return %arg0, %c0_i32, %c0_i32_0 : i32, i32, i32
  }
  func.func @transform_6(%arg0: i32) -> (i32, i32) {
    %c0_i32 = arith.constant 0 : i32
    %c0_i32_0 = arith.constant 0 : i32
    %c0_i32_1 = arith.constant 0 : i32
    return %c0_i32, %c0_i32_0 : i32, i32
  }
}

</mosaic_0001>

<llo_original>
// kernel: s4_encoder_forward.1
$region0: #{s4_encoder_forward.1}
  #allocation0 [shape = 'u32[]', space=smem, size = 0x4, offset = 0x4, fixed_abs, tag = 'smem constant byte address 0x4 - core index']
  #allocation1 [shape = 'u32[144,128]{1,0:T(1,128)}', space=vmem, size = 0x12000, scoped, tag = 'internal scratch']
  #allocation2 [shape = 'f32[64,128]{1,0:T(8,128)}', space=vmem, size = 0x8000, scoped, tag = 'scratch operand']
  %s0 = inlined_call_operand.hbm [shape: f32[32,128], index: 0, kind: input, shape index: {}]
  %s1 = inlined_call_operand.hbm [shape: f32[2,16,128], index: 1, kind: input, shape index: {}]
  %s2 = inlined_call_operand.hbm [shape: f32[2,8,128], index: 2, kind: input, shape index: {}]
  %s3 = inlined_call_operand.hbm [shape: f32[2,128,256], index: 3, kind: input, shape index: {}]
  %s4 = inlined_call_operand.vmem [shape: f32[2,1,256], index: 4, kind: input, shape index: {}]
  %s5 = inlined_call_operand.hbm [shape: f32[2,256,128], index: 5, kind: input, shape index: {}]
  %s6 = inlined_call_operand.hbm [shape: f32[32,128], index: 6, kind: output, shape index: {}]
  %s7 = sld [smem:[#allocation0]]
  $region81: #{s4_encoder_forward.1} parent=0
    _
  %s9 = ssub.s32 1, %s7
  %s10 = scalar_select 0, %s9, %s7
  $region1: #{s4_encoder_forward.1} parent=0
    #allocation3 [shape = 'u8[16384]{0}', space=vmem, size = 0x4000, scoped, tag = 'input window, operand 0, single buffered']
    #allocation4 [shape = 's32[2]{0}', space=sflag, size = 0x8, scoped, tag = 'scoped memory for s4_encoder_forward.1']
    #allocation5 [shape = 's32[2]{0}', space=sflag, size = 0x8, scoped, tag = 'scoped memory for s4_encoder_forward.1']
    #allocation6 [shape = 'u8[16384]{0}', space=vmem, size = 0x4000, scoped, tag = 'input window, operand 1']
    #allocation7 [shape = 's32[2]{0}', space=sflag, size = 0x8, scoped, tag = 'scoped memory for s4_encoder_forward.1']
    #allocation8 [shape = 'u8[8192]{0}', space=vmem, size = 0x2000, scoped, tag = 'input window, operand 2']
    #allocation9 [shape = 'u8[262144]{0}', space=vmem, size = 0x40000, scoped, tag = 'input window, operand 3']
    #allocation10 [shape = 's32[2]{0}', space=sflag, size = 0x8, scoped, tag = 'scoped memory for s4_encoder_forward.1']
    #allocation11 [shape = 'u8[262144]{0}', space=vmem, size = 0x40000, scoped, tag = 'input window, operand 5']
    #allocation12 [shape = 'u8[16384]{0}', space=vmem, size = 0x4000, scoped, tag = 'output window, operand 0, single buffered']
    %11 = vsyncpa [#allocation4], 0
    %12 = vsyncpa [#allocation7], 0
    %s13 = scalar_lea.sflag [#allocation7], 1
    %14 = vsyncpa %s13, 0
    %15 = vsyncpa [#allocation10], 0
    %s16 = scalar_lea.sflag [#allocation10], 1
    %17 = vsyncpa %s16, 0
    %18 = vsyncpa [#allocation5], 0
    loop: start=0, step=1, limit=4
    $region2: #{s4_encoder_forward.1} parent=1 // loop_pre_header
      _
    $region3: #{s4_encoder_forward.1} parent=1 // loop_header
      %s20 = sphi 0, %s24
      %p21 = scmp.ge.s32.totalorder %s20, 4
      %s28 = sphi 0, %s28
      %s30 = sphi 0, %s28
      %s31 = sphi 0, %s30
      %s45 = sphi 0, %s31
      %s51 = sphi 0, %s53
      %s54 = sphi 0, %s51
      %s55 = sphi 0, %s54
      %s71 = sphi 0, %s55
      %s77 = sphi 0, %s79
      %s80 = sphi 0, %s77
      %s81 = sphi 0, %s80
      %s97 = sphi 0, %s81
      %s103 = sphi 0, %s105
      %s106 = sphi 0, %s103
      %s107 = sphi 0, %s106
      %s123 = sphi 0, %s107
      %s129 = sphi 0, %s131
      %s132 = sphi 0, %s129
      %s133 = sphi 0, %s132
      %s149 = sphi 0, %s133
      %s155 = sphi 0, %s157
      %s158 = sphi 0, %s155
      %s159 = sphi 0, %s158
      %s175 = sphi 0, %s159
      %s179 = sphi 0, %s179
      %s181 = sphi 0, %s179
      %s182 = sphi 0, %s181
      %s196 = sphi 0, %s182
    $region4: #{s4_encoder_forward.1} parent=1 // loop_header_branch
      %23 = sbr.rel (%p21) target = $region8
    $region5: #{s4_encoder_forward.1} parent=1 // loop_body
      %s25 = ssub.s32 %s20, 1
      %s26 = ssub.s32 %s20, 2
      %s27 = sadd.s32 %s20, 1
      %s29 = sadd.s32 %s28, 1
      %p32 = scmp.eq.s32.totalorder %s20, 1
      %p33 = scmp.ne.s32.totalorder %s28, %s30
      %p34 = scmp.eq.s32.totalorder %s20, 0
      %p35 = por %p33, %p34
      %p36 = scmp.ne.s32.totalorder %s28, %s30
      %p37 = scmp.eq.s32.totalorder %s25, 1
      %p38 = por %p36, %p37
      %p39 = scmp.ne.s32.totalorder %s30, %s31
      %p40 = scmp.eq.s32.totalorder %s25, 0
      %p41 = por %p39, %p40
      %p42 = scmp.ne.s32.totalorder %s30, %s31
      %p43 = scmp.eq.s32.totalorder %s26, 1
      %p44 = por %p42, %p43
      %p46 = scmp.ne.s32.totalorder %s31, %s45
      %p47 = scmp.eq.s32.totalorder %s26, 0
      %p48 = por %p46, %p47
      %s49 = ssub.s32 %s20, %s27
      %p50 = scmp.eq.s32.totalorder %s49, 0
      %s52 = sadd.s32 %s51, 1
      %s53 = scalar_select %p50, %s51, %s52
      %p56 = pneg %p50
      %p57 = scmp.eq.s32.totalorder %s20, 1
      %p58 = por %p56, %p57
      %p59 = scmp.ne.s32.totalorder %s51, %s54
      %p60 = scmp.eq.s32.totalorder %s20, 0
      %p61 = por %p59, %p60
      %p62 = scmp.ne.s32.totalorder %s51, %s54
      %p63 = scmp.eq.s32.totalorder %s25, 1
      %p64 = por %p62, %p63
      %p65 = scmp.ne.s32.totalorder %s54, %s55
      %p66 = scmp.eq.s32.totalorder %s25, 0
      %p67 = por %p65, %p66
      %p68 = scmp.ne.s32.totalorder %s54, %s55
      %p69 = scmp.eq.s32.totalorder %s26, 1
      %p70 = por %p68, %p69
      %p72 = scmp.ne.s32.totalorder %s55, %s71
      %p73 = scmp.eq.s32.totalorder %s26, 0
      %p74 = por %p72, %p73
      %s75 = ssub.s32 %s20, %s27
      %p76 = scmp.eq.s32.totalorder %s75, 0
      %s78 = sadd.s32 %s77, 1
      %s79 = scalar_select %p76, %s77, %s78
      %p82 = pneg %p76
      %p83 = scmp.eq.s32.totalorder %s20, 1
      %p84 = por %p82, %p83
      %p85 = scmp.ne.s32.totalorder %s77, %s80
      %p86 = scmp.eq.s32.totalorder %s20, 0
      %p87 = por %p85, %p86
      %p88 = scmp.ne.s32.totalorder %s77, %s80
      %p89 = scmp.eq.s32.totalorder %s25, 1
      %p90 = por %p88, %p89
      %p91 = scmp.ne.s32.totalorder %s80, %s81
      %p92 = scmp.eq.s32.totalorder %s25, 0
      %p93 = por %p91, %p92
      %p94 = scmp.ne.s32.totalorder %s80, %s81
      %p95 = scmp.eq.s32.totalorder %s26, 1
      %p96 = por %p94, %p95
      %p98 = scmp.ne.s32.totalorder %s81, %s97
      %p99 = scmp.eq.s32.totalorder %s26, 0
      %p100 = por %p98, %p99
      %s101 = ssub.s32 %s20, %s27
      %p102 = scmp.eq.s32.totalorder %s101, 0
      %s104 = sadd.s32 %s103, 1
      %s105 = scalar_select %p102, %s103, %s104
      %p108 = pneg %p102
      %p109 = scmp.eq.s32.totalorder %s20, 1
      %p110 = por %p108, %p109
      %p111 = scmp.ne.s32.totalorder %s103, %s106
      %p112 = scmp.eq.s32.totalorder %s20, 0
      %p113 = por %p111, %p112
      %p114 = scmp.ne.s32.totalorder %s103, %s106
      %p115 = scmp.eq.s32.totalorder %s25, 1
      %p116 = por %p114, %p115
      %p117 = scmp.ne.s32.totalorder %s106, %s107
      %p118 = scmp.eq.s32.totalorder %s25, 0
      %p119 = por %p117, %p118
      %p120 = scmp.ne.s32.totalorder %s106, %s107
      %p121 = scmp.eq.s32.totalorder %s26, 1
      %p122 = por %p120, %p121
      %p124 = scmp.ne.s32.totalorder %s107, %s123
      %p125 = scmp.eq.s32.totalorder %s26, 0
      %p126 = por %p124, %p125
      %s127 = ssub.s32 %s20, %s27
      %p128 = scmp.eq.s32.totalorder %s127, 0
      %s130 = sadd.s32 %s129, 1
      %s131 = scalar_select %p128, %s129, %s130
      %p134 = pneg %p128
      %p135 = scmp.eq.s32.totalorder %s20, 1
      %p136 = por %p134, %p135
      %p137 = scmp.ne.s32.totalorder %s129, %s132
      %p138 = scmp.eq.s32.totalorder %s20, 0
      %p139 = por %p137, %p138
      %p140 = scmp.ne.s32.totalorder %s129, %s132
      %p141 = scmp.eq.s32.totalorder %s25, 1
      %p142 = por %p140, %p141
      %p143 = scmp.ne.s32.totalorder %s132, %s133
      %p144 = scmp.eq.s32.totalorder %s25, 0
      %p145 = por %p143, %p144
      %p146 = scmp.ne.s32.totalorder %s132, %s133
      %p147 = scmp.eq.s32.totalorder %s26, 1
      %p148 = por %p146, %p147
      %p150 = scmp.ne.s32.totalorder %s133, %s149
      %p151 = scmp.eq.s32.totalorder %s26, 0
      %p152 = por %p150, %p151
      %s153 = ssub.s32 %s20, %s27
      %p154 = scmp.eq.s32.totalorder %s153, 0
      %s156 = sadd.s32 %s155, 1
      %s157 = scalar_select %p154, %s155, %s156
      %p160 = pneg %p154
      %p161 = scmp.eq.s32.totalorder %s20, 1
      %p162 = por %p160, %p161
      %p163 = scmp.ne.s32.totalorder %s155, %s158
      %p164 = scmp.eq.s32.totalorder %s20, 0
      %p165 = por %p163, %p164
      %p166 = scmp.ne.s32.totalorder %s155, %s158
      %p167 = scmp.eq.s32.totalorder %s25, 1
      %p168 = por %p166, %p167
      %p169 = scmp.ne.s32.totalorder %s158, %s159
      %p170 = scmp.eq.s32.totalorder %s25, 0
      %p171 = por %p169, %p170
      %p172 = scmp.ne.s32.totalorder %s158, %s159
      %p173 = scmp.eq.s32.totalorder %s26, 1
      %p174 = por %p172, %p173
      %p176 = scmp.ne.s32.totalorder %s159, %s175
      %p177 = scmp.eq.s32.totalorder %s26, 0
      %p178 = por %p176, %p177
      %s180 = sadd.s32 %s179, 1
      %p183 = scmp.eq.s32.totalorder %s20, 1
      %p184 = scmp.ne.s32.totalorder %s179, %s181
      %p185 = scmp.eq.s32.totalorder %s20, 0
      %p186 = por %p184, %p185
      %p187 = scmp.ne.s32.totalorder %s179, %s181
      %p188 = scmp.eq.s32.totalorder %s25, 1
      %p189 = por %p187, %p188
      %p190 = scmp.ne.s32.totalorder %s181, %s182
      %p191 = scmp.eq.s32.totalorder %s25, 0
      %p192 = por %p190, %p191
      %p193 = scmp.ne.s32.totalorder %s181, %s182
      %p194 = scmp.eq.s32.totalorder %s26, 1
      %p195 = por %p193, %p194
      %p197 = scmp.ne.s32.totalorder %s182, %s196
      %p198 = scmp.eq.s32.totalorder %s26, 0
      %p199 = por %p197, %p198
      %p200 = scmp.le.s32.totalorder 1, %s20
      %p201 = scmp.lt.s32.totalorder %s20, 3
      %p202 = pnand %p200, %p201
      %p203 = pneg %p202
      // Predicated region
      $region9: #{s4_encoder_forward.1} parent=5 // pred_check
        _
      $region10: #{s4_encoder_forward.1} parent=5 // pred_check_branch
        %205 = sbr.rel (%p202) target = $region12
      $region11: #{s4_encoder_forward.1} parent=5 // pred_region
        %s206 = ssub.s32 %s20, 1
        // Predicated region
        $region13: #{s4_encoder_forward.1} parent=11 // pred_check
          %p207 = pneg %p41
        $region14: #{s4_encoder_forward.1} parent=11 // pred_check_branch
          %209 = sbr.rel (%p207) target = $region16
        $region15: #{s4_encoder_forward.1} parent=11 // pred_region
          %s211 = ssub.s32 512, 512
          %212 = vsyncadd [#allocation4], %s211
          %s213 = sshll.u32 [#allocation3], 4
          %s214 = int_to_ptr.vmem [resolvable:$true] %s213
          %219 = dma.hbm_to_vmem [thread:$0]  %s0, 512, %s214, [#allocation4], 128, 128, 8
        $region16: #{s4_encoder_forward.1} parent=11 // pred_fallthru
          _
      $region12: #{s4_encoder_forward.1} parent=5 // pred_fallthru
        _
      %p220 = scmp.lt.s32.totalorder %s20, 2
      // Predicated region
      $region17: #{s4_encoder_forward.1} parent=5 // pred_check
        %p221 = pneg %p220
      $region18: #{s4_encoder_forward.1} parent=5 // pred_check_branch
        %223 = sbr.rel (%p221) target = $region20
      $region19: #{s4_encoder_forward.1} parent=5 // pred_region
        // Predicated region
        $region21: #{s4_encoder_forward.1} parent=19 // pred_check
          %p224 = pneg %p61
        $region22: #{s4_encoder_forward.1} parent=19 // pred_check_branch
          %226 = sbr.rel (%p224) target = $region24
        $region23: #{s4_encoder_forward.1} parent=19 // pred_region
          %s227 = sand.u32 %s20, 1
          %s228 = scalar_lea.sflag [#allocation7], %s227
          %s229 = sand.u32 %s51, 1
          %s230 = smul.addr %s229, 16
          %s231 = scalar_lea.vmem [#allocation6], %s230
          %s233 = ssub.s32 256, 256
          %234 = vsyncadd %s228, %s233
          %s235 = smul.addr %s20, 2
          %s236 = smul.addr %s235, 128
          %s237 = scalar_lea.hbm %s1, %s236
          %s238 = sshll.u32 %s231, 4
          %s239 = int_to_ptr.vmem [resolvable:$true] %s238
          %244 = dma.hbm_to_vmem [thread:$0]  %s237, 256, %s239, %s228, 128, 128, 8
        $region24: #{s4_encoder_forward.1} parent=19 // pred_fallthru
          _
        // Predicated region
        $region25: #{s4_encoder_forward.1} parent=19 // pred_check
          %p245 = pneg %p87
        $region26: #{s4_encoder_forward.1} parent=19 // pred_check_branch
          %247 = sbr.rel (%p245) target = $region28
        $region27: #{s4_encoder_forward.1} parent=19 // pred_region
          %s248 = sand.u32 %s20, 1
          %s249 = scalar_lea.sflag [#allocation7], %s248
          %s250 = sand.u32 %s77, 1
          %s251 = smul.addr %s250, 8
          %s252 = scalar_lea.vmem [#allocation8], %s251
          %s254 = ssub.s32 128, 128
          %255 = vsyncadd %s249, %s254
          %s256 = smul.addr %s20, 128
          %s257 = scalar_lea.hbm %s2, %s256
          %s259 = sshll.u32 %s252, 4
          %s260 = int_to_ptr.vmem [resolvable:$true] %s259
          %262 = dma.hbm_to_vmem [thread:$0]  %s257, 128, %s260, %s249
        $region28: #{s4_encoder_forward.1} parent=19 // pred_fallthru
          _
        // Predicated region
        $region29: #{s4_encoder_forward.1} parent=19 // pred_check
          %p263 = pneg %p113
        $region30: #{s4_encoder_forward.1} parent=19 // pred_check_branch
          %265 = sbr.rel (%p263) target = $region32
        $region31: #{s4_encoder_forward.1} parent=19 // pred_region
          %s266 = sand.u32 %s20, 1
          %s267 = scalar_lea.sflag [#allocation10], %s266
          %s268 = sand.u32 %s103, 1
          %s269 = smul.addr %s268, 256
          %s270 = scalar_lea.vmem [#allocation9], %s269
          %s272 = ssub.s32 4096, 4096
          %273 = vsyncadd %s267, %s272
          %s274 = smul.addr %s20, 32
          %s275 = smul.addr %s274, 128
          %s276 = scalar_lea.hbm %s3, %s275
          %s277 = sshll.u32 %s270, 4
          %s278 = int_to_ptr.vmem [resolvable:$true] %s277
          %283 = dma.hbm_to_vmem [thread:$0]  %s276, 4096, %s278, %s267, 256, 256, 16
        $region32: #{s4_encoder_forward.1} parent=19 // pred_fallthru
          _
        // Predicated region
        $region33: #{s4_encoder_forward.1} parent=19 // pred_check
          %p284 = pneg %p139
        $region34: #{s4_encoder_forward.1} parent=19 // pred_check_branch
          %286 = sbr.rel (%p284) target = $region36
        $region35: #{s4_encoder_forward.1} parent=19 // pred_region
          %p287 = scmp.lt.s32.totalorder %s20, 1
          %s288 = scalar_select %p287, %s20, 1
          %s289 = smul.addr %s288, 2
          %s290 = scalar_lea.vmem %s4, %s289
        $region36: #{s4_encoder_forward.1} parent=19 // pred_fallthru
          _
        // Predicated region
        $region37: #{s4_encoder_forward.1} parent=19 // pred_check
          %p291 = pneg %p165
        $region38: #{s4_encoder_forward.1} parent=19 // pred_check_branch
          %293 = sbr.rel (%p291) target = $region40
        $region39: #{s4_encoder_forward.1} parent=19 // pred_region
          %s294 = sand.u32 %s20, 1
          %s295 = scalar_lea.sflag [#allocation10], %s294
          %s296 = sand.u32 %s155, 1
          %s297 = smul.addr %s296, 256
          %s298 = scalar_lea.vmem [#allocation11], %s297
          %s300 = ssub.s32 4096, 4096
          %301 = vsyncadd %s295, %s300
          %s302 = smul.addr %s20, 32
          %s303 = smul.addr %s302, 128
          %s304 = scalar_lea.hbm %s5, %s303
          %s305 = sshll.u32 %s298, 4
          %s306 = int_to_ptr.vmem [resolvable:$true] %s305
          %311 = dma.hbm_to_vmem [thread:$0]  %s304, 4096, %s306, %s295, 128, 128, 8
        $region40: #{s4_encoder_forward.1} parent=19 // pred_fallthru
          _
      $region20: #{s4_encoder_forward.1} parent=5 // pred_fallthru
        _
      %p312 = scmp.le.s32.totalorder 1, %s20
      %p313 = scmp.lt.s32.totalorder %s20, 3
      %p314 = pnand %p312, %p313
      %p315 = pneg %p314
      // Predicated region
      $region41: #{s4_encoder_forward.1} parent=5 // pred_check
        _
      $region42: #{s4_encoder_forward.1} parent=5 // pred_check_branch
        %317 = sbr.rel (%p314) target = $region44
      $region43: #{s4_encoder_forward.1} parent=5 // pred_region
        %s318 = ssub.s32 %s20, 1
        // Predicated region
        $region45: #{s4_encoder_forward.1} parent=43 // pred_check
          %p319 = pneg %p41
        $region46: #{s4_encoder_forward.1} parent=43 // pred_check_branch
          %321 = sbr.rel (%p319) target = $region48
        $region47: #{s4_encoder_forward.1} parent=43 // pred_region
          %322 = dma.done [#allocation4], 512
        $region48: #{s4_encoder_forward.1} parent=43 // pred_fallthru
          _
        %s323 = sand.u32 %s25, 1
        %s324 = scalar_lea.sflag [#allocation7], %s323
        %s325 = sand.u32 %s54, 1
        %s326 = smul.addr %s325, 16
        %s327 = scalar_lea.vmem [#allocation6], %s326
        // Predicated region
        $region49: #{s4_encoder_forward.1} parent=43 // pred_check
          %p328 = pneg %p67
        $region50: #{s4_encoder_forward.1} parent=43 // pred_check_branch
          %330 = sbr.rel (%p328) target = $region52
        $region51: #{s4_encoder_forward.1} parent=43 // pred_region
          %331 = dma.done %s324, 256
        $region52: #{s4_encoder_forward.1} parent=43 // pred_fallthru
          _
        %s332 = sand.u32 %s25, 1
        %s333 = scalar_lea.sflag [#allocation7], %s332
        %s334 = sand.u32 %s80, 1
        %s335 = smul.addr %s334, 8
        %s336 = scalar_lea.vmem [#allocation8], %s335
        // Predicated region
        $region53: #{s4_encoder_forward.1} parent=43 // pred_check
          %p337 = pneg %p93
        $region54: #{s4_encoder_forward.1} parent=43 // pred_check_branch
          %339 = sbr.rel (%p337) target = $region56
        $region55: #{s4_encoder_forward.1} parent=43 // pred_region
          %340 = dma.done %s333, 128
        $region56: #{s4_encoder_forward.1} parent=43 // pred_fallthru
          _
        %s341 = sand.u32 %s25, 1
        %s342 = scalar_lea.sflag [#allocation10], %s341
        %s343 = sand.u32 %s106, 1
        %s344 = smul.addr %s343, 256
        %s345 = scalar_lea.vmem [#allocation9], %s344
        // Predicated region
        $region57: #{s4_encoder_forward.1} parent=43 // pred_check
          %p346 = pneg %p119
        $region58: #{s4_encoder_forward.1} parent=43 // pred_check_branch
          %348 = sbr.rel (%p346) target = $region60
        $region59: #{s4_encoder_forward.1} parent=43 // pred_region
          %349 = dma.done %s342, 4096
        $region60: #{s4_encoder_forward.1} parent=43 // pred_fallthru
          _
        %s350 = sand.u32 %s25, 1
        %s351 = scalar_lea.sflag [#allocation10], %s350
        %s352 = sand.u32 %s158, 1
        %s353 = smul.addr %s352, 256
        %s354 = scalar_lea.vmem [#allocation11], %s353
        // Predicated region
        $region61: #{s4_encoder_forward.1} parent=43 // pred_check
          %p355 = pneg %p171
        $region62: #{s4_encoder_forward.1} parent=43 // pred_check_branch
          %357 = sbr.rel (%p355) target = $region64
        $region63: #{s4_encoder_forward.1} parent=43 // pred_region
          %358 = dma.done %s351, 4096
        $region64: #{s4_encoder_forward.1} parent=43 // pred_fallthru
          _
        %p359 = pneg %p41
        %p360 = pneg %p38
        %s361 = sand.u32 %s25, 1
        %s362 = scalar_lea.sflag [#allocation7], %s361
        %s363 = sand.u32 %s54, 1
        %s364 = smul.addr %s363, 16
        %s365 = scalar_lea.vmem [#allocation6], %s364
        %p366 = pneg %p67
        %p367 = pneg %p64
        %s368 = sand.u32 %s25, 1
        %s369 = scalar_lea.sflag [#allocation7], %s368
        %s370 = sand.u32 %s80, 1
        %s371 = smul.addr %s370, 8
        %s372 = scalar_lea.vmem [#allocation8], %s371
        %p373 = pneg %p93
        %p374 = pneg %p90
        %s375 = sand.u32 %s25, 1
        %s376 = scalar_lea.sflag [#allocation10], %s375
        %s377 = sand.u32 %s106, 1
        %s378 = smul.addr %s377, 256
        %s379 = scalar_lea.vmem [#allocation9], %s378
        %p380 = pneg %p119
        %p381 = pneg %p116
        %p382 = scmp.lt.s32.totalorder %s25, 1
        %s383 = scalar_select %p382, %s25, 1
        %s384 = smul.addr %s383, 2
        %s385 = scalar_lea.vmem %s4, %s384
        %p386 = pneg %p145
        %p387 = pneg %p142
        %s388 = sand.u32 %s25, 1
        %s389 = scalar_lea.sflag [#allocation10], %s388
        %s390 = sand.u32 %s158, 1
        %s391 = smul.addr %s390, 256
        %s392 = scalar_lea.vmem [#allocation11], %s391
        %p393 = pneg %p171
        %p394 = pneg %p168
        %p395 = pneg %p192
        %p396 = pneg %p189
        %p397 = scmp.lt.s32.totalorder %s25, 1
        %s398 = scalar_select %p397, %s25, 1
        %s399 = smul.addr %s398, 2
        %s400 = scalar_lea.vmem %s4, %s399
        %p401 = scmp.eq.s32.totalorder %s25, 0
        // Predicated region
        $region65: #{s4_encoder_forward.1} parent=43 // pred_check
          %p402 = pneg %p401
        $region66: #{s4_encoder_forward.1} parent=43 // pred_check_branch
          %404 = sbr.rel (%p402) target = $region68
        $region67: #{s4_encoder_forward.1} parent=43 // pred_region
          %405 = vst [vmem:[#allocation2] sm:$0xff] 0.0
          %406 = vst [vmem:[#allocation2 + $0x8] sm:$0xff] 0.0
          %407 = vst [vmem:[#allocation2 + $0x10] sm:$0xff] 0.0
          %408 = vst [vmem:[#allocation2 + $0x18] sm:$0xff] 0.0
          %409 = vst [vmem:[#allocation2 + $0x20] sm:$0xff] 0.0
          %410 = vst [vmem:[#allocation2 + $0x28] sm:$0xff] 0.0
          %411 = vst [vmem:[#allocation2 + $0x30] sm:$0xff] 0.0
          %412 = vst [vmem:[#allocation2 + $0x38] sm:$0xff] 0.0
          %v413 = vld [vmem:[#allocation3] sm:$0xff]
          %v414 = vld [vmem:[#allocation3 + $0x8] sm:$0xff]
          %v415 = vld [vmem:[#allocation3 + $0x10] sm:$0xff]
          %v416 = vld [vmem:[#allocation3 + $0x18] sm:$0xff]
          %417 = vst [vmem:[#allocation2] sm:$0xff] %v413
          %418 = vst [vmem:[#allocation2 + $0x8] sm:$0xff] %v414
          %419 = vst [vmem:[#allocation2 + $0x10] sm:$0xff] %v415
          %420 = vst [vmem:[#allocation2 + $0x18] sm:$0xff] %v416
        $region68: #{s4_encoder_forward.1} parent=43 // pred_fallthru
          _
        %v421 = vld [vmem:[#allocation2] sm:$0xff]
        %v422 = vld [vmem:[#allocation2 + $0x8] sm:$0xff]
        %v423 = vld [vmem:[#allocation2 + $0x10] sm:$0xff]
        %v424 = vld [vmem:[#allocation2 + $0x18] sm:$0xff]
        %v425 = vld [vmem:[#allocation2] sm:$0xff]
        %v426 = vld [vmem:[#allocation2 + $0x8] sm:$0xff]
        %v427 = vld [vmem:[#allocation2 + $0x10] sm:$0xff]
        %v428 = vld [vmem:[#allocation2 + $0x18] sm:$0xff]
        %v429 = vld [vmem:[#allocation2 + $0x20] sm:$0xff]
        %v430 = vld [vmem:[#allocation2 + $0x28] sm:$0xff]
        %v431 = vld [vmem:[#allocation2 + $0x30] sm:$0xff]
        %v432 = vld [vmem:[#allocation2 + $0x38] sm:$0xff]
        %v433 = vld [vmem:[%s327] sm:$0xff]
        %v434 = vld [vmem:[%s327 + $0x8] sm:$0xff]
        %v435 = vlaneseq
        %v436 = vshrl.u32 %v435, 7
        %v437 = vsub.s32 0, %v436
        %v438 = vrot.slane %v433, %v437
        %v439 = vmul.f32 %v421, %v438
        %v440 = vmul.f32 %v422, %v438
        %v441 = vmul.f32 %v423, %v438
        %v442 = vmul.f32 %v424, %v438
        %v443 = vrot.slane %v425, 6
        %v444 = vrot.slane %v426, 6
        %v445 = vrot.slane %v427, 6
        %v446 = vrot.slane %v428, 6
        %v447 = vrot.slane %v432, 6
        %v448 = vlaneseq
        %v449 = vshrl.u32 %v448, 7
        %vm450 = vcmp.lt.s32.totalorder %v449, 2
        %v451 = vsel %vm450, %v445, %v446
        %v452 = vsel %vm450, %v444, %v445
        %v453 = vsel %vm450, %v443, %v444
        %v454 = vsel %vm450, %v447, %v443
        %v455 = vlaneseq
        %v456 = vshrl.u32 %v455, 7
        %v457 = vsub.s32 1, %v456
        %v458 = vrot.slane %v433, %v457
        %v459 = vmul.f32 %v454, %v458
        %v460 = vmul.f32 %v453, %v458
        %v461 = vmul.f32 %v452, %v458
        %v462 = vmul.f32 %v451, %v458
        %v463 = vadd.f32 %v439, %v459
        %v464 = vadd.f32 %v440, %v460
        %v465 = vadd.f32 %v441, %v461
        %v466 = vadd.f32 %v442, %v462
        %v467 = vrot.slane %v425, 4
        %v468 = vrot.slane %v426, 4
        %v469 = vrot.slane %v427, 4
        %v470 = vrot.slane %v428, 4
        %v471 = vrot.slane %v432, 4
        %vm472 = vcmp.lt.s32.totalorder %v449, 4
        %v473 = vsel %vm472, %v469, %v470
        %v474 = vsel %vm472, %v468, %v469
        %v475 = vsel %vm472, %v467, %v468
        %v476 = vsel %vm472, %v471, %v467
        %v477 = vlaneseq
        %v478 = vshrl.u32 %v477, 7
        %v479 = vsub.s32 2, %v478
        %v480 = vrot.slane %v433, %v479
        %v481 = vmul.f32 %v476, %v480
        %v482 = vmul.f32 %v475, %v480
        %v483 = vmul.f32 %v474, %v480
        %v484 = vmul.f32 %v473, %v480
        %v485 = vadd.f32 %v463, %v481
        %v486 = vadd.f32 %v464, %v482
        %v487 = vadd.f32 %v465, %v483
        %v488 = vadd.f32 %v466, %v484
        %v489 = vrot.slane %v425, 2
        %v490 = vrot.slane %v426, 2
        %v491 = vrot.slane %v427, 2
        %v492 = vrot.slane %v428, 2
        %v493 = vrot.slane %v432, 2
        %vm494 = vcmp.lt.s32.totalorder %v449, 6
        %v495 = vsel %vm494, %v491, %v492
        %v496 = vsel %vm494, %v490, %v491
        %v497 = vsel %vm494, %v489, %v490
        %v498 = vsel %vm494, %v493, %v489
        %v499 = vlaneseq
        %v500 = vshrl.u32 %v499, 7
        %v501 = vsub.s32 3, %v500
        %v502 = vrot.slane %v433, %v501
        %v503 = vmul.f32 %v498, %v502
        %v504 = vmul.f32 %v497, %v502
        %v505 = vmul.f32 %v496, %v502
        %v506 = vmul.f32 %v495, %v502
        %v507 = vadd.f32 %v485, %v503
        %v508 = vadd.f32 %v486, %v504
        %v509 = vadd.f32 %v487, %v505
        %v510 = vadd.f32 %v488, %v506
        %v511 = vlaneseq
        %v512 = vshrl.u32 %v511, 7
        %v513 = vsub.s32 4, %v512
        %v514 = vrot.slane %v433, %v513
        %v515 = vmul.f32 %v432, %v514
        %v516 = vmul.f32 %v425, %v514
        %v517 = vmul.f32 %v426, %v514
        %v518 = vmul.f32 %v427, %v514
        %v519 = vadd.f32 %v507, %v515
        %v520 = vadd.f32 %v508, %v516
        %v521 = vadd.f32 %v509, %v517
        %v522 = vadd.f32 %v510, %v518
        %v523 = vrot.slane %v431, 6
        %v524 = vsel %vm450, %v523, %v447
        %v525 = vlaneseq
        %v526 = vshrl.u32 %v525, 7
        %v527 = vsub.s32 5, %v526
        %v528 = vrot.slane %v433, %v527
        %v529 = vmul.f32 %v524, %v528
        %v530 = vmul.f32 %v454, %v528
        %v531 = vmul.f32 %v453, %v528
        %v532 = vmul.f32 %v452, %v528
        %v533 = vadd.f32 %v519, %v529
        %v534 = vadd.f32 %v520, %v530
        %v535 = vadd.f32 %v521, %v531
        %v536 = vadd.f32 %v522, %v532
        %v537 = vrot.slane %v431, 4
        %v538 = vsel %vm472, %v537, %v471
        %v539 = vlaneseq
        %v540 = vshrl.u32 %v539, 7
        %v541 = vsub.s32 6, %v540
        %v542 = vrot.slane %v433, %v541
        %v543 = vmul.f32 %v538, %v542
        %v544 = vmul.f32 %v476, %v542
        %v545 = vmul.f32 %v475, %v542
        %v546 = vmul.f32 %v474, %v542
        %v547 = vadd.f32 %v533, %v543
        %v548 = vadd.f32 %v534, %v544
        %v549 = vadd.f32 %v535, %v545
        %v550 = vadd.f32 %v536, %v546
        %v551 = vrot.slane %v431, 2
        %v552 = vsel %vm494, %v551, %v493
        %v553 = vlaneseq
        %v554 = vshrl.u32 %v553, 7
        %v555 = vsub.s32 7, %v554
        %v556 = vrot.slane %v433, %v555
        %v557 = vmul.f32 %v552, %v556
        %v558 = vmul.f32 %v498, %v556
        %v559 = vmul.f32 %v497, %v556
        %v560 = vmul.f32 %v496, %v556
        %v561 = vadd.f32 %v547, %v557
        %v562 = vadd.f32 %v548, %v558
        %v563 = vadd.f32 %v549, %v559
        %v564 = vadd.f32 %v550, %v560
        %v565 = vlaneseq
        %v566 = vshrl.u32 %v565, 7
        %v567 = vsub.s32 0, %v566
        %v568 = vrot.slane %v434, %v567
        %v569 = vmul.f32 %v431, %v568
        %v570 = vmul.f32 %v432, %v568
        %v571 = vmul.f32 %v425, %v568
        %v572 = vmul.f32 %v426, %v568
        %v573 = vadd.f32 %v561, %v569
        %v574 = vadd.f32 %v562, %v570
        %v575 = vadd.f32 %v563, %v571
        %v576 = vadd.f32 %v564, %v572
        %v577 = vrot.slane %v430, 6
        %v578 = vsel %vm450, %v577, %v523
        %v579 = vlaneseq
        %v580 = vshrl.u32 %v579, 7
        %v581 = vsub.s32 1, %v580
        %v582 = vrot.slane %v434, %v581
        %v583 = vmul.f32 %v578, %v582
        %v584 = vmul.f32 %v524, %v582
        %v585 = vmul.f32 %v454, %v582
        %v586 = vmul.f32 %v453, %v582
        %v587 = vadd.f32 %v573, %v583
        %v588 = vadd.f32 %v574, %v584
        %v589 = vadd.f32 %v575, %v585
        %v590 = vadd.f32 %v576, %v586
        %v591 = vrot.slane %v430, 4
        %v592 = vsel %vm472, %v591, %v537
        %v593 = vlaneseq
        %v594 = vshrl.u32 %v593, 7
        %v595 = vsub.s32 2, %v594
        %v596 = vrot.slane %v434, %v595
        %v597 = vmul.f32 %v592, %v596
        %v598 = vmul.f32 %v538, %v596
        %v599 = vmul.f32 %v476, %v596
        %v600 = vmul.f32 %v475, %v596
        %v601 = vadd.f32 %v587, %v597
        %v602 = vadd.f32 %v588, %v598
        %v603 = vadd.f32 %v589, %v599
        %v604 = vadd.f32 %v590, %v600
        %v605 = vrot.slane %v430, 2
        %v606 = vsel %vm494, %v605, %v551
        %v607 = vlaneseq
        %v608 = vshrl.u32 %v607, 7
        %v609 = vsub.s32 3, %v608
        %v610 = vrot.slane %v434, %v609
        %v611 = vmul.f32 %v606, %v610
        %v612 = vmul.f32 %v552, %v610
        %v613 = vmul.f32 %v498, %v610
        %v614 = vmul.f32 %v497, %v610
        %v615 = vadd.f32 %v601, %v611
        %v616 = vadd.f32 %v602, %v612
        %v617 = vadd.f32 %v603, %v613
        %v618 = vadd.f32 %v604, %v614
        %v619 = vlaneseq
        %v620 = vshrl.u32 %v619, 7
        %v621 = vsub.s32 4, %v620
        %v622 = vrot.slane %v434, %v621
        %v623 = vmul.f32 %v430, %v622
        %v624 = vmul.f32 %v431, %v622
        %v625 = vmul.f32 %v432, %v622
        %v626 = vmul.f32 %v425, %v622
        %v627 = vadd.f32 %v615, %v623
        %v628 = vadd.f32 %v616, %v624
        %v629 = vadd.f32 %v617, %v625
        %v630 = vadd.f32 %v618, %v626
        %v631 = vrot.slane %v429, 6
        %v632 = vsel %vm450, %v631, %v577
        %v633 = vlaneseq
        %v634 = vshrl.u32 %v633, 7
        %v635 = vsub.s32 5, %v634
        %v636 = vrot.slane %v434, %v635
        %v637 = vmul.f32 %v632, %v636
        %v638 = vmul.f32 %v578, %v636
        %v639 = vmul.f32 %v524, %v636
        %v640 = vmul.f32 %v454, %v636
        %v641 = vadd.f32 %v627, %v637
        %v642 = vadd.f32 %v628, %v638
        %v643 = vadd.f32 %v629, %v639
        %v644 = vadd.f32 %v630, %v640
        %v645 = vrot.slane %v429, 4
        %v646 = vsel %vm472, %v645, %v591
        %v647 = vlaneseq
        %v648 = vshrl.u32 %v647, 7
        %v649 = vsub.s32 6, %v648
        %v650 = vrot.slane %v434, %v649
        %v651 = vmul.f32 %v646, %v650
        %v652 = vmul.f32 %v592, %v650
        %v653 = vmul.f32 %v538, %v650
        %v654 = vmul.f32 %v476, %v650
        %v655 = vadd.f32 %v641, %v651
        %v656 = vadd.f32 %v642, %v652
        %v657 = vadd.f32 %v643, %v653
        %v658 = vadd.f32 %v644, %v654
        %v659 = vrot.slane %v429, 2
        %v660 = vsel %vm494, %v659, %v605
        %v661 = vlaneseq
        %v662 = vshrl.u32 %v661, 7
        %v663 = vsub.s32 7, %v662
        %v664 = vrot.slane %v434, %v663
        %v665 = vmul.f32 %v660, %v664
        %v666 = vmul.f32 %v606, %v664
        %v667 = vmul.f32 %v552, %v664
        %v668 = vmul.f32 %v498, %v664
        %v669 = vadd.f32 %v655, %v665
        %v670 = vadd.f32 %v656, %v666
        %v671 = vadd.f32 %v657, %v667
        %v672 = vadd.f32 %v658, %v668
        %v673 = vadd.f32 %v421, %v669
        %v674 = vadd.f32 %v422, %v670
        %v675 = vadd.f32 %v423, %v671
        %v676 = vadd.f32 %v424, %v672
        %v677 = vld [vmem:[%s336] sm:$0x1]
        %v678 = vld [vmem:[%s336 + $0x1] sm:$0x1]
        %679 = vadd.xlane.f32.xlu0 %v673
        %v680 = vpop.xlane.xlu0 %679
        %681 = vadd.xlane.f32.xlu0 %v674
        %v682 = vpop.xlane.xlu0 %681
        %683 = vadd.xlane.f32.xlu0 %v675
        %v684 = vpop.xlane.xlu0 %683
        %685 = vadd.xlane.f32.xlu0 %v676
        %v686 = vpop.xlane.xlu0 %685
        %v687 = vrcp.pop 128.0
        %v688 = vmul.f32 %v680, %v687
        %v689 = vmul.f32 %v682, %v687
        %v690 = vmul.f32 %v684, %v687
        %v691 = vmul.f32 %v686, %v687
        %v692 = vsub.f32 %v673, %v688
        %v693 = vsub.f32 %v674, %v689
        %v694 = vsub.f32 %v675, %v690
        %v695 = vsub.f32 %v676, %v691
        %v696 = vmul.f32 %v692, %v692
        %v697 = vmul.f32 %v693, %v693
        %v698 = vmul.f32 %v694, %v694
        %v699 = vmul.f32 %v695, %v695
        %700 = vadd.xlane.f32.xlu0 %v696
        %v701 = vpop.xlane.xlu0 %700
        %702 = vadd.xlane.f32.xlu0 %v697
        %v703 = vpop.xlane.xlu0 %702
        %704 = vadd.xlane.f32.xlu0 %v698
        %v705 = vpop.xlane.xlu0 %704
        %706 = vadd.xlane.f32.xlu0 %v699
        %v707 = vpop.xlane.xlu0 %706
        %v708 = vmul.f32 %v701, %v687
        %v709 = vmul.f32 %v703, %v687
        %v710 = vmul.f32 %v705, %v687
        %v711 = vmul.f32 %v707, %v687
        %v712 = vadd.f32 %v708, 1e-05
        %v713 = vadd.f32 %v709, 1e-05
        %v714 = vadd.f32 %v710, 1e-05
        %v715 = vadd.f32 %v711, 1e-05
        %v716 = vrsqrt.pop %v712
        %v717 = vrsqrt.pop %v713
        %v718 = vrsqrt.pop %v714
        %v719 = vrsqrt.pop %v715
        %v720 = vmul.f32 %v692, %v716
        %v721 = vmul.f32 %v693, %v717
        %v722 = vmul.f32 %v694, %v718
        %v723 = vmul.f32 %v695, %v719
        %v724 = vlaneseq
        %v725 = vshrl.u32 %v724, 7
        %v726 = vsub.s32 0, %v725
        %v727 = vrot.slane %v677, %v726
        %v728 = vmul.f32 %v720, %v727
        %v729 = vmul.f32 %v721, %v727
        %v730 = vmul.f32 %v722, %v727
        %v731 = vmul.f32 %v723, %v727
        %v732 = vlaneseq
        %v733 = vshrl.u32 %v732, 7
        %v734 = vsub.s32 0, %v733
        %v735 = vrot.slane %v678, %v734
        %v736 = vadd.f32 %v728, %v735
        %v737 = vadd.f32 %v729, %v735
        %v738 = vadd.f32 %v730, %v735
        %v739 = vadd.f32 %v731, %v735
        %v740 = vld [vmem:[%s345] sm:$0xff]
        %v741 = vld [vmem:[%s345 + $0x8] sm:$0xff]
        %v742 = vld [vmem:[%s345 + $0x10] sm:$0xff]
        %v743 = vld [vmem:[%s345 + $0x18] sm:$0xff]
        %v744 = vld [vmem:[%s345 + $0x20] sm:$0xff]
        %v745 = vld [vmem:[%s345 + $0x28] sm:$0xff]
        %v746 = vld [vmem:[%s345 + $0x30] sm:$0xff]
        %v747 = vld [vmem:[%s345 + $0x38] sm:$0xff]
        %v748 = vld [vmem:[%s345 + $0x40] sm:$0xff]
        %v749 = vld [vmem:[%s345 + $0x48] sm:$0xff]
        %v750 = vld [vmem:[%s345 + $0x50] sm:$0xff]
        %v751 = vld [vmem:[%s345 + $0x58] sm:$0xff]
        %v752 = vld [vmem:[%s345 + $0x60] sm:$0xff]
        %v753 = vld [vmem:[%s345 + $0x68] sm:$0xff]
        %v754 = vld [vmem:[%s345 + $0x70] sm:$0xff]
        %v755 = vld [vmem:[%s345 + $0x78] sm:$0xff]
        %v756 = vld [vmem:[%s345 + $0x80] sm:$0xff]
        %v757 = vld [vmem:[%s345 + $0x88] sm:$0xff]
        %v758 = vld [vmem:[%s345 + $0x90] sm:$0xff]
        %v759 = vld [vmem:[%s345 + $0x98] sm:$0xff]
        %v760 = vld [vmem:[%s345 + $0xa0] sm:$0xff]
        %v761 = vld [vmem:[%s345 + $0xa8] sm:$0xff]
        %v762 = vld [vmem:[%s345 + $0xb0] sm:$0xff]
        %v763 = vld [vmem:[%s345 + $0xb8] sm:$0xff]
        %v764 = vld [vmem:[%s345 + $0xc0] sm:$0xff]
        %v765 = vld [vmem:[%s345 + $0xc8] sm:$0xff]
        %v766 = vld [vmem:[%s345 + $0xd0] sm:$0xff]
        %v767 = vld [vmem:[%s345 + $0xd8] sm:$0xff]
        %v768 = vld [vmem:[%s345 + $0xe0] sm:$0xff]
        %v769 = vld [vmem:[%s345 + $0xe8] sm:$0xff]
        %v770 = vld [vmem:[%s345 + $0xf0] sm:$0xff]
        %v771 = vld [vmem:[%s345 + $0xf8] sm:$0xff]
        %v772 = vld [vmem:[%s400] sm:$0x3]
        %v774 = vlaneseq
        %v775 = vshrl.u32 %v774, 7
        %v776 = vsub.s32 0, %v775
        %v777 = vrot.slane %v772, %v776
        %v778 = vlaneseq
        %v779 = vshrl.u32 %v778, 7
        %v780 = vsub.s32 1, %v779
        %v781 = vrot.slane %v772, %v780
        %v784 = vand.u32 %v771, 4294901760
        %785 = vmatprep.subr.mxu0 %v784
        %v786 = vand.u32 %v770, 4294901760
        %787 = vmatpush1.msra.mxu0 %v786
        %v788 = vand.u32 %v769, 4294901760
        %789 = vmatprep.subr.mxu0 %v788
        %v790 = vand.u32 %v768, 4294901760
        %791 = vmatpush1.msra.mxu0 %v790
        %v792 = vand.u32 %v767, 4294901760
        %793 = vmatprep.subr.mxu0 %v792
        %v794 = vand.u32 %v766, 4294901760
        %795 = vmatpush1.msra.mxu0 %v794
        %v796 = vand.u32 %v765, 4294901760
        %797 = vmatprep.subr.mxu0 %v796
        %v798 = vand.u32 %v764, 4294901760
        %799 = vmatpush1.msra.mxu0 %v798
        %v800 = vand.u32 %v763, 4294901760
        %801 = vmatprep.subr.mxu0 %v800
        %v802 = vand.u32 %v762, 4294901760
        %803 = vmatpush1.msra.mxu0 %v802
        %v804 = vand.u32 %v761, 4294901760
        %805 = vmatprep.subr.mxu0 %v804
        %v806 = vand.u32 %v760, 4294901760
        %807 = vmatpush1.msra.mxu0 %v806
        %v808 = vand.u32 %v759, 4294901760
        %809 = vmatprep.subr.mxu0 %v808
        %v810 = vand.u32 %v758, 4294901760
        %811 = vmatpush1.msra.mxu0 %v810
        %v812 = vand.u32 %v757, 4294901760
        %813 = vmatprep.subr.mxu0 %v812
        %v814 = vand.u32 %v756, 4294901760
        %815 = vmatpush1.msra.mxu0 %v814
        %v816 = vand.u32 %v755, 4294901760
        %817 = vmatprep.subr.mxu0 %v816
        %v818 = vand.u32 %v754, 4294901760
        %819 = vmatpush1.msra.mxu0 %v818
        %v820 = vand.u32 %v753, 4294901760
        %821 = vmatprep.subr.mxu0 %v820
        %v822 = vand.u32 %v752, 4294901760
        %823 = vmatpush1.msra.mxu0 %v822
        %v824 = vand.u32 %v751, 4294901760
        %825 = vmatprep.subr.mxu0 %v824
        %v826 = vand.u32 %v750, 4294901760
        %827 = vmatpush1.msra.mxu0 %v826
        %v828 = vand.u32 %v749, 4294901760
        %829 = vmatprep.subr.mxu0 %v828
        %v830 = vand.u32 %v748, 4294901760
        %831 = vmatpush1.msra.mxu0 %v830
        %v832 = vand.u32 %v747, 4294901760
        %833 = vmatprep.subr.mxu0 %v832
        %v834 = vand.u32 %v746, 4294901760
        %835 = vmatpush1.msra.mxu0 %v834
        %v836 = vand.u32 %v745, 4294901760
        %837 = vmatprep.subr.mxu0 %v836
        %v838 = vand.u32 %v744, 4294901760
        %839 = vmatpush1.msra.mxu0 %v838
        %v840 = vand.u32 %v743, 4294901760
        %841 = vmatprep.subr.mxu0 %v840
        %v842 = vand.u32 %v742, 4294901760
        %843 = vmatpush1.msra.mxu0 %v842
        %v844 = vand.u32 %v741, 4294901760
        %845 = vmatprep.subr.mxu0 %v844
        %v846 = vand.u32 %v740, 4294901760
        %847 = vmatpush1.msra.mxu0 %v846
        %848 = vmatprep.subr.mxu0 0.0
        %849 = vmatpush2.msra.mxu0 0.0
        %850 = vmatprep.subr.mxu0 0.0
        %851 = vmatpush2.msra.mxu0 0.0
        %852 = vmatprep.subr.mxu0 0.0
        %853 = vmatpush2.msra.mxu0 0.0
        %854 = vmatprep.subr.mxu0 0.0
        %855 = vmatpush2.msra.mxu0 0.0
        %856 = vmatprep.subr.mxu0 0.0
        %857 = vmatpush2.msra.mxu0 0.0
        %858 = vmatprep.subr.mxu0 0.0
        %859 = vmatpush2.msra.mxu0 0.0
        %860 = vmatprep.subr.mxu0 0.0
        %861 = vmatpush2.msra.mxu0 0.0
        %862 = vmatprep.subr.mxu0 0.0
        %863 = vmatpush2.msra.mxu0 0.0
        %864 = vmatprep.subr.mxu0 0.0
        %865 = vmatpush2.msra.mxu0 0.0
        %866 = vmatprep.subr.mxu0 0.0
        %867 = vmatpush2.msra.mxu0 0.0
        %868 = vmatprep.subr.mxu0 0.0
        %869 = vmatpush2.msra.mxu0 0.0
        %870 = vmatprep.subr.mxu0 0.0
        %871 = vmatpush2.msra.mxu0 0.0
        %872 = vmatprep.subr.mxu0 0.0
        %873 = vmatpush2.msra.mxu0 0.0
        %874 = vmatprep.subr.mxu0 0.0
        %875 = vmatpush2.msra.mxu0 0.0
        %876 = vmatprep.subr.mxu0 0.0
        %877 = vmatpush2.msra.mxu0 0.0
        %878 = vmatprep.subr.mxu0 0.0
        %879 = vmatpush2.msra.mxu0 0.0
        %880 = vmatprep.mubr.f32.mxu0 0.0
        %v881 = vand.u32 %v736, 4294901760
        %v882 = vsub.f32 %v736, %v881
        %v883 = vand.u32 %v882, 4294901760
        %v884 = vsub.f32 %v882, %v883
        %v885 = vand.u32 %v884, 4294901760
        %886 = vmatmul.mubr.f32.gmra.mxu0 %v885
        %v887 = vpop.f32.mrf.mxu0
        %v888 = vadd.f32 %v777, %v887
        %v889 = vpop.f32.mrf.mxu0
        %v890 = vadd.f32 %v781, %v889
        %891 = vmatprep.mubr.f32.mxu0 0.0
        %v892 = vand.u32 %v737, 4294901760
        %v893 = vsub.f32 %v737, %v892
        %v894 = vand.u32 %v893, 4294901760
        %v895 = vsub.f32 %v893, %v894
        %v896 = vand.u32 %v895, 4294901760
        %897 = vmatmul.mubr.f32.gmra.mxu0 %v896
        %v898 = vpop.f32.mrf.mxu0
        %v899 = vadd.f32 %v777, %v898
        %v900 = vpop.f32.mrf.mxu0
        %v901 = vadd.f32 %v781, %v900
        %902 = vmatprep.mubr.f32.mxu0 0.0
        %v903 = vand.u32 %v738, 4294901760
        %v904 = vsub.f32 %v738, %v903
        %v905 = vand.u32 %v904, 4294901760
        %v906 = vsub.f32 %v904, %v905
        %v907 = vand.u32 %v906, 4294901760
        %908 = vmatmul.mubr.f32.gmra.mxu0 %v907
        %v909 = vpop.f32.mrf.mxu0
        %v910 = vadd.f32 %v777, %v909
        %v911 = vpop.f32.mrf.mxu0
        %v912 = vadd.f32 %v781, %v911
        %913 = vmatprep.mubr.f32.mxu0 0.0
        %v914 = vand.u32 %v739, 4294901760
        %v915 = vsub.f32 %v739, %v914
        %v916 = vand.u32 %v915, 4294901760
        %v917 = vsub.f32 %v915, %v916
        %v918 = vand.u32 %v917, 4294901760
        %919 = vmatmul.mubr.f32.gmra.mxu0 %v918
        %v920 = vpop.f32.mrf.mxu0
        %v921 = vadd.f32 %v777, %v920
        %v922 = vpop.f32.mrf.mxu0
        %v923 = vadd.f32 %v781, %v922
        %924 = vdwg.mxu0
        %v925 = vand.u32 %v771, 4294901760
        %v926 = vsub.f32 %v771, %v925
        %v927 = vand.u32 %v926, 4294901760
        %v928 = vsub.f32 %v926, %v927
        %v929 = vand.u32 %v928, 4294901760
        %930 = vmatprep.subr.mxu0 %v929
        %v931 = vand.u32 %v770, 4294901760
        %v932 = vsub.f32 %v770, %v931
        %v933 = vand.u32 %v932, 4294901760
        %v934 = vsub.f32 %v932, %v933
        %v935 = vand.u32 %v934, 4294901760
        %936 = vmatpush1.msra.mxu0 %v935
        %v937 = vand.u32 %v769, 4294901760
        %v938 = vsub.f32 %v769, %v937
        %v939 = vand.u32 %v938, 4294901760
        %v940 = vsub.f32 %v938, %v939
        %v941 = vand.u32 %v940, 4294901760
        %942 = vmatprep.subr.mxu0 %v941
        %v943 = vand.u32 %v768, 4294901760
        %v944 = vsub.f32 %v768, %v943
        %v945 = vand.u32 %v944, 4294901760
        %v946 = vsub.f32 %v944, %v945
        %v947 = vand.u32 %v946, 4294901760
        %948 = vmatpush1.msra.mxu0 %v947
        %v949 = vand.u32 %v767, 4294901760
        %v950 = vsub.f32 %v767, %v949
        %v951 = vand.u32 %v950, 4294901760
        %v952 = vsub.f32 %v950, %v951
        %v953 = vand.u32 %v952, 4294901760
        %954 = vmatprep.subr.mxu0 %v953
        %v955 = vand.u32 %v766, 4294901760
        %v956 = vsub.f32 %v766, %v955
        %v957 = vand.u32 %v956, 4294901760
        %v958 = vsub.f32 %v956, %v957
        %v959 = vand.u32 %v958, 4294901760
        %960 = vmatpush1.msra.mxu0 %v959
        %v961 = vand.u32 %v765, 4294901760
        %v962 = vsub.f32 %v765, %v961
        %v963 = vand.u32 %v962, 4294901760
        %v964 = vsub.f32 %v962, %v963
        %v965 = vand.u32 %v964, 4294901760
        %966 = vmatprep.subr.mxu0 %v965
        %v967 = vand.u32 %v764, 4294901760
        %v968 = vsub.f32 %v764, %v967
        %v969 = vand.u32 %v968, 4294901760
        %v970 = vsub.f32 %v968, %v969
        %v971 = vand.u32 %v970, 4294901760
        %972 = vmatpush1.msra.mxu0 %v971
        %v973 = vand.u32 %v763, 4294901760
        %v974 = vsub.f32 %v763, %v973
        %v975 = vand.u32 %v974, 4294901760
        %v976 = vsub.f32 %v974, %v975
        %v977 = vand.u32 %v976, 4294901760
        %978 = vmatprep.subr.mxu0 %v977
        %v979 = vand.u32 %v762, 4294901760
        %v980 = vsub.f32 %v762, %v979
        %v981 = vand.u32 %v980, 4294901760
        %v982 = vsub.f32 %v980, %v981
        %v983 = vand.u32 %v982, 4294901760
        %984 = vmatpush1.msra.mxu0 %v983
        %v985 = vand.u32 %v761, 4294901760
        %v986 = vsub.f32 %v761, %v985
        %v987 = vand.u32 %v986, 4294901760
        %v988 = vsub.f32 %v986, %v987
        %v989 = vand.u32 %v988, 4294901760
        %990 = vmatprep.subr.mxu0 %v989
        %v991 = vand.u32 %v760, 4294901760
        %v992 = vsub.f32 %v760, %v991
        %v993 = vand.u32 %v992, 4294901760
        %v994 = vsub.f32 %v992, %v993
        %v995 = vand.u32 %v994, 4294901760
        %996 = vmatpush1.msra.mxu0 %v995
        %v997 = vand.u32 %v759, 4294901760
        %v998 = vsub.f32 %v759, %v997
        %v999 = vand.u32 %v998, 4294901760
        %v1000 = vsub.f32 %v998, %v999
        %v1001 = vand.u32 %v1000, 4294901760
        %1002 = vmatprep.subr.mxu0 %v1001
        %v1003 = vand.u32 %v758, 4294901760
        %v1004 = vsub.f32 %v758, %v1003
        %v1005 = vand.u32 %v1004, 4294901760
        %v1006 = vsub.f32 %v1004, %v1005
        %v1007 = vand.u32 %v1006, 4294901760
        %1008 = vmatpush1.msra.mxu0 %v1007
        %v1009 = vand.u32 %v757, 4294901760
        %v1010 = vsub.f32 %v757, %v1009
        %v1011 = vand.u32 %v1010, 4294901760
        %v1012 = vsub.f32 %v1010, %v1011
        %v1013 = vand.u32 %v1012, 4294901760
        %1014 = vmatprep.subr.mxu0 %v1013
        %v1015 = vand.u32 %v756, 4294901760
        %v1016 = vsub.f32 %v756, %v1015
        %v1017 = vand.u32 %v1016, 4294901760
        %v1018 = vsub.f32 %v1016, %v1017
        %v1019 = vand.u32 %v1018, 4294901760
        %1020 = vmatpush1.msra.mxu0 %v1019
        %v1021 = vand.u32 %v755, 4294901760
        %v1022 = vsub.f32 %v755, %v1021
        %v1023 = vand.u32 %v1022, 4294901760
        %v1024 = vsub.f32 %v1022, %v1023
        %v1025 = vand.u32 %v1024, 4294901760
        %1026 = vmatprep.subr.mxu0 %v1025
        %v1027 = vand.u32 %v754, 4294901760
        %v1028 = vsub.f32 %v754, %v1027
        %v1029 = vand.u32 %v1028, 4294901760
        %v1030 = vsub.f32 %v1028, %v1029
        %v1031 = vand.u32 %v1030, 4294901760
        %1032 = vmatpush1.msra.mxu0 %v1031
        %v1033 = vand.u32 %v753, 4294901760
        %v1034 = vsub.f32 %v753, %v1033
        %v1035 = vand.u32 %v1034, 4294901760
        %v1036 = vsub.f32 %v1034, %v1035
        %v1037 = vand.u32 %v1036, 4294901760
        %1038 = vmatprep.subr.mxu0 %v1037
        %v1039 = vand.u32 %v752, 4294901760
        %v1040 = vsub.f32 %v752, %v1039
        %v1041 = vand.u32 %v1040, 4294901760
        %v1042 = vsub.f32 %v1040, %v1041
        %v1043 = vand.u32 %v1042, 4294901760
        %1044 = vmatpush1.msra.mxu0 %v1043
        %v1045 = vand.u32 %v751, 4294901760
        %v1046 = vsub.f32 %v751, %v1045
        %v1047 = vand.u32 %v1046, 4294901760
        %v1048 = vsub.f32 %v1046, %v1047
        %v1049 = vand.u32 %v1048, 4294901760
        %1050 = vmatprep.subr.mxu0 %v1049
        %v1051 = vand.u32 %v750, 4294901760
        %v1052 = vsub.f32 %v750, %v1051
        %v1053 = vand.u32 %v1052, 4294901760
        %v1054 = vsub.f32 %v1052, %v1053
        %v1055 = vand.u32 %v1054, 4294901760
        %1056 = vmatpush1.msra.mxu0 %v1055
        %v1057 = vand.u32 %v749, 4294901760
        %v1058 = vsub.f32 %v749, %v1057
        %v1059 = vand.u32 %v1058, 4294901760
        %v1060 = vsub.f32 %v1058, %v1059
        %v1061 = vand.u32 %v1060, 4294901760
        %1062 = vmatprep.subr.mxu0 %v1061
        %v1063 = vand.u32 %v748, 4294901760
        %v1064 = vsub.f32 %v748, %v1063
        %v1065 = vand.u32 %v1064, 4294901760
        %v1066 = vsub.f32 %v1064, %v1065
        %v1067 = vand.u32 %v1066, 4294901760
        %1068 = vmatpush1.msra.mxu0 %v1067
        %v1069 = vand.u32 %v747, 4294901760
        %v1070 = vsub.f32 %v747, %v1069
        %v1071 = vand.u32 %v1070, 4294901760
        %v1072 = vsub.f32 %v1070, %v1071
        %v1073 = vand.u32 %v1072, 4294901760
        %1074 = vmatprep.subr.mxu0 %v1073
        %v1075 = vand.u32 %v746, 4294901760
        %v1076 = vsub.f32 %v746, %v1075
        %v1077 = vand.u32 %v1076, 4294901760
        %v1078 = vsub.f32 %v1076, %v1077
        %v1079 = vand.u32 %v1078, 4294901760
        %1080 = vmatpush1.msra.mxu0 %v1079
        %v1081 = vand.u32 %v745, 4294901760
        %v1082 = vsub.f32 %v745, %v1081
        %v1083 = vand.u32 %v1082, 4294901760
        %v1084 = vsub.f32 %v1082, %v1083
        %v1085 = vand.u32 %v1084, 4294901760
        %1086 = vmatprep.subr.mxu0 %v1085
        %v1087 = vand.u32 %v744, 4294901760
        %v1088 = vsub.f32 %v744, %v1087
        %v1089 = vand.u32 %v1088, 4294901760
        %v1090 = vsub.f32 %v1088, %v1089
        %v1091 = vand.u32 %v1090, 4294901760
        %1092 = vmatpush1.msra.mxu0 %v1091
        %v1093 = vand.u32 %v743, 4294901760
        %v1094 = vsub.f32 %v743, %v1093
        %v1095 = vand.u32 %v1094, 4294901760
        %v1096 = vsub.f32 %v1094, %v1095
        %v1097 = vand.u32 %v1096, 4294901760
        %1098 = vmatprep.subr.mxu0 %v1097
        %v1099 = vand.u32 %v742, 4294901760
        %v1100 = vsub.f32 %v742, %v1099
        %v1101 = vand.u32 %v1100, 4294901760
        %v1102 = vsub.f32 %v1100, %v1101
        %v1103 = vand.u32 %v1102, 4294901760
        %1104 = vmatpush1.msra.mxu0 %v1103
        %v1105 = vand.u32 %v741, 4294901760
        %v1106 = vsub.f32 %v741, %v1105
        %v1107 = vand.u32 %v1106, 4294901760
        %v1108 = vsub.f32 %v1106, %v1107
        %v1109 = vand.u32 %v1108, 4294901760
        %1110 = vmatprep.subr.mxu0 %v1109
        %v1111 = vand.u32 %v740, 4294901760
        %v1112 = vsub.f32 %v740, %v1111
        %v1113 = vand.u32 %v1112, 4294901760
        %v1114 = vsub.f32 %v1112, %v1113
        %v1115 = vand.u32 %v1114, 4294901760
        %1116 = vmatpush1.msra.mxu0 %v1115
        %1117 = vmatprep.subr.mxu0 0.0
        %1118 = vmatpush2.msra.mxu0 0.0
        %1119 = vmatprep.subr.mxu0 0.0
        %1120 = vmatpush2.msra.mxu0 0.0
        %1121 = vmatprep.subr.mxu0 0.0
        %1122 = vmatpush2.msra.mxu0 0.0
        %1123 = vmatprep.subr.mxu0 0.0
        %1124 = vmatpush2.msra.mxu0 0.0
        %1125 = vmatprep.subr.mxu0 0.0
        %1126 = vmatpush2.msra.mxu0 0.0
        %1127 = vmatprep.subr.mxu0 0.0
        %1128 = vmatpush2.msra.mxu0 0.0
        %1129 = vmatprep.subr.mxu0 0.0
        %1130 = vmatpush2.msra.mxu0 0.0
        %1131 = vmatprep.subr.mxu0 0.0
        %1132 = vmatpush2.msra.mxu0 0.0
        %1133 = vmatprep.subr.mxu0 0.0
        %1134 = vmatpush2.msra.mxu0 0.0
        %1135 = vmatprep.subr.mxu0 0.0
        %1136 = vmatpush2.msra.mxu0 0.0
        %1137 = vmatprep.subr.mxu0 0.0
        %1138 = vmatpush2.msra.mxu0 0.0
        %1139 = vmatprep.subr.mxu0 0.0
        %1140 = vmatpush2.msra.mxu0 0.0
        %1141 = vmatprep.subr.mxu0 0.0
        %1142 = vmatpush2.msra.mxu0 0.0
        %1143 = vmatprep.subr.mxu0 0.0
        %1144 = vmatpush2.msra.mxu0 0.0
        %1145 = vmatprep.subr.mxu0 0.0
        %1146 = vmatpush2.msra.mxu0 0.0
        %1147 = vmatprep.subr.mxu0 0.0
        %1148 = vmatpush2.msra.mxu0 0.0
        %1149 = vmatprep.mubr.f32.mxu0 0.0
        %v1150 = vand.u32 %v736, 4294901760
        %1151 = vmatmul.mubr.f32.gmra.mxu0 %v1150
        %v1152 = vpop.f32.mrf.mxu0
        %v1153 = vadd.f32 %v888, %v1152
        %v1154 = vpop.f32.mrf.mxu0
        %v1155 = vadd.f32 %v890, %v1154
        %1156 = vmatprep.mubr.f32.mxu0 0.0
        %v1157 = vand.u32 %v737, 4294901760
        %1158 = vmatmul.mubr.f32.gmra.mxu0 %v1157
        %v1159 = vpop.f32.mrf.mxu0
        %v1160 = vadd.f32 %v899, %v1159
        %v1161 = vpop.f32.mrf.mxu0
        %v1162 = vadd.f32 %v901, %v1161
        %1163 = vmatprep.mubr.f32.mxu0 0.0
        %v1164 = vand.u32 %v738, 4294901760
        %1165 = vmatmul.mubr.f32.gmra.mxu0 %v1164
        %v1166 = vpop.f32.mrf.mxu0
        %v1167 = vadd.f32 %v910, %v1166
        %v1168 = vpop.f32.mrf.mxu0
        %v1169 = vadd.f32 %v912, %v1168
        %1170 = vmatprep.mubr.f32.mxu0 0.0
        %v1171 = vand.u32 %v739, 4294901760
        %1172 = vmatmul.mubr.f32.gmra.mxu0 %v1171
        %v1173 = vpop.f32.mrf.mxu0
        %v1174 = vadd.f32 %v921, %v1173
        %v1175 = vpop.f32.mrf.mxu0
        %v1176 = vadd.f32 %v923, %v1175
        %1177 = vdwg.mxu0
        %v1178 = vand.u32 %v771, 4294901760
        %v1179 = vsub.f32 %v771, %v1178
        %1180 = vmatprep.subr.mxu0 %v1179
        %v1181 = vand.u32 %v770, 4294901760
        %v1182 = vsub.f32 %v770, %v1181
        %1183 = vmatpush1.msra.mxu0 %v1182
        %v1184 = vand.u32 %v769, 4294901760
        %v1185 = vsub.f32 %v769, %v1184
        %1186 = vmatprep.subr.mxu0 %v1185
        %v1187 = vand.u32 %v768, 4294901760
        %v1188 = vsub.f32 %v768, %v1187
        %1189 = vmatpush1.msra.mxu0 %v1188
        %v1190 = vand.u32 %v767, 4294901760
        %v1191 = vsub.f32 %v767, %v1190
        %1192 = vmatprep.subr.mxu0 %v1191
        %v1193 = vand.u32 %v766, 4294901760
        %v1194 = vsub.f32 %v766, %v1193
        %1195 = vmatpush1.msra.mxu0 %v1194
        %v1196 = vand.u32 %v765, 4294901760
        %v1197 = vsub.f32 %v765, %v1196
        %1198 = vmatprep.subr.mxu0 %v1197
        %v1199 = vand.u32 %v764, 4294901760
        %v1200 = vsub.f32 %v764, %v1199
        %1201 = vmatpush1.msra.mxu0 %v1200
        %v1202 = vand.u32 %v763, 4294901760
        %v1203 = vsub.f32 %v763, %v1202
        %1204 = vmatprep.subr.mxu0 %v1203
        %v1205 = vand.u32 %v762, 4294901760
        %v1206 = vsub.f32 %v762, %v1205
        %1207 = vmatpush1.msra.mxu0 %v1206
        %v1208 = vand.u32 %v761, 4294901760
        %v1209 = vsub.f32 %v761, %v1208
        %1210 = vmatprep.subr.mxu0 %v1209
        %v1211 = vand.u32 %v760, 4294901760
        %v1212 = vsub.f32 %v760, %v1211
        %1213 = vmatpush1.msra.mxu0 %v1212
        %v1214 = vand.u32 %v759, 4294901760
        %v1215 = vsub.f32 %v759, %v1214
        %1216 = vmatprep.subr.mxu0 %v1215
        %v1217 = vand.u32 %v758, 4294901760
        %v1218 = vsub.f32 %v758, %v1217
        %1219 = vmatpush1.msra.mxu0 %v1218
        %v1220 = vand.u32 %v757, 4294901760
        %v1221 = vsub.f32 %v757, %v1220
        %1222 = vmatprep.subr.mxu0 %v1221
        %v1223 = vand.u32 %v756, 4294901760
        %v1224 = vsub.f32 %v756, %v1223
        %1225 = vmatpush1.msra.mxu0 %v1224
        %v1226 = vand.u32 %v755, 4294901760
        %v1227 = vsub.f32 %v755, %v1226
        %1228 = vmatprep.subr.mxu0 %v1227
        %v1229 = vand.u32 %v754, 4294901760
        %v1230 = vsub.f32 %v754, %v1229
        %1231 = vmatpush1.msra.mxu0 %v1230
        %v1232 = vand.u32 %v753, 4294901760
        %v1233 = vsub.f32 %v753, %v1232
        %1234 = vmatprep.subr.mxu0 %v1233
        %v1235 = vand.u32 %v752, 4294901760
        %v1236 = vsub.f32 %v752, %v1235
        %1237 = vmatpush1.msra.mxu0 %v1236
        %v1238 = vand.u32 %v751, 4294901760
        %v1239 = vsub.f32 %v751, %v1238
        %1240 = vmatprep.subr.mxu0 %v1239
        %v1241 = vand.u32 %v750, 4294901760
        %v1242 = vsub.f32 %v750, %v1241
        %1243 = vmatpush1.msra.mxu0 %v1242
        %v1244 = vand.u32 %v749, 4294901760
        %v1245 = vsub.f32 %v749, %v1244
        %1246 = vmatprep.subr.mxu0 %v1245
        %v1247 = vand.u32 %v748, 4294901760
        %v1248 = vsub.f32 %v748, %v1247
        %1249 = vmatpush1.msra.mxu0 %v1248
        %v1250 = vand.u32 %v747, 4294901760
        %v1251 = vsub.f32 %v747, %v1250
        %1252 = vmatprep.subr.mxu0 %v1251
        %v1253 = vand.u32 %v746, 4294901760
        %v1254 = vsub.f32 %v746, %v1253
        %1255 = vmatpush1.msra.mxu0 %v1254
        %v1256 = vand.u32 %v745, 4294901760
        %v1257 = vsub.f32 %v745, %v1256
        %1258 = vmatprep.subr.mxu0 %v1257
        %v1259 = vand.u32 %v744, 4294901760
        %v1260 = vsub.f32 %v744, %v1259
        %1261 = vmatpush1.msra.mxu0 %v1260
        %v1262 = vand.u32 %v743, 4294901760
        %v1263 = vsub.f32 %v743, %v1262
        %1264 = vmatprep.subr.mxu0 %v1263
        %v1265 = vand.u32 %v742, 4294901760
        %v1266 = vsub.f32 %v742, %v1265
        %1267 = vmatpush1.msra.mxu0 %v1266
        %v1268 = vand.u32 %v741, 4294901760
        %v1269 = vsub.f32 %v741, %v1268
        %1270 = vmatprep.subr.mxu0 %v1269
        %v1271 = vand.u32 %v740, 4294901760
        %v1272 = vsub.f32 %v740, %v1271
        %1273 = vmatpush1.msra.mxu0 %v1272
        %1274 = vmatprep.subr.mxu0 0.0
        %1275 = vmatpush2.msra.mxu0 0.0
        %1276 = vmatprep.subr.mxu0 0.0
        %1277 = vmatpush2.msra.mxu0 0.0
        %1278 = vmatprep.subr.mxu0 0.0
        %1279 = vmatpush2.msra.mxu0 0.0
        %1280 = vmatprep.subr.mxu0 0.0
        %1281 = vmatpush2.msra.mxu0 0.0
        %1282 = vmatprep.subr.mxu0 0.0
        %1283 = vmatpush2.msra.mxu0 0.0
        %1284 = vmatprep.subr.mxu0 0.0
        %1285 = vmatpush2.msra.mxu0 0.0
        %1286 = vmatprep.subr.mxu0 0.0
        %1287 = vmatpush2.msra.mxu0 0.0
        %1288 = vmatprep.subr.mxu0 0.0
        %1289 = vmatpush2.msra.mxu0 0.0
        %1290 = vmatprep.subr.mxu0 0.0
        %1291 = vmatpush2.msra.mxu0 0.0
        %1292 = vmatprep.subr.mxu0 0.0
        %1293 = vmatpush2.msra.mxu0 0.0
        %1294 = vmatprep.subr.mxu0 0.0
        %1295 = vmatpush2.msra.mxu0 0.0
        %1296 = vmatprep.subr.mxu0 0.0
        %1297 = vmatpush2.msra.mxu0 0.0
        %1298 = vmatprep.subr.mxu0 0.0
        %1299 = vmatpush2.msra.mxu0 0.0
        %1300 = vmatprep.subr.mxu0 0.0
        %1301 = vmatpush2.msra.mxu0 0.0
        %1302 = vmatprep.subr.mxu0 0.0
        %1303 = vmatpush2.msra.mxu0 0.0
        %1304 = vmatprep.subr.mxu0 0.0
        %1305 = vmatpush2.msra.mxu0 0.0
        %1306 = vmatprep.mubr.f32.mxu0 0.0
        %v1307 = vand.u32 %v736, 4294901760
        %v1308 = vsub.f32 %v736, %v1307
        %1309 = vmatmul.mubr.f32.gmra.mxu0 %v1308
        %v1310 = vpop.f32.mrf.mxu0
        %v1311 = vadd.f32 %v1153, %v1310
        %v1312 = vpop.f32.mrf.mxu0
        %v1313 = vadd.f32 %v1155, %v1312
        %1314 = vmatprep.mubr.f32.mxu0 0.0
        %v1315 = vand.u32 %v737, 4294901760
        %v1316 = vsub.f32 %v737, %v1315
        %1317 = vmatmul.mubr.f32.gmra.mxu0 %v1316
        %v1318 = vpop.f32.mrf.mxu0
        %v1319 = vadd.f32 %v1160, %v1318
        %v1320 = vpop.f32.mrf.mxu0
        %v1321 = vadd.f32 %v1162, %v1320
        %1322 = vmatprep.mubr.f32.mxu0 0.0
        %v1323 = vand.u32 %v738, 4294901760
        %v1324 = vsub.f32 %v738, %v1323
        %1325 = vmatmul.mubr.f32.gmra.mxu0 %v1324
        %v1326 = vpop.f32.mrf.mxu0
        %v1327 = vadd.f32 %v1167, %v1326
        %v1328 = vpop.f32.mrf.mxu0
        %v1329 = vadd.f32 %v1169, %v1328
        %1330 = vmatprep.mubr.f32.mxu0 0.0
        %v1331 = vand.u32 %v739, 4294901760
        %v1332 = vsub.f32 %v739, %v1331
        %1333 = vmatmul.mubr.f32.gmra.mxu0 %v1332
        %v1334 = vpop.f32.mrf.mxu0
        %v1335 = vadd.f32 %v1174, %v1334
        %v1336 = vpop.f32.mrf.mxu0
        %v1337 = vadd.f32 %v1176, %v1336
        %1338 = vdwg.mxu0
        %v1339 = vand.u32 %v771, 4294901760
        %1340 = vmatprep.subr.mxu0 %v1339
        %v1341 = vand.u32 %v770, 4294901760
        %1342 = vmatpush1.msra.mxu0 %v1341
        %v1343 = vand.u32 %v769, 4294901760
        %1344 = vmatprep.subr.mxu0 %v1343
        %v1345 = vand.u32 %v768, 4294901760
        %1346 = vmatpush1.msra.mxu0 %v1345
        %v1347 = vand.u32 %v767, 4294901760
        %1348 = vmatprep.subr.mxu0 %v1347
        %v1349 = vand.u32 %v766, 4294901760
        %1350 = vmatpush1.msra.mxu0 %v1349
        %v1351 = vand.u32 %v765, 4294901760
        %1352 = vmatprep.subr.mxu0 %v1351
        %v1353 = vand.u32 %v764, 4294901760
        %1354 = vmatpush1.msra.mxu0 %v1353
        %v1355 = vand.u32 %v763, 4294901760
        %1356 = vmatprep.subr.mxu0 %v1355
        %v1357 = vand.u32 %v762, 4294901760
        %1358 = vmatpush1.msra.mxu0 %v1357
        %v1359 = vand.u32 %v761, 4294901760
        %1360 = vmatprep.subr.mxu0 %v1359
        %v1361 = vand.u32 %v760, 4294901760
        %1362 = vmatpush1.msra.mxu0 %v1361
        %v1363 = vand.u32 %v759, 4294901760
        %1364 = vmatprep.subr.mxu0 %v1363
        %v1365 = vand.u32 %v758, 4294901760
        %1366 = vmatpush1.msra.mxu0 %v1365
        %v1367 = vand.u32 %v757, 4294901760
        %1368 = vmatprep.subr.mxu0 %v1367
        %v1369 = vand.u32 %v756, 4294901760
        %1370 = vmatpush1.msra.mxu0 %v1369
        %v1371 = vand.u32 %v755, 4294901760
        %1372 = vmatprep.subr.mxu0 %v1371
        %v1373 = vand.u32 %v754, 4294901760
        %1374 = vmatpush1.msra.mxu0 %v1373
        %v1375 = vand.u32 %v753, 4294901760
        %1376 = vmatprep.subr.mxu0 %v1375
        %v1377 = vand.u32 %v752, 4294901760
        %1378 = vmatpush1.msra.mxu0 %v1377
        %v1379 = vand.u32 %v751, 4294901760
        %1380 = vmatprep.subr.mxu0 %v1379
        %v1381 = vand.u32 %v750, 4294901760
        %1382 = vmatpush1.msra.mxu0 %v1381
        %v1383 = vand.u32 %v749, 4294901760
        %1384 = vmatprep.subr.mxu0 %v1383
        %v1385 = vand.u32 %v748, 4294901760
        %1386 = vmatpush1.msra.mxu0 %v1385
        %v1387 = vand.u32 %v747, 4294901760
        %1388 = vmatprep.subr.mxu0 %v1387
        %v1389 = vand.u32 %v746, 4294901760
        %1390 = vmatpush1.msra.mxu0 %v1389
        %v1391 = vand.u32 %v745, 4294901760
        %1392 = vmatprep.subr.mxu0 %v1391
        %v1393 = vand.u32 %v744, 4294901760
        %1394 = vmatpush1.msra.mxu0 %v1393
        %v1395 = vand.u32 %v743, 4294901760
        %1396 = vmatprep.subr.mxu0 %v1395
        %v1397 = vand.u32 %v742, 4294901760
        %1398 = vmatpush1.msra.mxu0 %v1397
        %v1399 = vand.u32 %v741, 4294901760
        %1400 = vmatprep.subr.mxu0 %v1399
        %v1401 = vand.u32 %v740, 4294901760
        %1402 = vmatpush1.msra.mxu0 %v1401
        %1403 = vmatprep.subr.mxu0 0.0
        %1404 = vmatpush2.msra.mxu0 0.0
        %1405 = vmatprep.subr.mxu0 0.0
        %1406 = vmatpush2.msra.mxu0 0.0
        %1407 = vmatprep.subr.mxu0 0.0
        %1408 = vmatpush2.msra.mxu0 0.0
        %1409 = vmatprep.subr.mxu0 0.0
        %1410 = vmatpush2.msra.mxu0 0.0
        %1411 = vmatprep.subr.mxu0 0.0
        %1412 = vmatpush2.msra.mxu0 0.0
        %1413 = vmatprep.subr.mxu0 0.0
        %1414 = vmatpush2.msra.mxu0 0.0
        %1415 = vmatprep.subr.mxu0 0.0
        %1416 = vmatpush2.msra.mxu0 0.0
        %1417 = vmatprep.subr.mxu0 0.0
        %1418 = vmatpush2.msra.mxu0 0.0
        %1419 = vmatprep.subr.mxu0 0.0
        %1420 = vmatpush2.msra.mxu0 0.0
        %1421 = vmatprep.subr.mxu0 0.0
        %1422 = vmatpush2.msra.mxu0 0.0
        %1423 = vmatprep.subr.mxu0 0.0
        %1424 = vmatpush2.msra.mxu0 0.0
        %1425 = vmatprep.subr.mxu0 0.0
        %1426 = vmatpush2.msra.mxu0 0.0
        %1427 = vmatprep.subr.mxu0 0.0
        %1428 = vmatpush2.msra.mxu0 0.0
        %1429 = vmatprep.subr.mxu0 0.0
        %1430 = vmatpush2.msra.mxu0 0.0
        %1431 = vmatprep.subr.mxu0 0.0
        %1432 = vmatpush2.msra.mxu0 0.0
        %1433 = vmatprep.subr.mxu0 0.0
        %1434 = vmatpush2.msra.mxu0 0.0
        %1435 = vmatprep.mubr.f32.mxu0 0.0
        %v1436 = vand.u32 %v736, 4294901760
        %v1437 = vsub.f32 %v736, %v1436
        %v1438 = vand.u32 %v1437, 4294901760
        %1439 = vmatmul.mubr.f32.gmra.mxu0 %v1438
        %v1440 = vpop.f32.mrf.mxu0
        %v1441 = vadd.f32 %v1311, %v1440
        %v1442 = vpop.f32.mrf.mxu0
        %v1443 = vadd.f32 %v1313, %v1442
        %1444 = vmatprep.mubr.f32.mxu0 0.0
        %v1445 = vand.u32 %v737, 4294901760
        %v1446 = vsub.f32 %v737, %v1445
        %v1447 = vand.u32 %v1446, 4294901760
        %1448 = vmatmul.mubr.f32.gmra.mxu0 %v1447
        %v1449 = vpop.f32.mrf.mxu0
        %v1450 = vadd.f32 %v1319, %v1449
        %v1451 = vpop.f32.mrf.mxu0
        %v1452 = vadd.f32 %v1321, %v1451
        %1453 = vmatprep.mubr.f32.mxu0 0.0
        %v1454 = vand.u32 %v738, 4294901760
        %v1455 = vsub.f32 %v738, %v1454
        %v1456 = vand.u32 %v1455, 4294901760
        %1457 = vmatmul.mubr.f32.gmra.mxu0 %v1456
        %v1458 = vpop.f32.mrf.mxu0
        %v1459 = vadd.f32 %v1327, %v1458
        %v1460 = vpop.f32.mrf.mxu0
        %v1461 = vadd.f32 %v1329, %v1460
        %1462 = vmatprep.mubr.f32.mxu0 0.0
        %v1463 = vand.u32 %v739, 4294901760
        %v1464 = vsub.f32 %v739, %v1463
        %v1465 = vand.u32 %v1464, 4294901760
        %1466 = vmatmul.mubr.f32.gmra.mxu0 %v1465
        %v1467 = vpop.f32.mrf.mxu0
        %v1468 = vadd.f32 %v1335, %v1467
        %v1469 = vpop.f32.mrf.mxu0
        %v1470 = vadd.f32 %v1337, %v1469
        %1471 = vdwg.mxu0
        %v1472 = vand.u32 %v771, 4294901760
        %v1473 = vsub.f32 %v771, %v1472
        %v1474 = vand.u32 %v1473, 4294901760
        %1475 = vmatprep.subr.mxu0 %v1474
        %v1476 = vand.u32 %v770, 4294901760
        %v1477 = vsub.f32 %v770, %v1476
        %v1478 = vand.u32 %v1477, 4294901760
        %1479 = vmatpush1.msra.mxu0 %v1478
        %v1480 = vand.u32 %v769, 4294901760
        %v1481 = vsub.f32 %v769, %v1480
        %v1482 = vand.u32 %v1481, 4294901760
        %1483 = vmatprep.subr.mxu0 %v1482
        %v1484 = vand.u32 %v768, 4294901760
        %v1485 = vsub.f32 %v768, %v1484
        %v1486 = vand.u32 %v1485, 4294901760
        %1487 = vmatpush1.msra.mxu0 %v1486
        %v1488 = vand.u32 %v767, 4294901760
        %v1489 = vsub.f32 %v767, %v1488
        %v1490 = vand.u32 %v1489, 4294901760
        %1491 = vmatprep.subr.mxu0 %v1490
        %v1492 = vand.u32 %v766, 4294901760
        %v1493 = vsub.f32 %v766, %v1492
        %v1494 = vand.u32 %v1493, 4294901760
        %1495 = vmatpush1.msra.mxu0 %v1494
        %v1496 = vand.u32 %v765, 4294901760
        %v1497 = vsub.f32 %v765, %v1496
        %v1498 = vand.u32 %v1497, 4294901760
        %1499 = vmatprep.subr.mxu0 %v1498
        %v1500 = vand.u32 %v764, 4294901760
        %v1501 = vsub.f32 %v764, %v1500
        %v1502 = vand.u32 %v1501, 4294901760
        %1503 = vmatpush1.msra.mxu0 %v1502
        %v1504 = vand.u32 %v763, 4294901760
        %v1505 = vsub.f32 %v763, %v1504
        %v1506 = vand.u32 %v1505, 4294901760
        %1507 = vmatprep.subr.mxu0 %v1506
        %v1508 = vand.u32 %v762, 4294901760
        %v1509 = vsub.f32 %v762, %v1508
        %v1510 = vand.u32 %v1509, 4294901760
        %1511 = vmatpush1.msra.mxu0 %v1510
        %v1512 = vand.u32 %v761, 4294901760
        %v1513 = vsub.f32 %v761, %v1512
        %v1514 = vand.u32 %v1513, 4294901760
        %1515 = vmatprep.subr.mxu0 %v1514
        %v1516 = vand.u32 %v760, 4294901760
        %v1517 = vsub.f32 %v760, %v1516
        %v1518 = vand.u32 %v1517, 4294901760
        %1519 = vmatpush1.msra.mxu0 %v1518
        %v1520 = vand.u32 %v759, 4294901760
        %v1521 = vsub.f32 %v759, %v1520
        %v1522 = vand.u32 %v1521, 4294901760
        %1523 = vmatprep.subr.mxu0 %v1522
        %v1524 = vand.u32 %v758, 4294901760
        %v1525 = vsub.f32 %v758, %v1524
        %v1526 = vand.u32 %v1525, 4294901760
        %1527 = vmatpush1.msra.mxu0 %v1526
        %v1528 = vand.u32 %v757, 4294901760
        %v1529 = vsub.f32 %v757, %v1528
        %v1530 = vand.u32 %v1529, 4294901760
        %1531 = vmatprep.subr.mxu0 %v1530
        %v1532 = vand.u32 %v756, 4294901760
        %v1533 = vsub.f32 %v756, %v1532
        %v1534 = vand.u32 %v1533, 4294901760
        %1535 = vmatpush1.msra.mxu0 %v1534
        %v1536 = vand.u32 %v755, 4294901760
        %v1537 = vsub.f32 %v755, %v1536
        %v1538 = vand.u32 %v1537, 4294901760
        %1539 = vmatprep.subr.mxu0 %v1538
        %v1540 = vand.u32 %v754, 4294901760
        %v1541 = vsub.f32 %v754, %v1540
        %v1542 = vand.u32 %v1541, 4294901760
        %1543 = vmatpush1.msra.mxu0 %v1542
        %v1544 = vand.u32 %v753, 4294901760
        %v1545 = vsub.f32 %v753, %v1544
        %v1546 = vand.u32 %v1545, 4294901760
        %1547 = vmatprep.subr.mxu0 %v1546
        %v1548 = vand.u32 %v752, 4294901760
        %v1549 = vsub.f32 %v752, %v1548
        %v1550 = vand.u32 %v1549, 4294901760
        %1551 = vmatpush1.msra.mxu0 %v1550
        %v1552 = vand.u32 %v751, 4294901760
        %v1553 = vsub.f32 %v751, %v1552
        %v1554 = vand.u32 %v1553, 4294901760
        %1555 = vmatprep.subr.mxu0 %v1554
        %v1556 = vand.u32 %v750, 4294901760
        %v1557 = vsub.f32 %v750, %v1556
        %v1558 = vand.u32 %v1557, 4294901760
        %1559 = vmatpush1.msra.mxu0 %v1558
        %v1560 = vand.u32 %v749, 4294901760
        %v1561 = vsub.f32 %v749, %v1560
        %v1562 = vand.u32 %v1561, 4294901760
        %1563 = vmatprep.subr.mxu0 %v1562
        %v1564 = vand.u32 %v748, 4294901760
        %v1565 = vsub.f32 %v748, %v1564
        %v1566 = vand.u32 %v1565, 4294901760
        %1567 = vmatpush1.msra.mxu0 %v1566
        %v1568 = vand.u32 %v747, 4294901760
        %v1569 = vsub.f32 %v747, %v1568
        %v1570 = vand.u32 %v1569, 4294901760
        %1571 = vmatprep.subr.mxu0 %v1570
        %v1572 = vand.u32 %v746, 4294901760
        %v1573 = vsub.f32 %v746, %v1572
        %v1574 = vand.u32 %v1573, 4294901760
        %1575 = vmatpush1.msra.mxu0 %v1574
        %v1576 = vand.u32 %v745, 4294901760
        %v1577 = vsub.f32 %v745, %v1576
        %v1578 = vand.u32 %v1577, 4294901760
        %1579 = vmatprep.subr.mxu0 %v1578
        %v1580 = vand.u32 %v744, 4294901760
        %v1581 = vsub.f32 %v744, %v1580
        %v1582 = vand.u32 %v1581, 4294901760
        %1583 = vmatpush1.msra.mxu0 %v1582
        %v1584 = vand.u32 %v743, 4294901760
        %v1585 = vsub.f32 %v743, %v1584
        %v1586 = vand.u32 %v1585, 4294901760
        %1587 = vmatprep.subr.mxu0 %v1586
        %v1588 = vand.u32 %v742, 4294901760
        %v1589 = vsub.f32 %v742, %v1588
        %v1590 = vand.u32 %v1589, 4294901760
        %1591 = vmatpush1.msra.mxu0 %v1590
        %v1592 = vand.u32 %v741, 4294901760
        %v1593 = vsub.f32 %v741, %v1592
        %v1594 = vand.u32 %v1593, 4294901760
        %1595 = vmatprep.subr.mxu0 %v1594
        %v1596 = vand.u32 %v740, 4294901760
        %v1597 = vsub.f32 %v740, %v1596
        %v1598 = vand.u32 %v1597, 4294901760
        %1599 = vmatpush1.msra.mxu0 %v1598
        %1600 = vmatprep.subr.mxu0 0.0
        %1601 = vmatpush2.msra.mxu0 0.0
        %1602 = vmatprep.subr.mxu0 0.0
        %1603 = vmatpush2.msra.mxu0 0.0
        %1604 = vmatprep.subr.mxu0 0.0
        %1605 = vmatpush2.msra.mxu0 0.0
        %1606 = vmatprep.subr.mxu0 0.0
        %1607 = vmatpush2.msra.mxu0 0.0
        %1608 = vmatprep.subr.mxu0 0.0
        %1609 = vmatpush2.msra.mxu0 0.0
        %1610 = vmatprep.subr.mxu0 0.0
        %1611 = vmatpush2.msra.mxu0 0.0
        %1612 = vmatprep.subr.mxu0 0.0
        %1613 = vmatpush2.msra.mxu0 0.0
        %1614 = vmatprep.subr.mxu0 0.0
        %1615 = vmatpush2.msra.mxu0 0.0
        %1616 = vmatprep.subr.mxu0 0.0
        %1617 = vmatpush2.msra.mxu0 0.0
        %1618 = vmatprep.subr.mxu0 0.0
        %1619 = vmatpush2.msra.mxu0 0.0
        %1620 = vmatprep.subr.mxu0 0.0
        %1621 = vmatpush2.msra.mxu0 0.0
        %1622 = vmatprep.subr.mxu0 0.0
        %1623 = vmatpush2.msra.mxu0 0.0
        %1624 = vmatprep.subr.mxu0 0.0
        %1625 = vmatpush2.msra.mxu0 0.0
        %1626 = vmatprep.subr.mxu0 0.0
        %1627 = vmatpush2.msra.mxu0 0.0
        %1628 = vmatprep.subr.mxu0 0.0
        %1629 = vmatpush2.msra.mxu0 0.0
        %1630 = vmatprep.subr.mxu0 0.0
        %1631 = vmatpush2.msra.mxu0 0.0
        %1632 = vmatprep.mubr.f32.mxu0 0.0
        %v1633 = vand.u32 %v736, 4294901760
        %1634 = vmatmul.mubr.f32.gmra.mxu0 %v1633
        %v1635 = vpop.f32.mrf.mxu0
        %v1636 = vadd.f32 %v1441, %v1635
        %v1637 = vpop.f32.mrf.mxu0
        %v1638 = vadd.f32 %v1443, %v1637
        %1639 = vmatprep.mubr.f32.mxu0 0.0
        %v1640 = vand.u32 %v737, 4294901760
        %1641 = vmatmul.mubr.f32.gmra.mxu0 %v1640
        %v1642 = vpop.f32.mrf.mxu0
        %v1643 = vadd.f32 %v1450, %v1642
        %v1644 = vpop.f32.mrf.mxu0
        %v1645 = vadd.f32 %v1452, %v1644
        %1646 = vmatprep.mubr.f32.mxu0 0.0
        %v1647 = vand.u32 %v738, 4294901760
        %1648 = vmatmul.mubr.f32.gmra.mxu0 %v1647
        %v1649 = vpop.f32.mrf.mxu0
        %v1650 = vadd.f32 %v1459, %v1649
        %v1651 = vpop.f32.mrf.mxu0
        %v1652 = vadd.f32 %v1461, %v1651
        %1653 = vmatprep.mubr.f32.mxu0 0.0
        %v1654 = vand.u32 %v739, 4294901760
        %1655 = vmatmul.mubr.f32.gmra.mxu0 %v1654
        %v1656 = vpop.f32.mrf.mxu0
        %v1657 = vadd.f32 %v1468, %v1656
        %v1658 = vpop.f32.mrf.mxu0
        %v1659 = vadd.f32 %v1470, %v1658
        %1660 = vdwg.mxu0
        %v1661 = vand.u32 %v771, 4294901760
        %1662 = vmatprep.subr.mxu0 %v1661
        %v1663 = vand.u32 %v770, 4294901760
        %1664 = vmatpush1.msra.mxu0 %v1663
        %v1665 = vand.u32 %v769, 4294901760
        %1666 = vmatprep.subr.mxu0 %v1665
        %v1667 = vand.u32 %v768, 4294901760
        %1668 = vmatpush1.msra.mxu0 %v1667
        %v1669 = vand.u32 %v767, 4294901760
        %1670 = vmatprep.subr.mxu0 %v1669
        %v1671 = vand.u32 %v766, 4294901760
        %1672 = vmatpush1.msra.mxu0 %v1671
        %v1673 = vand.u32 %v765, 4294901760
        %1674 = vmatprep.subr.mxu0 %v1673
        %v1675 = vand.u32 %v764, 4294901760
        %1676 = vmatpush1.msra.mxu0 %v1675
        %v1677 = vand.u32 %v763, 4294901760
        %1678 = vmatprep.subr.mxu0 %v1677
        %v1679 = vand.u32 %v762, 4294901760
        %1680 = vmatpush1.msra.mxu0 %v1679
        %v1681 = vand.u32 %v761, 4294901760
        %1682 = vmatprep.subr.mxu0 %v1681
        %v1683 = vand.u32 %v760, 4294901760
        %1684 = vmatpush1.msra.mxu0 %v1683
        %v1685 = vand.u32 %v759, 4294901760
        %1686 = vmatprep.subr.mxu0 %v1685
        %v1687 = vand.u32 %v758, 4294901760
        %1688 = vmatpush1.msra.mxu0 %v1687
        %v1689 = vand.u32 %v757, 4294901760
        %1690 = vmatprep.subr.mxu0 %v1689
        %v1691 = vand.u32 %v756, 4294901760
        %1692 = vmatpush1.msra.mxu0 %v1691
        %v1693 = vand.u32 %v755, 4294901760
        %1694 = vmatprep.subr.mxu0 %v1693
        %v1695 = vand.u32 %v754, 4294901760
        %1696 = vmatpush1.msra.mxu0 %v1695
        %v1697 = vand.u32 %v753, 4294901760
        %1698 = vmatprep.subr.mxu0 %v1697
        %v1699 = vand.u32 %v752, 4294901760
        %1700 = vmatpush1.msra.mxu0 %v1699
        %v1701 = vand.u32 %v751, 4294901760
        %1702 = vmatprep.subr.mxu0 %v1701
        %v1703 = vand.u32 %v750, 4294901760
        %1704 = vmatpush1.msra.mxu0 %v1703
        %v1705 = vand.u32 %v749, 4294901760
        %1706 = vmatprep.subr.mxu0 %v1705
        %v1707 = vand.u32 %v748, 4294901760
        %1708 = vmatpush1.msra.mxu0 %v1707
        %v1709 = vand.u32 %v747, 4294901760
        %1710 = vmatprep.subr.mxu0 %v1709
        %v1711 = vand.u32 %v746, 4294901760
        %1712 = vmatpush1.msra.mxu0 %v1711
        %v1713 = vand.u32 %v745, 4294901760
        %1714 = vmatprep.subr.mxu0 %v1713
        %v1715 = vand.u32 %v744, 4294901760
        %1716 = vmatpush1.msra.mxu0 %v1715
        %v1717 = vand.u32 %v743, 4294901760
        %1718 = vmatprep.subr.mxu0 %v1717
        %v1719 = vand.u32 %v742, 4294901760
        %1720 = vmatpush1.msra.mxu0 %v1719
        %v1721 = vand.u32 %v741, 4294901760
        %1722 = vmatprep.subr.mxu0 %v1721
        %v1723 = vand.u32 %v740, 4294901760
        %1724 = vmatpush1.msra.mxu0 %v1723
        %1725 = vmatprep.subr.mxu0 0.0
        %1726 = vmatpush2.msra.mxu0 0.0
        %1727 = vmatprep.subr.mxu0 0.0
        %1728 = vmatpush2.msra.mxu0 0.0
        %1729 = vmatprep.subr.mxu0 0.0
        %1730 = vmatpush2.msra.mxu0 0.0
        %1731 = vmatprep.subr.mxu0 0.0
        %1732 = vmatpush2.msra.mxu0 0.0
        %1733 = vmatprep.subr.mxu0 0.0
        %1734 = vmatpush2.msra.mxu0 0.0
        %1735 = vmatprep.subr.mxu0 0.0
        %1736 = vmatpush2.msra.mxu0 0.0
        %1737 = vmatprep.subr.mxu0 0.0
        %1738 = vmatpush2.msra.mxu0 0.0
        %1739 = vmatprep.subr.mxu0 0.0
        %1740 = vmatpush2.msra.mxu0 0.0
        %1741 = vmatprep.subr.mxu0 0.0
        %1742 = vmatpush2.msra.mxu0 0.0
        %1743 = vmatprep.subr.mxu0 0.0
        %1744 = vmatpush2.msra.mxu0 0.0
        %1745 = vmatprep.subr.mxu0 0.0
        %1746 = vmatpush2.msra.mxu0 0.0
        %1747 = vmatprep.subr.mxu0 0.0
        %1748 = vmatpush2.msra.mxu0 0.0
        %1749 = vmatprep.subr.mxu0 0.0
        %1750 = vmatpush2.msra.mxu0 0.0
        %1751 = vmatprep.subr.mxu0 0.0
        %1752 = vmatpush2.msra.mxu0 0.0
        %1753 = vmatprep.subr.mxu0 0.0
        %1754 = vmatpush2.msra.mxu0 0.0
        %1755 = vmatprep.subr.mxu0 0.0
        %1756 = vmatpush2.msra.mxu0 0.0
        %1757 = vmatprep.mubr.f32.mxu0 0.0
        %v1758 = vand.u32 %v736, 4294901760
        %1759 = vmatmul.mubr.f32.gmra.mxu0 %v1758
        %v1760 = vpop.f32.mrf.mxu0
        %v1761 = vadd.f32 %v1636, %v1760
        %v1762 = vpop.f32.mrf.mxu0
        %v1763 = vadd.f32 %v1638, %v1762
        %1764 = vmatprep.mubr.f32.mxu0 0.0
        %v1765 = vand.u32 %v737, 4294901760
        %1766 = vmatmul.mubr.f32.gmra.mxu0 %v1765
        %v1767 = vpop.f32.mrf.mxu0
        %v1768 = vadd.f32 %v1643, %v1767
        %v1769 = vpop.f32.mrf.mxu0
        %v1770 = vadd.f32 %v1645, %v1769
        %1771 = vmatprep.mubr.f32.mxu0 0.0
        %v1772 = vand.u32 %v738, 4294901760
        %1773 = vmatmul.mubr.f32.gmra.mxu0 %v1772
        %v1774 = vpop.f32.mrf.mxu0
        %v1775 = vadd.f32 %v1650, %v1774
        %v1776 = vpop.f32.mrf.mxu0
        %v1777 = vadd.f32 %v1652, %v1776
        %1778 = vmatprep.mubr.f32.mxu0 0.0
        %v1779 = vand.u32 %v739, 4294901760
        %1780 = vmatmul.mubr.f32.gmra.mxu0 %v1779
        %v1781 = vpop.f32.mrf.mxu0
        %v1782 = vadd.f32 %v1657, %v1781
        %v1783 = vpop.f32.mrf.mxu0
        %v1784 = vadd.f32 %v1659, %v1783
        %1785 = vdwg.mxu0
        %v1786 = vmax.f32 %v1761, 0.0
        %v1787 = vmax.f32 %v1763, 0.0
        %v1788 = vmax.f32 %v1768, 0.0
        %v1789 = vmax.f32 %v1770, 0.0
        %v1790 = vmax.f32 %v1775, 0.0
        %v1791 = vmax.f32 %v1777, 0.0
        %v1792 = vmax.f32 %v1782, 0.0
        %v1793 = vmax.f32 %v1784, 0.0
        %v1794 = vld [vmem:[%s354] sm:$0xff]
        %v1795 = vld [vmem:[%s354 + $0x8] sm:$0xff]
        %v1796 = vld [vmem:[%s354 + $0x10] sm:$0xff]
        %v1797 = vld [vmem:[%s354 + $0x18] sm:$0xff]
        %v1798 = vld [vmem:[%s354 + $0x20] sm:$0xff]
        %v1799 = vld [vmem:[%s354 + $0x28] sm:$0xff]
        %v1800 = vld [vmem:[%s354 + $0x30] sm:$0xff]
        %v1801 = vld [vmem:[%s354 + $0x38] sm:$0xff]
        %v1802 = vld [vmem:[%s354 + $0x40] sm:$0xff]
        %v1803 = vld [vmem:[%s354 + $0x48] sm:$0xff]
        %v1804 = vld [vmem:[%s354 + $0x50] sm:$0xff]
        %v1805 = vld [vmem:[%s354 + $0x58] sm:$0xff]
        %v1806 = vld [vmem:[%s354 + $0x60] sm:$0xff]
        %v1807 = vld [vmem:[%s354 + $0x68] sm:$0xff]
        %v1808 = vld [vmem:[%s354 + $0x70] sm:$0xff]
        %v1809 = vld [vmem:[%s354 + $0x78] sm:$0xff]
        %v1810 = vld [vmem:[%s354 + $0x80] sm:$0xff]
        %v1811 = vld [vmem:[%s354 + $0x88] sm:$0xff]
        %v1812 = vld [vmem:[%s354 + $0x90] sm:$0xff]
        %v1813 = vld [vmem:[%s354 + $0x98] sm:$0xff]
        %v1814 = vld [vmem:[%s354 + $0xa0] sm:$0xff]
        %v1815 = vld [vmem:[%s354 + $0xa8] sm:$0xff]
        %v1816 = vld [vmem:[%s354 + $0xb0] sm:$0xff]
        %v1817 = vld [vmem:[%s354 + $0xb8] sm:$0xff]
        %v1818 = vld [vmem:[%s354 + $0xc0] sm:$0xff]
        %v1819 = vld [vmem:[%s354 + $0xc8] sm:$0xff]
        %v1820 = vld [vmem:[%s354 + $0xd0] sm:$0xff]
        %v1821 = vld [vmem:[%s354 + $0xd8] sm:$0xff]
        %v1822 = vld [vmem:[%s354 + $0xe0] sm:$0xff]
        %v1823 = vld [vmem:[%s354 + $0xe8] sm:$0xff]
        %v1824 = vld [vmem:[%s354 + $0xf0] sm:$0xff]
        %v1825 = vld [vmem:[%s354 + $0xf8] sm:$0xff]
        %v1826 = vld [vmem:[%s336 + $0x4] sm:$0x1]
        %v1827 = vlaneseq
        %v1828 = vshrl.u32 %v1827, 7
        %v1829 = vsub.s32 0, %v1828
        %v1830 = vrot.slane %v1826, %v1829
        %1831 = vmatprep.subr.mxu0 0.0
        %v1832 = vand.u32 %v1809, 4294901760
        %1833 = vmatpush1.msra.mxu0 %v1832
        %1834 = vmatprep.subr.mxu0 0.0
        %v1835 = vand.u32 %v1808, 4294901760
        %1836 = vmatpush1.msra.mxu0 %v1835
        %1837 = vmatprep.subr.mxu0 0.0
        %v1838 = vand.u32 %v1807, 4294901760
        %1839 = vmatpush1.msra.mxu0 %v1838
        %1840 = vmatprep.subr.mxu0 0.0
        %v1841 = vand.u32 %v1806, 4294901760
        %1842 = vmatpush1.msra.mxu0 %v1841
        %1843 = vmatprep.subr.mxu0 0.0
        %v1844 = vand.u32 %v1805, 4294901760
        %1845 = vmatpush1.msra.mxu0 %v1844
        %1846 = vmatprep.subr.mxu0 0.0
        %v1847 = vand.u32 %v1804, 4294901760
        %1848 = vmatpush1.msra.mxu0 %v1847
        %1849 = vmatprep.subr.mxu0 0.0
        %v1850 = vand.u32 %v1803, 4294901760
        %1851 = vmatpush1.msra.mxu0 %v1850
        %1852 = vmatprep.subr.mxu0 0.0
        %v1853 = vand.u32 %v1802, 4294901760
        %1854 = vmatpush1.msra.mxu0 %v1853
        %1855 = vmatprep.subr.mxu0 0.0
        %v1856 = vand.u32 %v1801, 4294901760
        %1857 = vmatpush1.msra.mxu0 %v1856
        %1858 = vmatprep.subr.mxu0 0.0
        %v1859 = vand.u32 %v1800, 4294901760
        %1860 = vmatpush1.msra.mxu0 %v1859
        %1861 = vmatprep.subr.mxu0 0.0
        %v1862 = vand.u32 %v1799, 4294901760
        %1863 = vmatpush1.msra.mxu0 %v1862
        %1864 = vmatprep.subr.mxu0 0.0
        %v1865 = vand.u32 %v1798, 4294901760
        %1866 = vmatpush1.msra.mxu0 %v1865
        %1867 = vmatprep.subr.mxu0 0.0
        %v1868 = vand.u32 %v1797, 4294901760
        %1869 = vmatpush1.msra.mxu0 %v1868
        %1870 = vmatprep.subr.mxu0 0.0
        %v1871 = vand.u32 %v1796, 4294901760
        %1872 = vmatpush1.msra.mxu0 %v1871
        %1873 = vmatprep.subr.mxu0 0.0
        %v1874 = vand.u32 %v1795, 4294901760
        %1875 = vmatpush1.msra.mxu0 %v1874
        %1876 = vmatprep.subr.mxu0 0.0
        %v1877 = vand.u32 %v1794, 4294901760
        %1878 = vmatpush1.msra.mxu0 %v1877
        %1879 = vmatprep.subr.mxu0 0.0
        %v1880 = vand.u32 %v1825, 4294901760
        %1881 = vmatpush2.msra.mxu0 %v1880
        %1882 = vmatprep.subr.mxu0 0.0
        %v1883 = vand.u32 %v1824, 4294901760
        %1884 = vmatpush2.msra.mxu0 %v1883
        %1885 = vmatprep.subr.mxu0 0.0
        %v1886 = vand.u32 %v1823, 4294901760
        %1887 = vmatpush2.msra.mxu0 %v1886
        %1888 = vmatprep.subr.mxu0 0.0
        %v1889 = vand.u32 %v1822, 4294901760
        %1890 = vmatpush2.msra.mxu0 %v1889
        %1891 = vmatprep.subr.mxu0 0.0
        %v1892 = vand.u32 %v1821, 4294901760
        %1893 = vmatpush2.msra.mxu0 %v1892
        %1894 = vmatprep.subr.mxu0 0.0
        %v1895 = vand.u32 %v1820, 4294901760
        %1896 = vmatpush2.msra.mxu0 %v1895
        %1897 = vmatprep.subr.mxu0 0.0
        %v1898 = vand.u32 %v1819, 4294901760
        %1899 = vmatpush2.msra.mxu0 %v1898
        %1900 = vmatprep.subr.mxu0 0.0
        %v1901 = vand.u32 %v1818, 4294901760
        %1902 = vmatpush2.msra.mxu0 %v1901
        %1903 = vmatprep.subr.mxu0 0.0
        %v1904 = vand.u32 %v1817, 4294901760
        %1905 = vmatpush2.msra.mxu0 %v1904
        %1906 = vmatprep.subr.mxu0 0.0
        %v1907 = vand.u32 %v1816, 4294901760
        %1908 = vmatpush2.msra.mxu0 %v1907
        %1909 = vmatprep.subr.mxu0 0.0
        %v1910 = vand.u32 %v1815, 4294901760
        %1911 = vmatpush2.msra.mxu0 %v1910
        %1912 = vmatprep.subr.mxu0 0.0
        %v1913 = vand.u32 %v1814, 4294901760
        %1914 = vmatpush2.msra.mxu0 %v1913
        %1915 = vmatprep.subr.mxu0 0.0
        %v1916 = vand.u32 %v1813, 4294901760
        %1917 = vmatpush2.msra.mxu0 %v1916
        %1918 = vmatprep.subr.mxu0 0.0
        %v1919 = vand.u32 %v1812, 4294901760
        %1920 = vmatpush2.msra.mxu0 %v1919
        %1921 = vmatprep.subr.mxu0 0.0
        %v1922 = vand.u32 %v1811, 4294901760
        %1923 = vmatpush2.msra.mxu0 %v1922
        %1924 = vmatprep.subr.mxu0 0.0
        %v1925 = vand.u32 %v1810, 4294901760
        %1926 = vmatpush2.msra.mxu0 %v1925
        %v1927 = vand.u32 %v1787, 4294901760
        %v1928 = vsub.f32 %v1787, %v1927
        %v1929 = vand.u32 %v1928, 4294901760
        %v1930 = vsub.f32 %v1928, %v1929
        %v1931 = vand.u32 %v1930, 4294901760
        %1932 = vmatprep.mubr.f32.mxu0 %v1931
        %v1933 = vand.u32 %v1786, 4294901760
        %v1934 = vsub.f32 %v1786, %v1933
        %v1935 = vand.u32 %v1934, 4294901760
        %v1936 = vsub.f32 %v1934, %v1935
        %v1937 = vand.u32 %v1936, 4294901760
        %1938 = vmatmul.mubr.f32.gmra.mxu0 %v1937
        %v1939 = vpop.f32.mrf.mxu0
        %v1940 = vadd.f32 %v1830, %v1939
        %v1941 = vpop.f32.mrf.mxu0
        %v1942 = vand.u32 %v1789, 4294901760
        %v1943 = vsub.f32 %v1789, %v1942
        %v1944 = vand.u32 %v1943, 4294901760
        %v1945 = vsub.f32 %v1943, %v1944
        %v1946 = vand.u32 %v1945, 4294901760
        %1947 = vmatprep.mubr.f32.mxu0 %v1946
        %v1948 = vand.u32 %v1788, 4294901760
        %v1949 = vsub.f32 %v1788, %v1948
        %v1950 = vand.u32 %v1949, 4294901760
        %v1951 = vsub.f32 %v1949, %v1950
        %v1952 = vand.u32 %v1951, 4294901760
        %1953 = vmatmul.mubr.f32.gmra.mxu0 %v1952
        %v1954 = vpop.f32.mrf.mxu0
        %v1955 = vadd.f32 %v1830, %v1954
        %v1956 = vpop.f32.mrf.mxu0
        %v1957 = vand.u32 %v1791, 4294901760
        %v1958 = vsub.f32 %v1791, %v1957
        %v1959 = vand.u32 %v1958, 4294901760
        %v1960 = vsub.f32 %v1958, %v1959
        %v1961 = vand.u32 %v1960, 4294901760
        %1962 = vmatprep.mubr.f32.mxu0 %v1961
        %v1963 = vand.u32 %v1790, 4294901760
        %v1964 = vsub.f32 %v1790, %v1963
        %v1965 = vand.u32 %v1964, 4294901760
        %v1966 = vsub.f32 %v1964, %v1965
        %v1967 = vand.u32 %v1966, 4294901760
        %1968 = vmatmul.mubr.f32.gmra.mxu0 %v1967
        %v1969 = vpop.f32.mrf.mxu0
        %v1970 = vadd.f32 %v1830, %v1969
        %v1971 = vpop.f32.mrf.mxu0
        %v1972 = vand.u32 %v1793, 4294901760
        %v1973 = vsub.f32 %v1793, %v1972
        %v1974 = vand.u32 %v1973, 4294901760
        %v1975 = vsub.f32 %v1973, %v1974
        %v1976 = vand.u32 %v1975, 4294901760
        %1977 = vmatprep.mubr.f32.mxu0 %v1976
        %v1978 = vand.u32 %v1792, 4294901760
        %v1979 = vsub.f32 %v1792, %v1978
        %v1980 = vand.u32 %v1979, 4294901760
        %v1981 = vsub.f32 %v1979, %v1980
        %v1982 = vand.u32 %v1981, 4294901760
        %1983 = vmatmul.mubr.f32.gmra.mxu0 %v1982
        %v1984 = vpop.f32.mrf.mxu0
        %v1985 = vadd.f32 %v1830, %v1984
        %v1986 = vpop.f32.mrf.mxu0
        %1987 = vdwg.mxu0
        %1988 = vmatprep.subr.mxu0 0.0
        %v1989 = vand.u32 %v1809, 4294901760
        %v1990 = vsub.f32 %v1809, %v1989
        %v1991 = vand.u32 %v1990, 4294901760
        %v1992 = vsub.f32 %v1990, %v1991
        %v1993 = vand.u32 %v1992, 4294901760
        %1994 = vmatpush1.msra.mxu0 %v1993
        %1995 = vmatprep.subr.mxu0 0.0
        %v1996 = vand.u32 %v1808, 4294901760
        %v1997 = vsub.f32 %v1808, %v1996
        %v1998 = vand.u32 %v1997, 4294901760
        %v1999 = vsub.f32 %v1997, %v1998
        %v2000 = vand.u32 %v1999, 4294901760
        %2001 = vmatpush1.msra.mxu0 %v2000
        %2002 = vmatprep.subr.mxu0 0.0
        %v2003 = vand.u32 %v1807, 4294901760
        %v2004 = vsub.f32 %v1807, %v2003
        %v2005 = vand.u32 %v2004, 4294901760
        %v2006 = vsub.f32 %v2004, %v2005
        %v2007 = vand.u32 %v2006, 4294901760
        %2008 = vmatpush1.msra.mxu0 %v2007
        %2009 = vmatprep.subr.mxu0 0.0
        %v2010 = vand.u32 %v1806, 4294901760
        %v2011 = vsub.f32 %v1806, %v2010
        %v2012 = vand.u32 %v2011, 4294901760
        %v2013 = vsub.f32 %v2011, %v2012
        %v2014 = vand.u32 %v2013, 4294901760
        %2015 = vmatpush1.msra.mxu0 %v2014
        %2016 = vmatprep.subr.mxu0 0.0
        %v2017 = vand.u32 %v1805, 4294901760
        %v2018 = vsub.f32 %v1805, %v2017
        %v2019 = vand.u32 %v2018, 4294901760
        %v2020 = vsub.f32 %v2018, %v2019
        %v2021 = vand.u32 %v2020, 4294901760
        %2022 = vmatpush1.msra.mxu0 %v2021
        %2023 = vmatprep.subr.mxu0 0.0
        %v2024 = vand.u32 %v1804, 4294901760
        %v2025 = vsub.f32 %v1804, %v2024
        %v2026 = vand.u32 %v2025, 4294901760
        %v2027 = vsub.f32 %v2025, %v2026
        %v2028 = vand.u32 %v2027, 4294901760
        %2029 = vmatpush1.msra.mxu0 %v2028
        %2030 = vmatprep.subr.mxu0 0.0
        %v2031 = vand.u32 %v1803, 4294901760
        %v2032 = vsub.f32 %v1803, %v2031
        %v2033 = vand.u32 %v2032, 4294901760
        %v2034 = vsub.f32 %v2032, %v2033
        %v2035 = vand.u32 %v2034, 4294901760
        %2036 = vmatpush1.msra.mxu0 %v2035
        %2037 = vmatprep.subr.mxu0 0.0
        %v2038 = vand.u32 %v1802, 4294901760
        %v2039 = vsub.f32 %v1802, %v2038
        %v2040 = vand.u32 %v2039, 4294901760
        %v2041 = vsub.f32 %v2039, %v2040
        %v2042 = vand.u32 %v2041, 4294901760
        %2043 = vmatpush1.msra.mxu0 %v2042
        %2044 = vmatprep.subr.mxu0 0.0
        %v2045 = vand.u32 %v1801, 4294901760
        %v2046 = vsub.f32 %v1801, %v2045
        %v2047 = vand.u32 %v2046, 4294901760
        %v2048 = vsub.f32 %v2046, %v2047
        %v2049 = vand.u32 %v2048, 4294901760
        %2050 = vmatpush1.msra.mxu0 %v2049
        %2051 = vmatprep.subr.mxu0 0.0
        %v2052 = vand.u32 %v1800, 4294901760
        %v2053 = vsub.f32 %v1800, %v2052
        %v2054 = vand.u32 %v2053, 4294901760
        %v2055 = vsub.f32 %v2053, %v2054
        %v2056 = vand.u32 %v2055, 4294901760
        %2057 = vmatpush1.msra.mxu0 %v2056
        %2058 = vmatprep.subr.mxu0 0.0
        %v2059 = vand.u32 %v1799, 4294901760
        %v2060 = vsub.f32 %v1799, %v2059
        %v2061 = vand.u32 %v2060, 4294901760
        %v2062 = vsub.f32 %v2060, %v2061
        %v2063 = vand.u32 %v2062, 4294901760
        %2064 = vmatpush1.msra.mxu0 %v2063
        %2065 = vmatprep.subr.mxu0 0.0
        %v2066 = vand.u32 %v1798, 4294901760
        %v2067 = vsub.f32 %v1798, %v2066
        %v2068 = vand.u32 %v2067, 4294901760
        %v2069 = vsub.f32 %v2067, %v2068
        %v2070 = vand.u32 %v2069, 4294901760
        %2071 = vmatpush1.msra.mxu0 %v2070
        %2072 = vmatprep.subr.mxu0 0.0
        %v2073 = vand.u32 %v1797, 4294901760
        %v2074 = vsub.f32 %v1797, %v2073
        %v2075 = vand.u32 %v2074, 4294901760
        %v2076 = vsub.f32 %v2074, %v2075
        %v2077 = vand.u32 %v2076, 4294901760
        %2078 = vmatpush1.msra.mxu0 %v2077
        %2079 = vmatprep.subr.mxu0 0.0
        %v2080 = vand.u32 %v1796, 4294901760
        %v2081 = vsub.f32 %v1796, %v2080
        %v2082 = vand.u32 %v2081, 4294901760
        %v2083 = vsub.f32 %v2081, %v2082
        %v2084 = vand.u32 %v2083, 4294901760
        %2085 = vmatpush1.msra.mxu0 %v2084
        %2086 = vmatprep.subr.mxu0 0.0
        %v2087 = vand.u32 %v1795, 4294901760
        %v2088 = vsub.f32 %v1795, %v2087
        %v2089 = vand.u32 %v2088, 4294901760
        %v2090 = vsub.f32 %v2088, %v2089
        %v2091 = vand.u32 %v2090, 4294901760
        %2092 = vmatpush1.msra.mxu0 %v2091
        %2093 = vmatprep.subr.mxu0 0.0
        %v2094 = vand.u32 %v1794, 4294901760
        %v2095 = vsub.f32 %v1794, %v2094
        %v2096 = vand.u32 %v2095, 4294901760
        %v2097 = vsub.f32 %v2095, %v2096
        %v2098 = vand.u32 %v2097, 4294901760
        %2099 = vmatpush1.msra.mxu0 %v2098
        %2100 = vmatprep.subr.mxu0 0.0
        %v2101 = vand.u32 %v1825, 4294901760
        %v2102 = vsub.f32 %v1825, %v2101
        %v2103 = vand.u32 %v2102, 4294901760
        %v2104 = vsub.f32 %v2102, %v2103
        %v2105 = vand.u32 %v2104, 4294901760
        %2106 = vmatpush2.msra.mxu0 %v2105
        %2107 = vmatprep.subr.mxu0 0.0
        %v2108 = vand.u32 %v1824, 4294901760
        %v2109 = vsub.f32 %v1824, %v2108
        %v2110 = vand.u32 %v2109, 4294901760
        %v2111 = vsub.f32 %v2109, %v2110
        %v2112 = vand.u32 %v2111, 4294901760
        %2113 = vmatpush2.msra.mxu0 %v2112
        %2114 = vmatprep.subr.mxu0 0.0
        %v2115 = vand.u32 %v1823, 4294901760
        %v2116 = vsub.f32 %v1823, %v2115
        %v2117 = vand.u32 %v2116, 4294901760
        %v2118 = vsub.f32 %v2116, %v2117
        %v2119 = vand.u32 %v2118, 4294901760
        %2120 = vmatpush2.msra.mxu0 %v2119
        %2121 = vmatprep.subr.mxu0 0.0
        %v2122 = vand.u32 %v1822, 4294901760
        %v2123 = vsub.f32 %v1822, %v2122
        %v2124 = vand.u32 %v2123, 4294901760
        %v2125 = vsub.f32 %v2123, %v2124
        %v2126 = vand.u32 %v2125, 4294901760
        %2127 = vmatpush2.msra.mxu0 %v2126
        %2128 = vmatprep.subr.mxu0 0.0
        %v2129 = vand.u32 %v1821, 4294901760
        %v2130 = vsub.f32 %v1821, %v2129
        %v2131 = vand.u32 %v2130, 4294901760
        %v2132 = vsub.f32 %v2130, %v2131
        %v2133 = vand.u32 %v2132, 4294901760
        %2134 = vmatpush2.msra.mxu0 %v2133
        %2135 = vmatprep.subr.mxu0 0.0
        %v2136 = vand.u32 %v1820, 4294901760
        %v2137 = vsub.f32 %v1820, %v2136
        %v2138 = vand.u32 %v2137, 4294901760
        %v2139 = vsub.f32 %v2137, %v2138
        %v2140 = vand.u32 %v2139, 4294901760
        %2141 = vmatpush2.msra.mxu0 %v2140
        %2142 = vmatprep.subr.mxu0 0.0
        %v2143 = vand.u32 %v1819, 4294901760
        %v2144 = vsub.f32 %v1819, %v2143
        %v2145 = vand.u32 %v2144, 4294901760
        %v2146 = vsub.f32 %v2144, %v2145
        %v2147 = vand.u32 %v2146, 4294901760
        %2148 = vmatpush2.msra.mxu0 %v2147
        %2149 = vmatprep.subr.mxu0 0.0
        %v2150 = vand.u32 %v1818, 4294901760
        %v2151 = vsub.f32 %v1818, %v2150
        %v2152 = vand.u32 %v2151, 4294901760
        %v2153 = vsub.f32 %v2151, %v2152
        %v2154 = vand.u32 %v2153, 4294901760
        %2155 = vmatpush2.msra.mxu0 %v2154
        %2156 = vmatprep.subr.mxu0 0.0
        %v2157 = vand.u32 %v1817, 4294901760
        %v2158 = vsub.f32 %v1817, %v2157
        %v2159 = vand.u32 %v2158, 4294901760
        %v2160 = vsub.f32 %v2158, %v2159
        %v2161 = vand.u32 %v2160, 4294901760
        %2162 = vmatpush2.msra.mxu0 %v2161
        %2163 = vmatprep.subr.mxu0 0.0
        %v2164 = vand.u32 %v1816, 4294901760
        %v2165 = vsub.f32 %v1816, %v2164
        %v2166 = vand.u32 %v2165, 4294901760
        %v2167 = vsub.f32 %v2165, %v2166
        %v2168 = vand.u32 %v2167, 4294901760
        %2169 = vmatpush2.msra.mxu0 %v2168
        %2170 = vmatprep.subr.mxu0 0.0
        %v2171 = vand.u32 %v1815, 4294901760
        %v2172 = vsub.f32 %v1815, %v2171
        %v2173 = vand.u32 %v2172, 4294901760
        %v2174 = vsub.f32 %v2172, %v2173
        %v2175 = vand.u32 %v2174, 4294901760
        %2176 = vmatpush2.msra.mxu0 %v2175
        %2177 = vmatprep.subr.mxu0 0.0
        %v2178 = vand.u32 %v1814, 4294901760
        %v2179 = vsub.f32 %v1814, %v2178
        %v2180 = vand.u32 %v2179, 4294901760
        %v2181 = vsub.f32 %v2179, %v2180
        %v2182 = vand.u32 %v2181, 4294901760
        %2183 = vmatpush2.msra.mxu0 %v2182
        %2184 = vmatprep.subr.mxu0 0.0
        %v2185 = vand.u32 %v1813, 4294901760
        %v2186 = vsub.f32 %v1813, %v2185
        %v2187 = vand.u32 %v2186, 4294901760
        %v2188 = vsub.f32 %v2186, %v2187
        %v2189 = vand.u32 %v2188, 4294901760
        %2190 = vmatpush2.msra.mxu0 %v2189
        %2191 = vmatprep.subr.mxu0 0.0
        %v2192 = vand.u32 %v1812, 4294901760
        %v2193 = vsub.f32 %v1812, %v2192
        %v2194 = vand.u32 %v2193, 4294901760
        %v2195 = vsub.f32 %v2193, %v2194
        %v2196 = vand.u32 %v2195, 4294901760
        %2197 = vmatpush2.msra.mxu0 %v2196
        %2198 = vmatprep.subr.mxu0 0.0
        %v2199 = vand.u32 %v1811, 4294901760
        %v2200 = vsub.f32 %v1811, %v2199
        %v2201 = vand.u32 %v2200, 4294901760
        %v2202 = vsub.f32 %v2200, %v2201
        %v2203 = vand.u32 %v2202, 4294901760
        %2204 = vmatpush2.msra.mxu0 %v2203
        %2205 = vmatprep.subr.mxu0 0.0
        %v2206 = vand.u32 %v1810, 4294901760
        %v2207 = vsub.f32 %v1810, %v2206
        %v2208 = vand.u32 %v2207, 4294901760
        %v2209 = vsub.f32 %v2207, %v2208
        %v2210 = vand.u32 %v2209, 4294901760
        %2211 = vmatpush2.msra.mxu0 %v2210
        %v2212 = vand.u32 %v1787, 4294901760
        %2213 = vmatprep.mubr.f32.mxu0 %v2212
        %v2214 = vand.u32 %v1786, 4294901760
        %2215 = vmatmul.mubr.f32.gmra.mxu0 %v2214
        %v2216 = vpop.f32.mrf.mxu0
        %v2217 = vadd.f32 %v1940, %v2216
        %v2218 = vpop.f32.mrf.mxu0
        %v2219 = vand.u32 %v1789, 4294901760
        %2220 = vmatprep.mubr.f32.mxu0 %v2219
        %v2221 = vand.u32 %v1788, 4294901760
        %2222 = vmatmul.mubr.f32.gmra.mxu0 %v2221
        %v2223 = vpop.f32.mrf.mxu0
        %v2224 = vadd.f32 %v1955, %v2223
        %v2225 = vpop.f32.mrf.mxu0
        %v2226 = vand.u32 %v1791, 4294901760
        %2227 = vmatprep.mubr.f32.mxu0 %v2226
        %v2228 = vand.u32 %v1790, 4294901760
        %2229 = vmatmul.mubr.f32.gmra.mxu0 %v2228
        %v2230 = vpop.f32.mrf.mxu0
        %v2231 = vadd.f32 %v1970, %v2230
        %v2232 = vpop.f32.mrf.mxu0
        %v2233 = vand.u32 %v1793, 4294901760
        %2234 = vmatprep.mubr.f32.mxu0 %v2233
        %v2235 = vand.u32 %v1792, 4294901760
        %2236 = vmatmul.mubr.f32.gmra.mxu0 %v2235
        %v2237 = vpop.f32.mrf.mxu0
        %v2238 = vadd.f32 %v1985, %v2237
        %v2239 = vpop.f32.mrf.mxu0
        %2240 = vdwg.mxu0
        %2241 = vmatprep.subr.mxu0 0.0
        %v2242 = vand.u32 %v1809, 4294901760
        %v2243 = vsub.f32 %v1809, %v2242
        %2244 = vmatpush1.msra.mxu0 %v2243
        %2245 = vmatprep.subr.mxu0 0.0
        %v2246 = vand.u32 %v1808, 4294901760
        %v2247 = vsub.f32 %v1808, %v2246
        %2248 = vmatpush1.msra.mxu0 %v2247
        %2249 = vmatprep.subr.mxu0 0.0
        %v2250 = vand.u32 %v1807, 4294901760
        %v2251 = vsub.f32 %v1807, %v2250
        %2252 = vmatpush1.msra.mxu0 %v2251
        %2253 = vmatprep.subr.mxu0 0.0
        %v2254 = vand.u32 %v1806, 4294901760
        %v2255 = vsub.f32 %v1806, %v2254
        %2256 = vmatpush1.msra.mxu0 %v2255
        %2257 = vmatprep.subr.mxu0 0.0
        %v2258 = vand.u32 %v1805, 4294901760
        %v2259 = vsub.f32 %v1805, %v2258
        %2260 = vmatpush1.msra.mxu0 %v2259
        %2261 = vmatprep.subr.mxu0 0.0
        %v2262 = vand.u32 %v1804, 4294901760
        %v2263 = vsub.f32 %v1804, %v2262
        %2264 = vmatpush1.msra.mxu0 %v2263
        %2265 = vmatprep.subr.mxu0 0.0
        %v2266 = vand.u32 %v1803, 4294901760
        %v2267 = vsub.f32 %v1803, %v2266
        %2268 = vmatpush1.msra.mxu0 %v2267
        %2269 = vmatprep.subr.mxu0 0.0
        %v2270 = vand.u32 %v1802, 4294901760
        %v2271 = vsub.f32 %v1802, %v2270
        %2272 = vmatpush1.msra.mxu0 %v2271
        %2273 = vmatprep.subr.mxu0 0.0
        %v2274 = vand.u32 %v1801, 4294901760
        %v2275 = vsub.f32 %v1801, %v2274
        %2276 = vmatpush1.msra.mxu0 %v2275
        %2277 = vmatprep.subr.mxu0 0.0
        %v2278 = vand.u32 %v1800, 4294901760
        %v2279 = vsub.f32 %v1800, %v2278
        %2280 = vmatpush1.msra.mxu0 %v2279
        %2281 = vmatprep.subr.mxu0 0.0
        %v2282 = vand.u32 %v1799, 4294901760
        %v2283 = vsub.f32 %v1799, %v2282
        %2284 = vmatpush1.msra.mxu0 %v2283
        %2285 = vmatprep.subr.mxu0 0.0
        %v2286 = vand.u32 %v1798, 4294901760
        %v2287 = vsub.f32 %v1798, %v2286
        %2288 = vmatpush1.msra.mxu0 %v2287
        %2289 = vmatprep.subr.mxu0 0.0
        %v2290 = vand.u32 %v1797, 4294901760
        %v2291 = vsub.f32 %v1797, %v2290
        %2292 = vmatpush1.msra.mxu0 %v2291
        %2293 = vmatprep.subr.mxu0 0.0
        %v2294 = vand.u32 %v1796, 4294901760
        %v2295 = vsub.f32 %v1796, %v2294
        %2296 = vmatpush1.msra.mxu0 %v2295
        %2297 = vmatprep.subr.mxu0 0.0
        %v2298 = vand.u32 %v1795, 4294901760
        %v2299 = vsub.f32 %v1795, %v2298
        %2300 = vmatpush1.msra.mxu0 %v2299
        %2301 = vmatprep.subr.mxu0 0.0
        %v2302 = vand.u32 %v1794, 4294901760
        %v2303 = vsub.f32 %v1794, %v2302
        %2304 = vmatpush1.msra.mxu0 %v2303
        %2305 = vmatprep.subr.mxu0 0.0
        %v2306 = vand.u32 %v1825, 4294901760
        %v2307 = vsub.f32 %v1825, %v2306
        %2308 = vmatpush2.msra.mxu0 %v2307
        %2309 = vmatprep.subr.mxu0 0.0
        %v2310 = vand.u32 %v1824, 4294901760
        %v2311 = vsub.f32 %v1824, %v2310
        %2312 = vmatpush2.msra.mxu0 %v2311
        %2313 = vmatprep.subr.mxu0 0.0
        %v2314 = vand.u32 %v1823, 4294901760
        %v2315 = vsub.f32 %v1823, %v2314
        %2316 = vmatpush2.msra.mxu0 %v2315
        %2317 = vmatprep.subr.mxu0 0.0
        %v2318 = vand.u32 %v1822, 4294901760
        %v2319 = vsub.f32 %v1822, %v2318
        %2320 = vmatpush2.msra.mxu0 %v2319
        %2321 = vmatprep.subr.mxu0 0.0
        %v2322 = vand.u32 %v1821, 4294901760
        %v2323 = vsub.f32 %v1821, %v2322
        %2324 = vmatpush2.msra.mxu0 %v2323
        %2325 = vmatprep.subr.mxu0 0.0
        %v2326 = vand.u32 %v1820, 4294901760
        %v2327 = vsub.f32 %v1820, %v2326
        %2328 = vmatpush2.msra.mxu0 %v2327
        %2329 = vmatprep.subr.mxu0 0.0
        %v2330 = vand.u32 %v1819, 4294901760
        %v2331 = vsub.f32 %v1819, %v2330
        %2332 = vmatpush2.msra.mxu0 %v2331
        %2333 = vmatprep.subr.mxu0 0.0
        %v2334 = vand.u32 %v1818, 4294901760
        %v2335 = vsub.f32 %v1818, %v2334
        %2336 = vmatpush2.msra.mxu0 %v2335
        %2337 = vmatprep.subr.mxu0 0.0
        %v2338 = vand.u32 %v1817, 4294901760
        %v2339 = vsub.f32 %v1817, %v2338
        %2340 = vmatpush2.msra.mxu0 %v2339
        %2341 = vmatprep.subr.mxu0 0.0
        %v2342 = vand.u32 %v1816, 4294901760
        %v2343 = vsub.f32 %v1816, %v2342
        %2344 = vmatpush2.msra.mxu0 %v2343
        %2345 = vmatprep.subr.mxu0 0.0
        %v2346 = vand.u32 %v1815, 4294901760
        %v2347 = vsub.f32 %v1815, %v2346
        %2348 = vmatpush2.msra.mxu0 %v2347
        %2349 = vmatprep.subr.mxu0 0.0
        %v2350 = vand.u32 %v1814, 4294901760
        %v2351 = vsub.f32 %v1814, %v2350
        %2352 = vmatpush2.msra.mxu0 %v2351
        %2353 = vmatprep.subr.mxu0 0.0
        %v2354 = vand.u32 %v1813, 4294901760
        %v2355 = vsub.f32 %v1813, %v2354
        %2356 = vmatpush2.msra.mxu0 %v2355
        %2357 = vmatprep.subr.mxu0 0.0
        %v2358 = vand.u32 %v1812, 4294901760
        %v2359 = vsub.f32 %v1812, %v2358
        %2360 = vmatpush2.msra.mxu0 %v2359
        %2361 = vmatprep.subr.mxu0 0.0
        %v2362 = vand.u32 %v1811, 4294901760
        %v2363 = vsub.f32 %v1811, %v2362
        %2364 = vmatpush2.msra.mxu0 %v2363
        %2365 = vmatprep.subr.mxu0 0.0
        %v2366 = vand.u32 %v1810, 4294901760
        %v2367 = vsub.f32 %v1810, %v2366
        %2368 = vmatpush2.msra.mxu0 %v2367
        %v2369 = vand.u32 %v1787, 4294901760
        %v2370 = vsub.f32 %v1787, %v2369
        %2371 = vmatprep.mubr.f32.mxu0 %v2370
        %v2372 = vand.u32 %v1786, 4294901760
        %v2373 = vsub.f32 %v1786, %v2372
        %2374 = vmatmul.mubr.f32.gmra.mxu0 %v2373
        %v2375 = vpop.f32.mrf.mxu0
        %v2376 = vadd.f32 %v2217, %v2375
        %v2377 = vpop.f32.mrf.mxu0
        %v2378 = vand.u32 %v1789, 4294901760
        %v2379 = vsub.f32 %v1789, %v2378
        %2380 = vmatprep.mubr.f32.mxu0 %v2379
        %v2381 = vand.u32 %v1788, 4294901760
        %v2382 = vsub.f32 %v1788, %v2381
        %2383 = vmatmul.mubr.f32.gmra.mxu0 %v2382
        %v2384 = vpop.f32.mrf.mxu0
        %v2385 = vadd.f32 %v2224, %v2384
        %v2386 = vpop.f32.mrf.mxu0
        %v2387 = vand.u32 %v1791, 4294901760
        %v2388 = vsub.f32 %v1791, %v2387
        %2389 = vmatprep.mubr.f32.mxu0 %v2388
        %v2390 = vand.u32 %v1790, 4294901760
        %v2391 = vsub.f32 %v1790, %v2390
        %2392 = vmatmul.mubr.f32.gmra.mxu0 %v2391
        %v2393 = vpop.f32.mrf.mxu0
        %v2394 = vadd.f32 %v2231, %v2393
        %v2395 = vpop.f32.mrf.mxu0
        %v2396 = vand.u32 %v1793, 4294901760
        %v2397 = vsub.f32 %v1793, %v2396
        %2398 = vmatprep.mubr.f32.mxu0 %v2397
        %v2399 = vand.u32 %v1792, 4294901760
        %v2400 = vsub.f32 %v1792, %v2399
        %2401 = vmatmul.mubr.f32.gmra.mxu0 %v2400
        %v2402 = vpop.f32.mrf.mxu0
        %v2403 = vadd.f32 %v2238, %v2402
        %v2404 = vpop.f32.mrf.mxu0
        %2405 = vdwg.mxu0
        %2406 = vmatprep.subr.mxu0 0.0
        %v2407 = vand.u32 %v1809, 4294901760
        %2408 = vmatpush1.msra.mxu0 %v2407
        %2409 = vmatprep.subr.mxu0 0.0
        %v2410 = vand.u32 %v1808, 4294901760
        %2411 = vmatpush1.msra.mxu0 %v2410
        %2412 = vmatprep.subr.mxu0 0.0
        %v2413 = vand.u32 %v1807, 4294901760
        %2414 = vmatpush1.msra.mxu0 %v2413
        %2415 = vmatprep.subr.mxu0 0.0
        %v2416 = vand.u32 %v1806, 4294901760
        %2417 = vmatpush1.msra.mxu0 %v2416
        %2418 = vmatprep.subr.mxu0 0.0
        %v2419 = vand.u32 %v1805, 4294901760
        %2420 = vmatpush1.msra.mxu0 %v2419
        %2421 = vmatprep.subr.mxu0 0.0
        %v2422 = vand.u32 %v1804, 4294901760
        %2423 = vmatpush1.msra.mxu0 %v2422
        %2424 = vmatprep.subr.mxu0 0.0
        %v2425 = vand.u32 %v1803, 4294901760
        %2426 = vmatpush1.msra.mxu0 %v2425
        %2427 = vmatprep.subr.mxu0 0.0
        %v2428 = vand.u32 %v1802, 4294901760
        %2429 = vmatpush1.msra.mxu0 %v2428
        %2430 = vmatprep.subr.mxu0 0.0
        %v2431 = vand.u32 %v1801, 4294901760
        %2432 = vmatpush1.msra.mxu0 %v2431
        %2433 = vmatprep.subr.mxu0 0.0
        %v2434 = vand.u32 %v1800, 4294901760
        %2435 = vmatpush1.msra.mxu0 %v2434
        %2436 = vmatprep.subr.mxu0 0.0
        %v2437 = vand.u32 %v1799, 4294901760
        %2438 = vmatpush1.msra.mxu0 %v2437
        %2439 = vmatprep.subr.mxu0 0.0
        %v2440 = vand.u32 %v1798, 4294901760
        %2441 = vmatpush1.msra.mxu0 %v2440
        %2442 = vmatprep.subr.mxu0 0.0
        %v2443 = vand.u32 %v1797, 4294901760
        %2444 = vmatpush1.msra.mxu0 %v2443
        %2445 = vmatprep.subr.mxu0 0.0
        %v2446 = vand.u32 %v1796, 4294901760
        %2447 = vmatpush1.msra.mxu0 %v2446
        %2448 = vmatprep.subr.mxu0 0.0
        %v2449 = vand.u32 %v1795, 4294901760
        %2450 = vmatpush1.msra.mxu0 %v2449
        %2451 = vmatprep.subr.mxu0 0.0
        %v2452 = vand.u32 %v1794, 4294901760
        %2453 = vmatpush1.msra.mxu0 %v2452
        %2454 = vmatprep.subr.mxu0 0.0
        %v2455 = vand.u32 %v1825, 4294901760
        %2456 = vmatpush2.msra.mxu0 %v2455
        %2457 = vmatprep.subr.mxu0 0.0
        %v2458 = vand.u32 %v1824, 4294901760
        %2459 = vmatpush2.msra.mxu0 %v2458
        %2460 = vmatprep.subr.mxu0 0.0
        %v2461 = vand.u32 %v1823, 4294901760
        %2462 = vmatpush2.msra.mxu0 %v2461
        %2463 = vmatprep.subr.mxu0 0.0
        %v2464 = vand.u32 %v1822, 4294901760
        %2465 = vmatpush2.msra.mxu0 %v2464
        %2466 = vmatprep.subr.mxu0 0.0
        %v2467 = vand.u32 %v1821, 4294901760
        %2468 = vmatpush2.msra.mxu0 %v2467
        %2469 = vmatprep.subr.mxu0 0.0
        %v2470 = vand.u32 %v1820, 4294901760
        %2471 = vmatpush2.msra.mxu0 %v2470
        %2472 = vmatprep.subr.mxu0 0.0
        %v2473 = vand.u32 %v1819, 4294901760
        %2474 = vmatpush2.msra.mxu0 %v2473
        %2475 = vmatprep.subr.mxu0 0.0
        %v2476 = vand.u32 %v1818, 4294901760
        %2477 = vmatpush2.msra.mxu0 %v2476
        %2478 = vmatprep.subr.mxu0 0.0
        %v2479 = vand.u32 %v1817, 4294901760
        %2480 = vmatpush2.msra.mxu0 %v2479
        %2481 = vmatprep.subr.mxu0 0.0
        %v2482 = vand.u32 %v1816, 4294901760
        %2483 = vmatpush2.msra.mxu0 %v2482
        %2484 = vmatprep.subr.mxu0 0.0
        %v2485 = vand.u32 %v1815, 4294901760
        %2486 = vmatpush2.msra.mxu0 %v2485
        %2487 = vmatprep.subr.mxu0 0.0
        %v2488 = vand.u32 %v1814, 4294901760
        %2489 = vmatpush2.msra.mxu0 %v2488
        %2490 = vmatprep.subr.mxu0 0.0
        %v2491 = vand.u32 %v1813, 4294901760
        %2492 = vmatpush2.msra.mxu0 %v2491
        %2493 = vmatprep.subr.mxu0 0.0
        %v2494 = vand.u32 %v1812, 4294901760
        %2495 = vmatpush2.msra.mxu0 %v2494
        %2496 = vmatprep.subr.mxu0 0.0
        %v2497 = vand.u32 %v1811, 4294901760
        %2498 = vmatpush2.msra.mxu0 %v2497
        %2499 = vmatprep.subr.mxu0 0.0
        %v2500 = vand.u32 %v1810, 4294901760
        %2501 = vmatpush2.msra.mxu0 %v2500
        %v2502 = vand.u32 %v1787, 4294901760
        %v2503 = vsub.f32 %v1787, %v2502
        %v2504 = vand.u32 %v2503, 4294901760
        %2505 = vmatprep.mubr.f32.mxu0 %v2504
        %v2506 = vand.u32 %v1786, 4294901760
        %v2507 = vsub.f32 %v1786, %v2506
        %v2508 = vand.u32 %v2507, 4294901760
        %2509 = vmatmul.mubr.f32.gmra.mxu0 %v2508
        %v2510 = vpop.f32.mrf.mxu0
        %v2511 = vadd.f32 %v2376, %v2510
        %v2512 = vpop.f32.mrf.mxu0
        %v2513 = vand.u32 %v1789, 4294901760
        %v2514 = vsub.f32 %v1789, %v2513
        %v2515 = vand.u32 %v2514, 4294901760
        %2516 = vmatprep.mubr.f32.mxu0 %v2515
        %v2517 = vand.u32 %v1788, 4294901760
        %v2518 = vsub.f32 %v1788, %v2517
        %v2519 = vand.u32 %v2518, 4294901760
        %2520 = vmatmul.mubr.f32.gmra.mxu0 %v2519
        %v2521 = vpop.f32.mrf.mxu0
        %v2522 = vadd.f32 %v2385, %v2521
        %v2523 = vpop.f32.mrf.mxu0
        %v2524 = vand.u32 %v1791, 4294901760
        %v2525 = vsub.f32 %v1791, %v2524
        %v2526 = vand.u32 %v2525, 4294901760
        %2527 = vmatprep.mubr.f32.mxu0 %v2526
        %v2528 = vand.u32 %v1790, 4294901760
        %v2529 = vsub.f32 %v1790, %v2528
        %v2530 = vand.u32 %v2529, 4294901760
        %2531 = vmatmul.mubr.f32.gmra.mxu0 %v2530
        %v2532 = vpop.f32.mrf.mxu0
        %v2533 = vadd.f32 %v2394, %v2532
        %v2534 = vpop.f32.mrf.mxu0
        %v2535 = vand.u32 %v1793, 4294901760
        %v2536 = vsub.f32 %v1793, %v2535
        %v2537 = vand.u32 %v2536, 4294901760
        %2538 = vmatprep.mubr.f32.mxu0 %v2537
        %v2539 = vand.u32 %v1792, 4294901760
        %v2540 = vsub.f32 %v1792, %v2539
        %v2541 = vand.u32 %v2540, 4294901760
        %2542 = vmatmul.mubr.f32.gmra.mxu0 %v2541
        %v2543 = vpop.f32.mrf.mxu0
        %v2544 = vadd.f32 %v2403, %v2543
        %v2545 = vpop.f32.mrf.mxu0
        %2546 = vdwg.mxu0
        %2547 = vmatprep.subr.mxu0 0.0
        %v2548 = vand.u32 %v1809, 4294901760
        %v2549 = vsub.f32 %v1809, %v2548
        %v2550 = vand.u32 %v2549, 4294901760
        %2551 = vmatpush1.msra.mxu0 %v2550
        %2552 = vmatprep.subr.mxu0 0.0
        %v2553 = vand.u32 %v1808, 4294901760
        %v2554 = vsub.f32 %v1808, %v2553
        %v2555 = vand.u32 %v2554, 4294901760
        %2556 = vmatpush1.msra.mxu0 %v2555
        %2557 = vmatprep.subr.mxu0 0.0
        %v2558 = vand.u32 %v1807, 4294901760
        %v2559 = vsub.f32 %v1807, %v2558
        %v2560 = vand.u32 %v2559, 4294901760
        %2561 = vmatpush1.msra.mxu0 %v2560
        %2562 = vmatprep.subr.mxu0 0.0
        %v2563 = vand.u32 %v1806, 4294901760
        %v2564 = vsub.f32 %v1806, %v2563
        %v2565 = vand.u32 %v2564, 4294901760
        %2566 = vmatpush1.msra.mxu0 %v2565
        %2567 = vmatprep.subr.mxu0 0.0
        %v2568 = vand.u32 %v1805, 4294901760
        %v2569 = vsub.f32 %v1805, %v2568
        %v2570 = vand.u32 %v2569, 4294901760
        %2571 = vmatpush1.msra.mxu0 %v2570
        %2572 = vmatprep.subr.mxu0 0.0
        %v2573 = vand.u32 %v1804, 4294901760
        %v2574 = vsub.f32 %v1804, %v2573
        %v2575 = vand.u32 %v2574, 4294901760
        %2576 = vmatpush1.msra.mxu0 %v2575
        %2577 = vmatprep.subr.mxu0 0.0
        %v2578 = vand.u32 %v1803, 4294901760
        %v2579 = vsub.f32 %v1803, %v2578
        %v2580 = vand.u32 %v2579, 4294901760
        %2581 = vmatpush1.msra.mxu0 %v2580
        %2582 = vmatprep.subr.mxu0 0.0
        %v2583 = vand.u32 %v1802, 4294901760
        %v2584 = vsub.f32 %v1802, %v2583
        %v2585 = vand.u32 %v2584, 4294901760
        %2586 = vmatpush1.msra.mxu0 %v2585
        %2587 = vmatprep.subr.mxu0 0.0
        %v2588 = vand.u32 %v1801, 4294901760
        %v2589 = vsub.f32 %v1801, %v2588
        %v2590 = vand.u32 %v2589, 4294901760
        %2591 = vmatpush1.msra.mxu0 %v2590
        %2592 = vmatprep.subr.mxu0 0.0
        %v2593 = vand.u32 %v1800, 4294901760
        %v2594 = vsub.f32 %v1800, %v2593
        %v2595 = vand.u32 %v2594, 4294901760
        %2596 = vmatpush1.msra.mxu0 %v2595
        %2597 = vmatprep.subr.mxu0 0.0
        %v2598 = vand.u32 %v1799, 4294901760
        %v2599 = vsub.f32 %v1799, %v2598
        %v2600 = vand.u32 %v2599, 4294901760
        %2601 = vmatpush1.msra.mxu0 %v2600
        %2602 = vmatprep.subr.mxu0 0.0
        %v2603 = vand.u32 %v1798, 4294901760
        %v2604 = vsub.f32 %v1798, %v2603
        %v2605 = vand.u32 %v2604, 4294901760
        %2606 = vmatpush1.msra.mxu0 %v2605
        %2607 = vmatprep.subr.mxu0 0.0
        %v2608 = vand.u32 %v1797, 4294901760
        %v2609 = vsub.f32 %v1797, %v2608
        %v2610 = vand.u32 %v2609, 4294901760
        %2611 = vmatpush1.msra.mxu0 %v2610
        %2612 = vmatprep.subr.mxu0 0.0
        %v2613 = vand.u32 %v1796, 4294901760
        %v2614 = vsub.f32 %v1796, %v2613
        %v2615 = vand.u32 %v2614, 4294901760
        %2616 = vmatpush1.msra.mxu0 %v2615
        %2617 = vmatprep.subr.mxu0 0.0
        %v2618 = vand.u32 %v1795, 4294901760
        %v2619 = vsub.f32 %v1795, %v2618
        %v2620 = vand.u32 %v2619, 4294901760
        %2621 = vmatpush1.msra.mxu0 %v2620
        %2622 = vmatprep.subr.mxu0 0.0
        %v2623 = vand.u32 %v1794, 4294901760
        %v2624 = vsub.f32 %v1794, %v2623
        %v2625 = vand.u32 %v2624, 4294901760
        %2626 = vmatpush1.msra.mxu0 %v2625
        %2627 = vmatprep.subr.mxu0 0.0
        %v2628 = vand.u32 %v1825, 4294901760
        %v2629 = vsub.f32 %v1825, %v2628
        %v2630 = vand.u32 %v2629, 4294901760
        %2631 = vmatpush2.msra.mxu0 %v2630
        %2632 = vmatprep.subr.mxu0 0.0
        %v2633 = vand.u32 %v1824, 4294901760
        %v2634 = vsub.f32 %v1824, %v2633
        %v2635 = vand.u32 %v2634, 4294901760
        %2636 = vmatpush2.msra.mxu0 %v2635
        %2637 = vmatprep.subr.mxu0 0.0
        %v2638 = vand.u32 %v1823, 4294901760
        %v2639 = vsub.f32 %v1823, %v2638
        %v2640 = vand.u32 %v2639, 4294901760
        %2641 = vmatpush2.msra.mxu0 %v2640
        %2642 = vmatprep.subr.mxu0 0.0
        %v2643 = vand.u32 %v1822, 4294901760
        %v2644 = vsub.f32 %v1822, %v2643
        %v2645 = vand.u32 %v2644, 4294901760
        %2646 = vmatpush2.msra.mxu0 %v2645
        %2647 = vmatprep.subr.mxu0 0.0
        %v2648 = vand.u32 %v1821, 4294901760
        %v2649 = vsub.f32 %v1821, %v2648
        %v2650 = vand.u32 %v2649, 4294901760
        %2651 = vmatpush2.msra.mxu0 %v2650
        %2652 = vmatprep.subr.mxu0 0.0
        %v2653 = vand.u32 %v1820, 4294901760
        %v2654 = vsub.f32 %v1820, %v2653
        %v2655 = vand.u32 %v2654, 4294901760
        %2656 = vmatpush2.msra.mxu0 %v2655
        %2657 = vmatprep.subr.mxu0 0.0
        %v2658 = vand.u32 %v1819, 4294901760
        %v2659 = vsub.f32 %v1819, %v2658
        %v2660 = vand.u32 %v2659, 4294901760
        %2661 = vmatpush2.msra.mxu0 %v2660
        %2662 = vmatprep.subr.mxu0 0.0
        %v2663 = vand.u32 %v1818, 4294901760
        %v2664 = vsub.f32 %v1818, %v2663
        %v2665 = vand.u32 %v2664, 4294901760
        %2666 = vmatpush2.msra.mxu0 %v2665
        %2667 = vmatprep.subr.mxu0 0.0
        %v2668 = vand.u32 %v1817, 4294901760
        %v2669 = vsub.f32 %v1817, %v2668
        %v2670 = vand.u32 %v2669, 4294901760
        %2671 = vmatpush2.msra.mxu0 %v2670
        %2672 = vmatprep.subr.mxu0 0.0
        %v2673 = vand.u32 %v1816, 4294901760
        %v2674 = vsub.f32 %v1816, %v2673
        %v2675 = vand.u32 %v2674, 4294901760
        %2676 = vmatpush2.msra.mxu0 %v2675
        %2677 = vmatprep.subr.mxu0 0.0
        %v2678 = vand.u32 %v1815, 4294901760
        %v2679 = vsub.f32 %v1815, %v2678
        %v2680 = vand.u32 %v2679, 4294901760
        %2681 = vmatpush2.msra.mxu0 %v2680
        %2682 = vmatprep.subr.mxu0 0.0
        %v2683 = vand.u32 %v1814, 4294901760
        %v2684 = vsub.f32 %v1814, %v2683
        %v2685 = vand.u32 %v2684, 4294901760
        %2686 = vmatpush2.msra.mxu0 %v2685
        %2687 = vmatprep.subr.mxu0 0.0
        %v2688 = vand.u32 %v1813, 4294901760
        %v2689 = vsub.f32 %v1813, %v2688
        %v2690 = vand.u32 %v2689, 4294901760
        %2691 = vmatpush2.msra.mxu0 %v2690
        %2692 = vmatprep.subr.mxu0 0.0
        %v2693 = vand.u32 %v1812, 4294901760
        %v2694 = vsub.f32 %v1812, %v2693
        %v2695 = vand.u32 %v2694, 4294901760
        %2696 = vmatpush2.msra.mxu0 %v2695
        %2697 = vmatprep.subr.mxu0 0.0
        %v2698 = vand.u32 %v1811, 4294901760
        %v2699 = vsub.f32 %v1811, %v2698
        %v2700 = vand.u32 %v2699, 4294901760
        %2701 = vmatpush2.msra.mxu0 %v2700
        %2702 = vmatprep.subr.mxu0 0.0
        %v2703 = vand.u32 %v1810, 4294901760
        %v2704 = vsub.f32 %v1810, %v2703
        %v2705 = vand.u32 %v2704, 4294901760
        %2706 = vmatpush2.msra.mxu0 %v2705
        %v2707 = vand.u32 %v1787, 4294901760
        %2708 = vmatprep.mubr.f32.mxu0 %v2707
        %v2709 = vand.u32 %v1786, 4294901760
        %2710 = vmatmul.mubr.f32.gmra.mxu0 %v2709
        %v2711 = vpop.f32.mrf.mxu0
        %v2712 = vadd.f32 %v2511, %v2711
        %v2713 = vpop.f32.mrf.mxu0
        %v2714 = vand.u32 %v1789, 4294901760
        %2715 = vmatprep.mubr.f32.mxu0 %v2714
        %v2716 = vand.u32 %v1788, 4294901760
        %2717 = vmatmul.mubr.f32.gmra.mxu0 %v2716
        %v2718 = vpop.f32.mrf.mxu0
        %v2719 = vadd.f32 %v2522, %v2718
        %v2720 = vpop.f32.mrf.mxu0
        %v2721 = vand.u32 %v1791, 4294901760
        %2722 = vmatprep.mubr.f32.mxu0 %v2721
        %v2723 = vand.u32 %v1790, 4294901760
        %2724 = vmatmul.mubr.f32.gmra.mxu0 %v2723
        %v2725 = vpop.f32.mrf.mxu0
        %v2726 = vadd.f32 %v2533, %v2725
        %v2727 = vpop.f32.mrf.mxu0
        %v2728 = vand.u32 %v1793, 4294901760
        %2729 = vmatprep.mubr.f32.mxu0 %v2728
        %v2730 = vand.u32 %v1792, 4294901760
        %2731 = vmatmul.mubr.f32.gmra.mxu0 %v2730
        %v2732 = vpop.f32.mrf.mxu0
        %v2733 = vadd.f32 %v2544, %v2732
        %v2734 = vpop.f32.mrf.mxu0
        %2735 = vdwg.mxu0
        %2736 = vmatprep.subr.mxu0 0.0
        %v2737 = vand.u32 %v1809, 4294901760
        %2738 = vmatpush1.msra.mxu0 %v2737
        %2739 = vmatprep.subr.mxu0 0.0
        %v2740 = vand.u32 %v1808, 4294901760
        %2741 = vmatpush1.msra.mxu0 %v2740
        %2742 = vmatprep.subr.mxu0 0.0
        %v2743 = vand.u32 %v1807, 4294901760
        %2744 = vmatpush1.msra.mxu0 %v2743
        %2745 = vmatprep.subr.mxu0 0.0
        %v2746 = vand.u32 %v1806, 4294901760
        %2747 = vmatpush1.msra.mxu0 %v2746
        %2748 = vmatprep.subr.mxu0 0.0
        %v2749 = vand.u32 %v1805, 4294901760
        %2750 = vmatpush1.msra.mxu0 %v2749
        %2751 = vmatprep.subr.mxu0 0.0
        %v2752 = vand.u32 %v1804, 4294901760
        %2753 = vmatpush1.msra.mxu0 %v2752
        %2754 = vmatprep.subr.mxu0 0.0
        %v2755 = vand.u32 %v1803, 4294901760
        %2756 = vmatpush1.msra.mxu0 %v2755
        %2757 = vmatprep.subr.mxu0 0.0
        %v2758 = vand.u32 %v1802, 4294901760
        %2759 = vmatpush1.msra.mxu0 %v2758
        %2760 = vmatprep.subr.mxu0 0.0
        %v2761 = vand.u32 %v1801, 4294901760
        %2762 = vmatpush1.msra.mxu0 %v2761
        %2763 = vmatprep.subr.mxu0 0.0
        %v2764 = vand.u32 %v1800, 4294901760
        %2765 = vmatpush1.msra.mxu0 %v2764
        %2766 = vmatprep.subr.mxu0 0.0
        %v2767 = vand.u32 %v1799, 4294901760
        %2768 = vmatpush1.msra.mxu0 %v2767
        %2769 = vmatprep.subr.mxu0 0.0
        %v2770 = vand.u32 %v1798, 4294901760
        %2771 = vmatpush1.msra.mxu0 %v2770
        %2772 = vmatprep.subr.mxu0 0.0
        %v2773 = vand.u32 %v1797, 4294901760
        %2774 = vmatpush1.msra.mxu0 %v2773
        %2775 = vmatprep.subr.mxu0 0.0
        %v2776 = vand.u32 %v1796, 4294901760
        %2777 = vmatpush1.msra.mxu0 %v2776
        %2778 = vmatprep.subr.mxu0 0.0
        %v2779 = vand.u32 %v1795, 4294901760
        %2780 = vmatpush1.msra.mxu0 %v2779
        %2781 = vmatprep.subr.mxu0 0.0
        %v2782 = vand.u32 %v1794, 4294901760
        %2783 = vmatpush1.msra.mxu0 %v2782
        %2784 = vmatprep.subr.mxu0 0.0
        %v2785 = vand.u32 %v1825, 4294901760
        %2786 = vmatpush2.msra.mxu0 %v2785
        %2787 = vmatprep.subr.mxu0 0.0
        %v2788 = vand.u32 %v1824, 4294901760
        %2789 = vmatpush2.msra.mxu0 %v2788
        %2790 = vmatprep.subr.mxu0 0.0
        %v2791 = vand.u32 %v1823, 4294901760
        %2792 = vmatpush2.msra.mxu0 %v2791
        %2793 = vmatprep.subr.mxu0 0.0
        %v2794 = vand.u32 %v1822, 4294901760
        %2795 = vmatpush2.msra.mxu0 %v2794
        %2796 = vmatprep.subr.mxu0 0.0
        %v2797 = vand.u32 %v1821, 4294901760
        %2798 = vmatpush2.msra.mxu0 %v2797
        %2799 = vmatprep.subr.mxu0 0.0
        %v2800 = vand.u32 %v1820, 4294901760
        %2801 = vmatpush2.msra.mxu0 %v2800
        %2802 = vmatprep.subr.mxu0 0.0
        %v2803 = vand.u32 %v1819, 4294901760
        %2804 = vmatpush2.msra.mxu0 %v2803
        %2805 = vmatprep.subr.mxu0 0.0
        %v2806 = vand.u32 %v1818, 4294901760
        %2807 = vmatpush2.msra.mxu0 %v2806
        %2808 = vmatprep.subr.mxu0 0.0
        %v2809 = vand.u32 %v1817, 4294901760
        %2810 = vmatpush2.msra.mxu0 %v2809
        %2811 = vmatprep.subr.mxu0 0.0
        %v2812 = vand.u32 %v1816, 4294901760
        %2813 = vmatpush2.msra.mxu0 %v2812
        %2814 = vmatprep.subr.mxu0 0.0
        %v2815 = vand.u32 %v1815, 4294901760
        %2816 = vmatpush2.msra.mxu0 %v2815
        %2817 = vmatprep.subr.mxu0 0.0
        %v2818 = vand.u32 %v1814, 4294901760
        %2819 = vmatpush2.msra.mxu0 %v2818
        %2820 = vmatprep.subr.mxu0 0.0
        %v2821 = vand.u32 %v1813, 4294901760
        %2822 = vmatpush2.msra.mxu0 %v2821
        %2823 = vmatprep.subr.mxu0 0.0
        %v2824 = vand.u32 %v1812, 4294901760
        %2825 = vmatpush2.msra.mxu0 %v2824
        %2826 = vmatprep.subr.mxu0 0.0
        %v2827 = vand.u32 %v1811, 4294901760
        %2828 = vmatpush2.msra.mxu0 %v2827
        %2829 = vmatprep.subr.mxu0 0.0
        %v2830 = vand.u32 %v1810, 4294901760
        %2831 = vmatpush2.msra.mxu0 %v2830
        %v2832 = vand.u32 %v1787, 4294901760
        %2833 = vmatprep.mubr.f32.mxu0 %v2832
        %v2834 = vand.u32 %v1786, 4294901760
        %2835 = vmatmul.mubr.f32.gmra.mxu0 %v2834
        %v2836 = vpop.f32.mrf.mxu0
        %v2837 = vadd.f32 %v2712, %v2836
        %v2838 = vpop.f32.mrf.mxu0
        %v2839 = vand.u32 %v1789, 4294901760
        %2840 = vmatprep.mubr.f32.mxu0 %v2839
        %v2841 = vand.u32 %v1788, 4294901760
        %2842 = vmatmul.mubr.f32.gmra.mxu0 %v2841
        %v2843 = vpop.f32.mrf.mxu0
        %v2844 = vadd.f32 %v2719, %v2843
        %v2845 = vpop.f32.mrf.mxu0
        %v2846 = vand.u32 %v1791, 4294901760
        %2847 = vmatprep.mubr.f32.mxu0 %v2846
        %v2848 = vand.u32 %v1790, 4294901760
        %2849 = vmatmul.mubr.f32.gmra.mxu0 %v2848
        %v2850 = vpop.f32.mrf.mxu0
        %v2851 = vadd.f32 %v2726, %v2850
        %v2852 = vpop.f32.mrf.mxu0
        %v2853 = vand.u32 %v1793, 4294901760
        %2854 = vmatprep.mubr.f32.mxu0 %v2853
        %v2855 = vand.u32 %v1792, 4294901760
        %2856 = vmatmul.mubr.f32.gmra.mxu0 %v2855
        %v2857 = vpop.f32.mrf.mxu0
        %v2858 = vadd.f32 %v2733, %v2857
        %v2859 = vpop.f32.mrf.mxu0
        %2860 = vdwg.mxu0
        %v2861 = vadd.f32 %v736, %v2837
        %v2862 = vadd.f32 %v737, %v2844
        %v2863 = vadd.f32 %v738, %v2851
        %v2864 = vadd.f32 %v739, %v2858
        %v2865 = vld [vmem:[%s336 + $0x2] sm:$0x1]
        %v2866 = vld [vmem:[%s336 + $0x3] sm:$0x1]
        %2867 = vadd.xlane.f32.xlu0 %v2861
        %v2868 = vpop.xlane.xlu0 %2867
        %2869 = vadd.xlane.f32.xlu0 %v2862
        %v2870 = vpop.xlane.xlu0 %2869
        %2871 = vadd.xlane.f32.xlu0 %v2863
        %v2872 = vpop.xlane.xlu0 %2871
        %2873 = vadd.xlane.f32.xlu0 %v2864
        %v2874 = vpop.xlane.xlu0 %2873
        %v2875 = vmul.f32 %v2868, %v687
        %v2876 = vmul.f32 %v2870, %v687
        %v2877 = vmul.f32 %v2872, %v687
        %v2878 = vmul.f32 %v2874, %v687
        %v2879 = vsub.f32 %v2861, %v2875
        %v2880 = vsub.f32 %v2862, %v2876
        %v2881 = vsub.f32 %v2863, %v2877
        %v2882 = vsub.f32 %v2864, %v2878
        %v2883 = vmul.f32 %v2879, %v2879
        %v2884 = vmul.f32 %v2880, %v2880
        %v2885 = vmul.f32 %v2881, %v2881
        %v2886 = vmul.f32 %v2882, %v2882
        %2887 = vadd.xlane.f32.xlu0 %v2883
        %v2888 = vpop.xlane.xlu0 %2887
        %2889 = vadd.xlane.f32.xlu0 %v2884
        %v2890 = vpop.xlane.xlu0 %2889
        %2891 = vadd.xlane.f32.xlu0 %v2885
        %v2892 = vpop.xlane.xlu0 %2891
        %2893 = vadd.xlane.f32.xlu0 %v2886
        %v2894 = vpop.xlane.xlu0 %2893
        %v2895 = vmul.f32 %v2888, %v687
        %v2896 = vmul.f32 %v2890, %v687
        %v2897 = vmul.f32 %v2892, %v687
        %v2898 = vmul.f32 %v2894, %v687
        %v2899 = vadd.f32 %v2895, 1e-05
        %v2900 = vadd.f32 %v2896, 1e-05
        %v2901 = vadd.f32 %v2897, 1e-05
        %v2902 = vadd.f32 %v2898, 1e-05
        %v2903 = vrsqrt.pop %v2899
        %v2904 = vrsqrt.pop %v2900
        %v2905 = vrsqrt.pop %v2901
        %v2906 = vrsqrt.pop %v2902
        %v2907 = vmul.f32 %v2879, %v2903
        %v2908 = vmul.f32 %v2880, %v2904
        %v2909 = vmul.f32 %v2881, %v2905
        %v2910 = vmul.f32 %v2882, %v2906
        %v2911 = vlaneseq
        %v2912 = vshrl.u32 %v2911, 7
        %v2913 = vsub.s32 0, %v2912
        %v2914 = vrot.slane %v2865, %v2913
        %v2915 = vmul.f32 %v2907, %v2914
        %v2916 = vmul.f32 %v2908, %v2914
        %v2917 = vmul.f32 %v2909, %v2914
        %v2918 = vmul.f32 %v2910, %v2914
        %v2919 = vlaneseq
        %v2920 = vshrl.u32 %v2919, 7
        %v2921 = vsub.s32 0, %v2920
        %v2922 = vrot.slane %v2866, %v2921
        %v2923 = vadd.f32 %v2915, %v2922
        %v2924 = vadd.f32 %v2916, %v2922
        %v2925 = vadd.f32 %v2917, %v2922
        %v2926 = vadd.f32 %v2918, %v2922
        %2927 = vst [vmem:[#allocation2] sm:$0xff] %v2923
        %2928 = vst [vmem:[#allocation2 + $0x8] sm:$0xff] %v2924
        %2929 = vst [vmem:[#allocation2 + $0x10] sm:$0xff] %v2925
        %2930 = vst [vmem:[#allocation2 + $0x18] sm:$0xff] %v2926
        %2931 = vst [vmem:[#allocation12] sm:$0xff] %v2923
        %2932 = vst [vmem:[#allocation12 + $0x8] sm:$0xff] %v2924
        %2933 = vst [vmem:[#allocation12 + $0x10] sm:$0xff] %v2925
        %2934 = vst [vmem:[#allocation12 + $0x18] sm:$0xff] %v2926
        // Predicated region
        $region69: #{s4_encoder_forward.1} parent=43 // pred_check
          %p2935 = pneg %p189
        $region70: #{s4_encoder_forward.1} parent=43 // pred_check_branch
          %2937 = sbr.rel (%p2935) target = $region72
        $region71: #{s4_encoder_forward.1} parent=43 // pred_region
          %s2939 = ssub.s32 512, 512
          %2940 = vsyncadd [#allocation5], %s2939
          %s2941 = sshll.u32 [#allocation12], 4
          %s2942 = int_to_ptr.vmem [resolvable:$true] %s2941
          %2947 = dma.vmem_to_hbm [thread:$0]  %s2942, 512, %s6, [#allocation5], 128, 128, 8
        $region72: #{s4_encoder_forward.1} parent=43 // pred_fallthru
          _
        // Predicated region
        $region73: #{s4_encoder_forward.1} parent=43 // pred_check
          %p2948 = pneg %p189
        $region74: #{s4_encoder_forward.1} parent=43 // pred_check_branch
          %2950 = sbr.rel (%p2948) target = $region76
        $region75: #{s4_encoder_forward.1} parent=43 // pred_region
          %2951 = dma.done [#allocation5], 512
        $region76: #{s4_encoder_forward.1} parent=43 // pred_fallthru
          _
      $region44: #{s4_encoder_forward.1} parent=5 // pred_fallthru
        _
      %p2952 = scmp.le.s32.totalorder 2, %s20
      // Predicated region
      $region77: #{s4_encoder_forward.1} parent=5 // pred_check
        %p2953 = pneg %p2952
      $region78: #{s4_encoder_forward.1} parent=5 // pred_check_branch
        %2955 = sbr.rel (%p2953) target = $region80
      $region79: #{s4_encoder_forward.1} parent=5 // pred_region
        %s2956 = ssub.s32 %s20, 2
      $region80: #{s4_encoder_forward.1} parent=5 // pred_fallthru
        _
    $region6: #{s4_encoder_forward.1} parent=1 // loop_footer
      %s24 = sadd.s32 1, %s20
    $region7: #{s4_encoder_forward.1} parent=1 // loop_footer_branch
      %19 = sbr.rel target = $region3
    $region8: #{s4_encoder_forward.1} parent=1 // loop_exit
      _
    %2957 = vsyncpa [#allocation4], 1
    %s2958 = scalar_lea.sflag [#allocation4], 1
    %2959 = vsyncpa %s2958, 1
    %2960 = vsyncpa [#allocation7], 1
    %s2961 = scalar_lea.sflag [#allocation7], 1
    %2962 = vsyncpa %s2961, 1
    %2963 = vsyncpa [#allocation10], 1
    %s2964 = scalar_lea.sflag [#allocation10], 1
    %2965 = vsyncpa %s2964, 1
    %2966 = vsyncpa [#allocation5], 1
    %s2967 = scalar_lea.sflag [#allocation5], 1
    %2968 = vsyncpa %s2967, 1

</llo_original>
